<compile_context>
chip_gen: v6e
topology: v6e:2x2x1
jax: 0.10.0
libtpu: 0.0.40
codegen_flags: <defaults>
</compile_context>

<pallas_src>
import jax
import jax.numpy as jnp
from jax.experimental import pallas as pl
from jax.experimental.pallas import tpu as pltpu

D_IN = 768
D_HID = 1536
D_OUT = 200
D_OUT_PAD = 256   # lane-dense output block (200 -> 256) so stores are unmasked vst


def sentence_agg_kernel(x_ref, w1_ref, b1_ref, w2_ref, b2_ref, o_ref):
    bt, t, d = x_ref.shape                                    # (B_TILE, T, 768), bf16

    # linear1 + ReLU on the whole batch tile: (B_TILE*T, 768) @ (768, 1536), f32 accum.
    x = x_ref[...].reshape(bt * t, d)
    h = jnp.dot(x, w1_ref[...], preferred_element_type=jnp.float32)
    h = jnp.maximum(h + b1_ref[...], 0.0)                     # (B_TILE*T, 1536) f32

    # Token reduction: the 1/T mean scale is folded into w2 host-side, so a sum
    # suffices here (f32, T multiple of 8 -> within-vreg cross-sublane XLU reduce).
    m = jnp.sum(h.reshape(bt, t, D_HID), axis=1)              # (B_TILE, 1536) f32

    # linear2 + ReLU: (B_TILE, 1536) @ (1536, 256-padded), f32 accum.
    y = jnp.dot(m.astype(jnp.bfloat16), w2_ref[...],
                preferred_element_type=jnp.float32)
    y = jnp.maximum(y + b2_ref[...], 0.0)                     # (B_TILE, 256)
    o_ref[...] = y.astype(o_ref.dtype)


def _stream_footprint_bytes(b_tile, T):
    """Rough per-step VMEM footprint of the streamed buffers + intermediates."""
    x_buf = 2 * b_tile * T * D_IN * 2          # bf16 x tile, double-buffered
    h_buf = b_tile * T * D_HID * 4             # f32 hidden activations
    m_buf = b_tile * D_HID * 4                 # f32 reduced hidden
    o_buf = 2 * b_tile * D_OUT_PAD * 4         # f32 output tile, double-buffered
    return x_buf + h_buf + m_buf + o_buf


_WEIGHTS_BYTES = (D_IN * D_HID * 2) + (D_HID * D_OUT_PAD * 2) + (D_HID + D_OUT_PAD) * 4


def sentence_agg(x, w1, b1, w2, b2, *, target_rows=512):
    """x: (B, T, 768) -> (B, 200) f32.

    Weights (nn.Linear params transposed to (in, out)):
      w1 (768, 1536) bf16, b1 (1, 1536) f32, w2 (1536, 200) bf16, b2 (1, 200) f32.
    Accuracy note (intentional): matmul operands (x, m, weights) run in bf16 with
    f32 accumulation.
    """
    B, T, D = x.shape
    assert D == D_IN

    # Stream x as bf16: halves the only large HBM read, removes per-step casts.
    x = x.astype(jnp.bfloat16)

    # Fold 1/T into w2 (kernel sums over T) and zero-pad output lanes 200 -> 256.
    w2_scaled = (w2.astype(jnp.float32) / T).astype(jnp.bfloat16)
    w2p = jnp.zeros((D_HID, D_OUT_PAD), jnp.bfloat16).at[:, :D_OUT].set(w2_scaled)
    b2p = jnp.zeros((1, D_OUT_PAD), jnp.float32).at[:, :D_OUT].set(
        b2.reshape(1, D_OUT).astype(jnp.float32))

    # --- batch-tile selection ------------------------------------------------
    # Target ~target_rows MXU rows per step, but cap the streaming VMEM footprint
    # so the kernel stays inside v5e's 16 MiB scoped default and well inside
    # v7x's 64 MiB physical VMEM without per-generation retuning.
    vmem_budget = 12 * 1024 * 1024
    b_tile = max(1, target_rows // T)
    while b_tile > 1 and _stream_footprint_bytes(b_tile, T) > vmem_budget:
        b_tile //= 2
    # TODO(synk): for very large T (>~2048) a T-tiling grid axis would be needed;
    # at b_tile=1 the footprint can still exceed the budget.
    if b_tile >= B:
        b_tile = B                               # single step: block == full batch
        if B >= 32:
            # Prefer >=2 grid steps so the "parallel" axis shards across v7x's 2 TCs.
            b_tile = max(8, ((B // 2) // 8) * 8)
    else:
        b_tile = max(8, (b_tile // 8) * 8)       # sublane-aligned output block

    num_tiles = pl.cdiv(B, b_tile)
    # No host-side jnp.pad of x: the ragged last block reads unspecified rows, but
    # the token reduction is strictly per output row, so those rows only land in
    # output rows that the partial (masked) block write discards.

    vmem_limit = max(16 << 20,
                     min(_stream_footprint_bytes(b_tile, T) + _WEIGHTS_BYTES + (6 << 20),
                         28 << 20))

    resident = pl.Buffered(1)   # constant index_map -> single-buffer resident weights

    out = pl.pallas_call(
        sentence_agg_kernel,
        out_shape=jax.ShapeDtypeStruct((B, D_OUT_PAD), jnp.float32),
        grid=(num_tiles,),
        in_specs=[
            pl.BlockSpec((b_tile, T, D_IN), lambda i: (i, 0, 0)),                        # x tile (bf16)
            pl.BlockSpec((D_IN, D_HID), lambda i: (0, 0), pipeline_mode=resident),       # W1
            pl.BlockSpec((1, D_HID), lambda i: (0, 0), pipeline_mode=resident),          # b1
            pl.BlockSpec((D_HID, D_OUT_PAD), lambda i: (0, 0), pipeline_mode=resident),  # W2 (scaled, padded)
            pl.BlockSpec((1, D_OUT_PAD), lambda i: (0, 0), pipeline_mode=resident),      # b2 (padded)
        ],
        out_specs=pl.BlockSpec((b_tile, D_OUT_PAD), lambda i: (i, 0)),
        compiler_params=pltpu.CompilerParams(
            dimension_semantics=("parallel",),
            vmem_limit_bytes=int(vmem_limit),
        ),
    )(x, w1, b1, w2p, b2p)

    return out[:, :D_OUT]


def init_params(key):
    """Deterministic init matching nn.Linear shapes (weights transposed, stored bf16)."""
    k1, k2, k3, k4 = jax.random.split(key, 4)
    w1 = (jax.random.normal(k1, (D_IN, D_HID), jnp.float32)
          * (1.0 / jnp.sqrt(D_IN))).astype(jnp.bfloat16)
    b1 = jax.random.normal(k2, (1, D_HID), jnp.float32) * 0.01
    w2 = (jax.random.normal(k3, (D_HID, D_OUT), jnp.float32)
          * (1.0 / jnp.sqrt(D_HID))).astype(jnp.bfloat16)
    b2 = jax.random.normal(k4, (1, D_OUT), jnp.float32) * 0.01
    return w1, b1, w2, b2


def reference(x, w1, b1, w2, b2):
    """Pure-JAX reference in f32 (same bf16 weight values, f32 math)."""
    h = jnp.maximum(x @ w1.astype(jnp.float32) + b1, 0.0)
    m = jnp.mean(h, axis=-2)
    return jnp.maximum(m @ w2.astype(jnp.float32) + b2, 0.0)


if __name__ == "__main__":
    key = jax.random.PRNGKey(0)
    kx, kp = jax.random.split(key)

    B, T = 2, 8
    x = jax.random.normal(kx, (B, T, D_IN), jnp.float32)
    w1, b1, w2, b2 = init_params(kp)

    out = jax.block_until_ready(sentence_agg(x, w1, b1, w2, b2))
    ref = reference(x, w1, b1, w2, b2)

    assert out.shape == (B, D_OUT)
    # bf16 matmul operands with f32 accumulation -> loosened tolerance vs. the f32 reference.
    assert jnp.allclose(out, ref, atol=3e-2, rtol=3e-2), float(jnp.max(jnp.abs(out - ref)))

    print("KERNEL_OK")
</pallas_src>

<mosaic_0001>
module attributes {stable_mosaic.version = 11 : i64} {
  func.func @sentence_agg_kernel(%arg0: i32, %arg1: memref<2x8x768xbf16, #tpu.memory_space<vmem>>, %arg2: memref<768x1536xbf16, #tpu.memory_space<vmem>>, %arg3: memref<1x1536xf32, #tpu.memory_space<vmem>>, %arg4: memref<1536x256xbf16, #tpu.memory_space<vmem>>, %arg5: memref<1x256xf32, #tpu.memory_space<vmem>>, %arg6: memref<2x256xf32, #tpu.memory_space<vmem>>) attributes {dimension_semantics = [#tpu.dimension_semantics<parallel>], iteration_bounds = array<i64: 1>, scalar_prefetch = 0 : i64, scratch_operands = 0 : i64, tpu.core_type = #tpu.core_type<tc>, window_params = [{transform_indices = @transform_0, window_bounds = array<i64: 2, 8, 768>}, {pipeline_mode = #tpu.pipeline_mode<synchronous>, transform_indices = @transform_1, window_bounds = array<i64: 768, 1536>}, {pipeline_mode = #tpu.pipeline_mode<synchronous>, transform_indices = @transform_2, window_bounds = array<i64: 1, 1536>}, {pipeline_mode = #tpu.pipeline_mode<synchronous>, transform_indices = @transform_3, window_bounds = array<i64: 1536, 256>}, {pipeline_mode = #tpu.pipeline_mode<synchronous>, transform_indices = @transform_4, window_bounds = array<i64: 1, 256>}, {transform_indices = @transform_5, window_bounds = array<i64: 2, 256>}]} {
    %c0 = arith.constant 0 : index
    %c0_0 = arith.constant 0 : index
    %c0_1 = arith.constant 0 : index
    %0 = vector.load %arg1[%c0, %c0_0, %c0_1] : memref<2x8x768xbf16, #tpu.memory_space<vmem>>, vector<2x8x768xbf16>
    %1 = vector.shape_cast %0 : vector<2x8x768xbf16> to vector<16x768xbf16>
    %c0_2 = arith.constant 0 : index
    %c0_3 = arith.constant 0 : index
    %2 = vector.load %arg2[%c0_2, %c0_3] : memref<768x1536xbf16, #tpu.memory_space<vmem>>, vector<768x1536xbf16>
    %cst = arith.constant dense<0.000000e+00> : vector<16x1536xf32>
    %3 = tpu.matmul %1, %2, %cst {dimension_numbers = #tpu.dot_dimension_numbers<[1], [0], [0], [1], [0, 0, 1, 1], [], []>} : vector<16x768xbf16>, vector<768x1536xbf16>, vector<16x1536xf32> -> vector<16x1536xf32>
    %c0_4 = arith.constant 0 : index
    %c0_5 = arith.constant 0 : index
    %4 = vector.load %arg3[%c0_4, %c0_5] : memref<1x1536xf32, #tpu.memory_space<vmem>>, vector<1x1536xf32>
    %5 = vector.broadcast %4 : vector<1x1536xf32> to vector<16x1536xf32>
    %6 = arith.addf %3, %5 : vector<16x1536xf32>
    %cst_6 = arith.constant 0.000000e+00 : f32
    %7 = vector.broadcast %cst_6 : f32 to vector<16x1536xf32>
    %8 = arith.maximumf %6, %7 : vector<16x1536xf32>
    %9 = vector.shape_cast %8 : vector<16x1536xf32> to vector<2x8x1536xf32>
    %cst_7 = arith.constant dense<0.000000e+00> : vector<2x1536xf32>
    %10 = vector.multi_reduction <add>, %9, %cst_7 [1] : vector<2x8x1536xf32> to vector<2x1536xf32>
    %11 = arith.truncf %10 : vector<2x1536xf32> to vector<2x1536xbf16>
    %c0_8 = arith.constant 0 : index
    %c0_9 = arith.constant 0 : index
    %12 = vector.load %arg4[%c0_8, %c0_9] : memref<1536x256xbf16, #tpu.memory_space<vmem>>, vector<1536x256xbf16>
    %cst_10 = arith.constant dense<0.000000e+00> : vector<2x256xf32>
    %13 = tpu.matmul %11, %12, %cst_10 {dimension_numbers = #tpu.dot_dimension_numbers<[1], [0], [0], [1], [0, 0, 1, 1], [], []>} : vector<2x1536xbf16>, vector<1536x256xbf16>, vector<2x256xf32> -> vector<2x256xf32>
    %c0_11 = arith.constant 0 : index
    %c0_12 = arith.constant 0 : index
    %14 = vector.load %arg5[%c0_11, %c0_12] : memref<1x256xf32, #tpu.memory_space<vmem>>, vector<1x256xf32>
    %15 = vector.broadcast %14 : vector<1x256xf32> to vector<2x256xf32>
    %16 = arith.addf %13, %15 : vector<2x256xf32>
    %cst_13 = arith.constant 0.000000e+00 : f32
    %17 = vector.broadcast %cst_13 : f32 to vector<2x256xf32>
    %18 = arith.maximumf %16, %17 : vector<2x256xf32>
    %c0_14 = arith.constant 0 : index
    %c0_15 = arith.constant 0 : index
    %19 = vector.load %arg6[%c0_14, %c0_15] : memref<2x256xf32, #tpu.memory_space<vmem>>, vector<2x256xf32>
    tpu.vector_store %arg6[%c0_14, %c0_15], %18 {strides = array<i32>} : memref<2x256xf32, #tpu.memory_space<vmem>>, vector<2x256xf32>,
    return
  }
  func.func @transform_0(%arg0: i32) -> (i32, i32, i32) {
    %c0_i32 = arith.constant 0 : i32
    %c0_i32_0 = arith.constant 0 : i32
    %c0_i32_1 = arith.constant 0 : i32
    return %arg0, %c0_i32, %c0_i32_0 : i32, i32, i32
  }
  func.func @transform_1(%arg0: i32) -> (i32, i32) {
    %c0_i32 = arith.constant 0 : i32
    %c0_i32_0 = arith.constant 0 : i32
    %c0_i32_1 = arith.constant 0 : i32
    return %c0_i32, %c0_i32_0 : i32, i32
  }
  func.func @transform_2(%arg0: i32) -> (i32, i32) {
    %c0_i32 = arith.constant 0 : i32
    %c0_i32_0 = arith.constant 0 : i32
    %c0_i32_1 = arith.constant 0 : i32
    return %c0_i32, %c0_i32_0 : i32, i32
  }
  func.func @transform_3(%arg0: i32) -> (i32, i32) {
    %c0_i32 = arith.constant 0 : i32
    %c0_i32_0 = arith.constant 0 : i32
    %c0_i32_1 = arith.constant 0 : i32
    return %c0_i32, %c0_i32_0 : i32, i32
  }
  func.func @transform_4(%arg0: i32) -> (i32, i32) {
    %c0_i32 = arith.constant 0 : i32
    %c0_i32_0 = arith.constant 0 : i32
    %c0_i32_1 = arith.constant 0 : i32
    return %c0_i32, %c0_i32_0 : i32, i32
  }
  func.func @transform_5(%arg0: i32) -> (i32, i32) {
    %c0_i32 = arith.constant 0 : i32
    %c0_i32_0 = arith.constant 0 : i32
    return %arg0, %c0_i32 : i32, i32
  }
}

</mosaic_0001>

<llo_original>
// kernel: tpu_custom_call.1
$region0: #{tpu_custom_call.1}
  #allocation0 [shape = 'u32[]', space=smem, size = 0x4, offset = 0x4, fixed_abs, tag = 'smem constant byte address 0x4 - core index']
  #allocation1 [shape = 'u32[144,128]{1,0:T(1,128)}', space=vmem, size = 0x12000, scoped, tag = 'internal scratch']
  %s0 = inlined_call_operand.hbm [shape: bf16[2,8,768], index: 0, kind: input, shape index: {}]
  %s1 = inlined_call_operand.hbm [shape: bf16[768,1536], index: 1, kind: input, shape index: {}]
  %s2 = inlined_call_operand.hbm [shape: f32[1,1536], index: 2, kind: input, shape index: {}]
  %s3 = inlined_call_operand.hbm [shape: bf16[1536,256], index: 3, kind: input, shape index: {}]
  %s4 = inlined_call_operand.hbm [shape: f32[1,256], index: 4, kind: input, shape index: {}]
  %s5 = inlined_call_operand.hbm [shape: f32[2,256], index: 5, kind: output, shape index: {}]
  %s6 = sld [smem:[#allocation0]]
  $region50: #{tpu_custom_call.1} parent=0
    _
  %s8 = ssub.s32 1, %s6
  %s9 = scalar_select 0, %s8, %s6
  $region1: #{tpu_custom_call.1} parent=0
    #allocation2 [shape = 'u8[24576]{0}', space=vmem, size = 0x6000, scoped, tag = 'input window, operand 0, single buffered']
    #allocation3 [shape = 's32[1]{0}', space=sflag, size = 0x4, scoped, tag = 'scoped memory for tpu_custom_call.1']
    #allocation4 [shape = 's32[1]{0}', space=sflag, size = 0x4, scoped, tag = 'scoped memory for tpu_custom_call.1']
    #allocation5 [shape = 'u8[2359296]{0}', space=vmem, size = 0x240000, scoped, tag = 'input window, operand 1, single buffered']
    #allocation6 [shape = 's32[1]{0}', space=sflag, size = 0x4, scoped, tag = 'scoped memory for tpu_custom_call.1']
    #allocation7 [shape = 'u8[6144]{0}', space=vmem, size = 0x1800, scoped, tag = 'input window, operand 2, single buffered']
    #allocation8 [shape = 'u8[786432]{0}', space=vmem, size = 0xc0000, scoped, tag = 'input window, operand 3, single buffered']
    #allocation9 [shape = 's32[1]{0}', space=sflag, size = 0x4, scoped, tag = 'scoped memory for tpu_custom_call.1']
    #allocation10 [shape = 'u8[1024]{0}', space=vmem, size = 0x400, scoped, tag = 'input window, operand 4, single buffered']
    #allocation11 [shape = 'u8[2048]{0}', space=vmem, size = 0x800, scoped, tag = 'output window, operand 0, single buffered']
    %10 = vsyncpa [#allocation3], 0
    %11 = vsyncpa [#allocation6], 0
    %12 = vsyncpa [#allocation9], 0
    %13 = vsyncpa [#allocation4], 0
    // Predicated region
    $region2: #{tpu_custom_call.1} parent=1 // pred_check
      _
    $region3: #{tpu_custom_call.1} parent=1 // pred_check_branch
      %15 = sbr.rel (0) target = $region5
    $region4: #{tpu_custom_call.1} parent=1 // pred_region
      %s17 = ssub.s32 768, 768
      %18 = vsyncadd [#allocation3], %s17
      %s19 = sshll.u32 [#allocation2], 4
      %s20 = int_to_ptr.vmem [resolvable:$true] %s19
      %25 = dma.hbm_to_vmem [thread:$0]  %s0, 768, %s20, [#allocation3], 384, 384, 24
    $region5: #{tpu_custom_call.1} parent=1 // pred_fallthru
      _
    // Predicated region
    $region6: #{tpu_custom_call.1} parent=1 // pred_check
      _
    $region7: #{tpu_custom_call.1} parent=1 // pred_check_branch
      %27 = sbr.rel (0) target = $region9
    $region8: #{tpu_custom_call.1} parent=1 // pred_region
      %s29 = ssub.s32 73728, 73728
      %30 = vsyncadd [#allocation6], %s29
      %s31 = sshll.u32 [#allocation5], 4
      %s32 = int_to_ptr.vmem [resolvable:$true] %s31
      %37 = dma.hbm_to_vmem [thread:$0]  %s1, 73728, %s32, [#allocation6], 768, 768, 48
    $region9: #{tpu_custom_call.1} parent=1 // pred_fallthru
      _
    // Predicated region
    $region10: #{tpu_custom_call.1} parent=1 // pred_check
      _
    $region11: #{tpu_custom_call.1} parent=1 // pred_check_branch
      %39 = sbr.rel (0) target = $region13
    $region12: #{tpu_custom_call.1} parent=1 // pred_region
      %s41 = ssub.s32 192, 192
      %42 = vsyncadd [#allocation6], %s41
      %s44 = sshll.u32 [#allocation7], 4
      %s45 = int_to_ptr.vmem [resolvable:$true] %s44
      %47 = dma.hbm_to_vmem [thread:$0]  %s2, 192, %s45, [#allocation6]
    $region13: #{tpu_custom_call.1} parent=1 // pred_fallthru
      _
    // Predicated region
    $region14: #{tpu_custom_call.1} parent=1 // pred_check
      _
    $region15: #{tpu_custom_call.1} parent=1 // pred_check_branch
      %49 = sbr.rel (0) target = $region17
    $region16: #{tpu_custom_call.1} parent=1 // pred_region
      %s51 = ssub.s32 24576, 24576
      %52 = vsyncadd [#allocation9], %s51
      %s53 = sshll.u32 [#allocation8], 4
      %s54 = int_to_ptr.vmem [resolvable:$true] %s53
      %59 = dma.hbm_to_vmem [thread:$0]  %s3, 24576, %s54, [#allocation9], 128, 128, 8
    $region17: #{tpu_custom_call.1} parent=1 // pred_fallthru
      _
    // Predicated region
    $region18: #{tpu_custom_call.1} parent=1 // pred_check
      _
    $region19: #{tpu_custom_call.1} parent=1 // pred_check_branch
      %61 = sbr.rel (0) target = $region21
    $region20: #{tpu_custom_call.1} parent=1 // pred_region
      %s63 = ssub.s32 32, 32
      %64 = vsyncadd [#allocation9], %s63
      %s66 = sshll.u32 [#allocation10], 4
      %s67 = int_to_ptr.vmem [resolvable:$true] %s66
      %69 = dma.hbm_to_vmem [thread:$0]  %s4, 32, %s67, [#allocation9]
    $region21: #{tpu_custom_call.1} parent=1 // pred_fallthru
      _
    // Predicated region
    $region22: #{tpu_custom_call.1} parent=1 // pred_check
      _
    $region23: #{tpu_custom_call.1} parent=1 // pred_check_branch
      %71 = sbr.rel (0) target = $region25
    $region24: #{tpu_custom_call.1} parent=1 // pred_region
      %72 = dma.done [#allocation3], 768
    $region25: #{tpu_custom_call.1} parent=1 // pred_fallthru
      _
    // Predicated region
    $region26: #{tpu_custom_call.1} parent=1 // pred_check
      _
    $region27: #{tpu_custom_call.1} parent=1 // pred_check_branch
      %74 = sbr.rel (0) target = $region29
    $region28: #{tpu_custom_call.1} parent=1 // pred_region
      %75 = dma.done [#allocation6], 73728
    $region29: #{tpu_custom_call.1} parent=1 // pred_fallthru
      _
    // Predicated region
    $region30: #{tpu_custom_call.1} parent=1 // pred_check
      _
    $region31: #{tpu_custom_call.1} parent=1 // pred_check_branch
      %77 = sbr.rel (0) target = $region33
    $region32: #{tpu_custom_call.1} parent=1 // pred_region
      %78 = dma.done [#allocation6], 192
    $region33: #{tpu_custom_call.1} parent=1 // pred_fallthru
      _
    // Predicated region
    $region34: #{tpu_custom_call.1} parent=1 // pred_check
      _
    $region35: #{tpu_custom_call.1} parent=1 // pred_check_branch
      %80 = sbr.rel (0) target = $region37
    $region36: #{tpu_custom_call.1} parent=1 // pred_region
      %81 = dma.done [#allocation9], 24576
    $region37: #{tpu_custom_call.1} parent=1 // pred_fallthru
      _
    // Predicated region
    $region38: #{tpu_custom_call.1} parent=1 // pred_check
      _
    $region39: #{tpu_custom_call.1} parent=1 // pred_check_branch
      %83 = sbr.rel (0) target = $region41
    $region40: #{tpu_custom_call.1} parent=1 // pred_region
      %84 = dma.done [#allocation9], 32
    $region41: #{tpu_custom_call.1} parent=1 // pred_fallthru
      _
    %v85 = vld [vmem:[#allocation2] sm:$0xff]
    %v86 = vld [vmem:[#allocation2 + $0x8] sm:$0xff]
    %v87 = vld [vmem:[#allocation2 + $0x10] sm:$0xff]
    %v88 = vld [vmem:[#allocation2 + $0x18] sm:$0xff]
    %v89 = vld [vmem:[#allocation2 + $0x20] sm:$0xff]
    %v90 = vld [vmem:[#allocation2 + $0x28] sm:$0xff]
    %v91 = vld [vmem:[#allocation5] sm:$0xff]
    %v92 = vld [vmem:[#allocation5 + $0x8] sm:$0xff]
    %v93 = vld [vmem:[#allocation5 + $0x10] sm:$0xff]
    %v94 = vld [vmem:[#allocation5 + $0x18] sm:$0xff]
    %v95 = vld [vmem:[#allocation5 + $0x20] sm:$0xff]
    %v96 = vld [vmem:[#allocation5 + $0x28] sm:$0xff]
    %v97 = vld [vmem:[#allocation5 + $0x30] sm:$0xff]
    %v98 = vld [vmem:[#allocation5 + $0x38] sm:$0xff]
    %v99 = vld [vmem:[#allocation5 + $0x40] sm:$0xff]
    %v100 = vld [vmem:[#allocation5 + $0x48] sm:$0xff]
    %v101 = vld [vmem:[#allocation5 + $0x50] sm:$0xff]
    %v102 = vld [vmem:[#allocation5 + $0x58] sm:$0xff]
    %v103 = vld [vmem:[#allocation5 + $0x60] sm:$0xff]
    %v104 = vld [vmem:[#allocation5 + $0x68] sm:$0xff]
    %v105 = vld [vmem:[#allocation5 + $0x70] sm:$0xff]
    %v106 = vld [vmem:[#allocation5 + $0x78] sm:$0xff]
    %v107 = vld [vmem:[#allocation5 + $0x80] sm:$0xff]
    %v108 = vld [vmem:[#allocation5 + $0x88] sm:$0xff]
    %v109 = vld [vmem:[#allocation5 + $0x90] sm:$0xff]
    %v110 = vld [vmem:[#allocation5 + $0x98] sm:$0xff]
    %v111 = vld [vmem:[#allocation5 + $0xa0] sm:$0xff]
    %v112 = vld [vmem:[#allocation5 + $0xa8] sm:$0xff]
    %v113 = vld [vmem:[#allocation5 + $0xb0] sm:$0xff]
    %v114 = vld [vmem:[#allocation5 + $0xb8] sm:$0xff]
    %v115 = vld [vmem:[#allocation5 + $0xc0] sm:$0xff]
    %v116 = vld [vmem:[#allocation5 + $0xc8] sm:$0xff]
    %v117 = vld [vmem:[#allocation5 + $0xd0] sm:$0xff]
    %v118 = vld [vmem:[#allocation5 + $0xd8] sm:$0xff]
    %v119 = vld [vmem:[#allocation5 + $0xe0] sm:$0xff]
    %v120 = vld [vmem:[#allocation5 + $0xe8] sm:$0xff]
    %v121 = vld [vmem:[#allocation5 + $0xf0] sm:$0xff]
    %v122 = vld [vmem:[#allocation5 + $0xf8] sm:$0xff]
    %v123 = vld [vmem:[#allocation5 + $0x100] sm:$0xff]
    %v124 = vld [vmem:[#allocation5 + $0x108] sm:$0xff]
    %v125 = vld [vmem:[#allocation5 + $0x110] sm:$0xff]
    %v126 = vld [vmem:[#allocation5 + $0x118] sm:$0xff]
    %v127 = vld [vmem:[#allocation5 + $0x120] sm:$0xff]
    %v128 = vld [vmem:[#allocation5 + $0x128] sm:$0xff]
    %v129 = vld [vmem:[#allocation5 + $0x130] sm:$0xff]
    %v130 = vld [vmem:[#allocation5 + $0x138] sm:$0xff]
    %v131 = vld [vmem:[#allocation5 + $0x140] sm:$0xff]
    %v132 = vld [vmem:[#allocation5 + $0x148] sm:$0xff]
    %v133 = vld [vmem:[#allocation5 + $0x150] sm:$0xff]
    %v134 = vld [vmem:[#allocation5 + $0x158] sm:$0xff]
    %v135 = vld [vmem:[#allocation5 + $0x160] sm:$0xff]
    %v136 = vld [vmem:[#allocation5 + $0x168] sm:$0xff]
    %v137 = vld [vmem:[#allocation5 + $0x170] sm:$0xff]
    %v138 = vld [vmem:[#allocation5 + $0x178] sm:$0xff]
    %v139 = vld [vmem:[#allocation5 + $0x180] sm:$0xff]
    %v140 = vld [vmem:[#allocation5 + $0x188] sm:$0xff]
    %v141 = vld [vmem:[#allocation5 + $0x190] sm:$0xff]
    %v142 = vld [vmem:[#allocation5 + $0x198] sm:$0xff]
    %v143 = vld [vmem:[#allocation5 + $0x1a0] sm:$0xff]
    %v144 = vld [vmem:[#allocation5 + $0x1a8] sm:$0xff]
    %v145 = vld [vmem:[#allocation5 + $0x1b0] sm:$0xff]
    %v146 = vld [vmem:[#allocation5 + $0x1b8] sm:$0xff]
    %v147 = vld [vmem:[#allocation5 + $0x1c0] sm:$0xff]
    %v148 = vld [vmem:[#allocation5 + $0x1c8] sm:$0xff]
    %v149 = vld [vmem:[#allocation5 + $0x1d0] sm:$0xff]
    %v150 = vld [vmem:[#allocation5 + $0x1d8] sm:$0xff]
    %v151 = vld [vmem:[#allocation5 + $0x1e0] sm:$0xff]
    %v152 = vld [vmem:[#allocation5 + $0x1e8] sm:$0xff]
    %v153 = vld [vmem:[#allocation5 + $0x1f0] sm:$0xff]
    %v154 = vld [vmem:[#allocation5 + $0x1f8] sm:$0xff]
    %v155 = vld [vmem:[#allocation5 + $0x200] sm:$0xff]
    %v156 = vld [vmem:[#allocation5 + $0x208] sm:$0xff]
    %v157 = vld [vmem:[#allocation5 + $0x210] sm:$0xff]
    %v158 = vld [vmem:[#allocation5 + $0x218] sm:$0xff]
    %v159 = vld [vmem:[#allocation5 + $0x220] sm:$0xff]
    %v160 = vld [vmem:[#allocation5 + $0x228] sm:$0xff]
    %v161 = vld [vmem:[#allocation5 + $0x230] sm:$0xff]
    %v162 = vld [vmem:[#allocation5 + $0x238] sm:$0xff]
    %v163 = vld [vmem:[#allocation5 + $0x240] sm:$0xff]
    %v164 = vld [vmem:[#allocation5 + $0x248] sm:$0xff]
    %v165 = vld [vmem:[#allocation5 + $0x250] sm:$0xff]
    %v166 = vld [vmem:[#allocation5 + $0x258] sm:$0xff]
    %v167 = vld [vmem:[#allocation5 + $0x260] sm:$0xff]
    %v168 = vld [vmem:[#allocation5 + $0x268] sm:$0xff]
    %v169 = vld [vmem:[#allocation5 + $0x270] sm:$0xff]
    %v170 = vld [vmem:[#allocation5 + $0x278] sm:$0xff]
    %v171 = vld [vmem:[#allocation5 + $0x280] sm:$0xff]
    %v172 = vld [vmem:[#allocation5 + $0x288] sm:$0xff]
    %v173 = vld [vmem:[#allocation5 + $0x290] sm:$0xff]
    %v174 = vld [vmem:[#allocation5 + $0x298] sm:$0xff]
    %v175 = vld [vmem:[#allocation5 + $0x2a0] sm:$0xff]
    %v176 = vld [vmem:[#allocation5 + $0x2a8] sm:$0xff]
    %v177 = vld [vmem:[#allocation5 + $0x2b0] sm:$0xff]
    %v178 = vld [vmem:[#allocation5 + $0x2b8] sm:$0xff]
    %v179 = vld [vmem:[#allocation5 + $0x2c0] sm:$0xff]
    %v180 = vld [vmem:[#allocation5 + $0x2c8] sm:$0xff]
    %v181 = vld [vmem:[#allocation5 + $0x2d0] sm:$0xff]
    %v182 = vld [vmem:[#allocation5 + $0x2d8] sm:$0xff]
    %v183 = vld [vmem:[#allocation5 + $0x2e0] sm:$0xff]
    %v184 = vld [vmem:[#allocation5 + $0x2e8] sm:$0xff]
    %v185 = vld [vmem:[#allocation5 + $0x2f0] sm:$0xff]
    %v186 = vld [vmem:[#allocation5 + $0x2f8] sm:$0xff]
    %v187 = vld [vmem:[#allocation5 + $0x300] sm:$0xff]
    %v188 = vld [vmem:[#allocation5 + $0x308] sm:$0xff]
    %v189 = vld [vmem:[#allocation5 + $0x310] sm:$0xff]
    %v190 = vld [vmem:[#allocation5 + $0x318] sm:$0xff]
    %v191 = vld [vmem:[#allocation5 + $0x320] sm:$0xff]
    %v192 = vld [vmem:[#allocation5 + $0x328] sm:$0xff]
    %v193 = vld [vmem:[#allocation5 + $0x330] sm:$0xff]
    %v194 = vld [vmem:[#allocation5 + $0x338] sm:$0xff]
    %v195 = vld [vmem:[#allocation5 + $0x340] sm:$0xff]
    %v196 = vld [vmem:[#allocation5 + $0x348] sm:$0xff]
    %v197 = vld [vmem:[#allocation5 + $0x350] sm:$0xff]
    %v198 = vld [vmem:[#allocation5 + $0x358] sm:$0xff]
    %v199 = vld [vmem:[#allocation5 + $0x360] sm:$0xff]
    %v200 = vld [vmem:[#allocation5 + $0x368] sm:$0xff]
    %v201 = vld [vmem:[#allocation5 + $0x370] sm:$0xff]
    %v202 = vld [vmem:[#allocation5 + $0x378] sm:$0xff]
    %v203 = vld [vmem:[#allocation5 + $0x380] sm:$0xff]
    %v204 = vld [vmem:[#allocation5 + $0x388] sm:$0xff]
    %v205 = vld [vmem:[#allocation5 + $0x390] sm:$0xff]
    %v206 = vld [vmem:[#allocation5 + $0x398] sm:$0xff]
    %v207 = vld [vmem:[#allocation5 + $0x3a0] sm:$0xff]
    %v208 = vld [vmem:[#allocation5 + $0x3a8] sm:$0xff]
    %v209 = vld [vmem:[#allocation5 + $0x3b0] sm:$0xff]
    %v210 = vld [vmem:[#allocation5 + $0x3b8] sm:$0xff]
    %v211 = vld [vmem:[#allocation5 + $0x3c0] sm:$0xff]
    %v212 = vld [vmem:[#allocation5 + $0x3c8] sm:$0xff]
    %v213 = vld [vmem:[#allocation5 + $0x3d0] sm:$0xff]
    %v214 = vld [vmem:[#allocation5 + $0x3d8] sm:$0xff]
    %v215 = vld [vmem:[#allocation5 + $0x3e0] sm:$0xff]
    %v216 = vld [vmem:[#allocation5 + $0x3e8] sm:$0xff]
    %v217 = vld [vmem:[#allocation5 + $0x3f0] sm:$0xff]
    %v218 = vld [vmem:[#allocation5 + $0x3f8] sm:$0xff]
    %v219 = vld [vmem:[#allocation5 + $0x400] sm:$0xff]
    %v220 = vld [vmem:[#allocation5 + $0x408] sm:$0xff]
    %v221 = vld [vmem:[#allocation5 + $0x410] sm:$0xff]
    %v222 = vld [vmem:[#allocation5 + $0x418] sm:$0xff]
    %v223 = vld [vmem:[#allocation5 + $0x420] sm:$0xff]
    %v224 = vld [vmem:[#allocation5 + $0x428] sm:$0xff]
    %v225 = vld [vmem:[#allocation5 + $0x430] sm:$0xff]
    %v226 = vld [vmem:[#allocation5 + $0x438] sm:$0xff]
    %v227 = vld [vmem:[#allocation5 + $0x440] sm:$0xff]
    %v228 = vld [vmem:[#allocation5 + $0x448] sm:$0xff]
    %v229 = vld [vmem:[#allocation5 + $0x450] sm:$0xff]
    %v230 = vld [vmem:[#allocation5 + $0x458] sm:$0xff]
    %v231 = vld [vmem:[#allocation5 + $0x460] sm:$0xff]
    %v232 = vld [vmem:[#allocation5 + $0x468] sm:$0xff]
    %v233 = vld [vmem:[#allocation5 + $0x470] sm:$0xff]
    %v234 = vld [vmem:[#allocation5 + $0x478] sm:$0xff]
    %v235 = vld [vmem:[#allocation5 + $0x480] sm:$0xff]
    %v236 = vld [vmem:[#allocation5 + $0x488] sm:$0xff]
    %v237 = vld [vmem:[#allocation5 + $0x490] sm:$0xff]
    %v238 = vld [vmem:[#allocation5 + $0x498] sm:$0xff]
    %v239 = vld [vmem:[#allocation5 + $0x4a0] sm:$0xff]
    %v240 = vld [vmem:[#allocation5 + $0x4a8] sm:$0xff]
    %v241 = vld [vmem:[#allocation5 + $0x4b0] sm:$0xff]
    %v242 = vld [vmem:[#allocation5 + $0x4b8] sm:$0xff]
    %v243 = vld [vmem:[#allocation5 + $0x4c0] sm:$0xff]
    %v244 = vld [vmem:[#allocation5 + $0x4c8] sm:$0xff]
    %v245 = vld [vmem:[#allocation5 + $0x4d0] sm:$0xff]
    %v246 = vld [vmem:[#allocation5 + $0x4d8] sm:$0xff]
    %v247 = vld [vmem:[#allocation5 + $0x4e0] sm:$0xff]
    %v248 = vld [vmem:[#allocation5 + $0x4e8] sm:$0xff]
    %v249 = vld [vmem:[#allocation5 + $0x4f0] sm:$0xff]
    %v250 = vld [vmem:[#allocation5 + $0x4f8] sm:$0xff]
    %v251 = vld [vmem:[#allocation5 + $0x500] sm:$0xff]
    %v252 = vld [vmem:[#allocation5 + $0x508] sm:$0xff]
    %v253 = vld [vmem:[#allocation5 + $0x510] sm:$0xff]
    %v254 = vld [vmem:[#allocation5 + $0x518] sm:$0xff]
    %v255 = vld [vmem:[#allocation5 + $0x520] sm:$0xff]
    %v256 = vld [vmem:[#allocation5 + $0x528] sm:$0xff]
    %v257 = vld [vmem:[#allocation5 + $0x530] sm:$0xff]
    %v258 = vld [vmem:[#allocation5 + $0x538] sm:$0xff]
    %v259 = vld [vmem:[#allocation5 + $0x540] sm:$0xff]
    %v260 = vld [vmem:[#allocation5 + $0x548] sm:$0xff]
    %v261 = vld [vmem:[#allocation5 + $0x550] sm:$0xff]
    %v262 = vld [vmem:[#allocation5 + $0x558] sm:$0xff]
    %v263 = vld [vmem:[#allocation5 + $0x560] sm:$0xff]
    %v264 = vld [vmem:[#allocation5 + $0x568] sm:$0xff]
    %v265 = vld [vmem:[#allocation5 + $0x570] sm:$0xff]
    %v266 = vld [vmem:[#allocation5 + $0x578] sm:$0xff]
    %v267 = vld [vmem:[#allocation5 + $0x580] sm:$0xff]
    %v268 = vld [vmem:[#allocation5 + $0x588] sm:$0xff]
    %v269 = vld [vmem:[#allocation5 + $0x590] sm:$0xff]
    %v270 = vld [vmem:[#allocation5 + $0x598] sm:$0xff]
    %v271 = vld [vmem:[#allocation5 + $0x5a0] sm:$0xff]
    %v272 = vld [vmem:[#allocation5 + $0x5a8] sm:$0xff]
    %v273 = vld [vmem:[#allocation5 + $0x5b0] sm:$0xff]
    %v274 = vld [vmem:[#allocation5 + $0x5b8] sm:$0xff]
    %v275 = vld [vmem:[#allocation5 + $0x5c0] sm:$0xff]
    %v276 = vld [vmem:[#allocation5 + $0x5c8] sm:$0xff]
    %v277 = vld [vmem:[#allocation5 + $0x5d0] sm:$0xff]
    %v278 = vld [vmem:[#allocation5 + $0x5d8] sm:$0xff]
    %v279 = vld [vmem:[#allocation5 + $0x5e0] sm:$0xff]
    %v280 = vld [vmem:[#allocation5 + $0x5e8] sm:$0xff]
    %v281 = vld [vmem:[#allocation5 + $0x5f0] sm:$0xff]
    %v282 = vld [vmem:[#allocation5 + $0x5f8] sm:$0xff]
    %v283 = vld [vmem:[#allocation5 + $0x600] sm:$0xff]
    %v284 = vld [vmem:[#allocation5 + $0x608] sm:$0xff]
    %v285 = vld [vmem:[#allocation5 + $0x610] sm:$0xff]
    %v286 = vld [vmem:[#allocation5 + $0x618] sm:$0xff]
    %v287 = vld [vmem:[#allocation5 + $0x620] sm:$0xff]
    %v288 = vld [vmem:[#allocation5 + $0x628] sm:$0xff]
    %v289 = vld [vmem:[#allocation5 + $0x630] sm:$0xff]
    %v290 = vld [vmem:[#allocation5 + $0x638] sm:$0xff]
    %v291 = vld [vmem:[#allocation5 + $0x640] sm:$0xff]
    %v292 = vld [vmem:[#allocation5 + $0x648] sm:$0xff]
    %v293 = vld [vmem:[#allocation5 + $0x650] sm:$0xff]
    %v294 = vld [vmem:[#allocation5 + $0x658] sm:$0xff]
    %v295 = vld [vmem:[#allocation5 + $0x660] sm:$0xff]
    %v296 = vld [vmem:[#allocation5 + $0x668] sm:$0xff]
    %v297 = vld [vmem:[#allocation5 + $0x670] sm:$0xff]
    %v298 = vld [vmem:[#allocation5 + $0x678] sm:$0xff]
    %v299 = vld [vmem:[#allocation5 + $0x680] sm:$0xff]
    %v300 = vld [vmem:[#allocation5 + $0x688] sm:$0xff]
    %v301 = vld [vmem:[#allocation5 + $0x690] sm:$0xff]
    %v302 = vld [vmem:[#allocation5 + $0x698] sm:$0xff]
    %v303 = vld [vmem:[#allocation5 + $0x6a0] sm:$0xff]
    %v304 = vld [vmem:[#allocation5 + $0x6a8] sm:$0xff]
    %v305 = vld [vmem:[#allocation5 + $0x6b0] sm:$0xff]
    %v306 = vld [vmem:[#allocation5 + $0x6b8] sm:$0xff]
    %v307 = vld [vmem:[#allocation5 + $0x6c0] sm:$0xff]
    %v308 = vld [vmem:[#allocation5 + $0x6c8] sm:$0xff]
    %v309 = vld [vmem:[#allocation5 + $0x6d0] sm:$0xff]
    %v310 = vld [vmem:[#allocation5 + $0x6d8] sm:$0xff]
    %v311 = vld [vmem:[#allocation5 + $0x6e0] sm:$0xff]
    %v312 = vld [vmem:[#allocation5 + $0x6e8] sm:$0xff]
    %v313 = vld [vmem:[#allocation5 + $0x6f0] sm:$0xff]
    %v314 = vld [vmem:[#allocation5 + $0x6f8] sm:$0xff]
    %v315 = vld [vmem:[#allocation5 + $0x700] sm:$0xff]
    %v316 = vld [vmem:[#allocation5 + $0x708] sm:$0xff]
    %v317 = vld [vmem:[#allocation5 + $0x710] sm:$0xff]
    %v318 = vld [vmem:[#allocation5 + $0x718] sm:$0xff]
    %v319 = vld [vmem:[#allocation5 + $0x720] sm:$0xff]
    %v320 = vld [vmem:[#allocation5 + $0x728] sm:$0xff]
    %v321 = vld [vmem:[#allocation5 + $0x730] sm:$0xff]
    %v322 = vld [vmem:[#allocation5 + $0x738] sm:$0xff]
    %v323 = vld [vmem:[#allocation5 + $0x740] sm:$0xff]
    %v324 = vld [vmem:[#allocation5 + $0x748] sm:$0xff]
    %v325 = vld [vmem:[#allocation5 + $0x750] sm:$0xff]
    %v326 = vld [vmem:[#allocation5 + $0x758] sm:$0xff]
    %v327 = vld [vmem:[#allocation5 + $0x760] sm:$0xff]
    %v328 = vld [vmem:[#allocation5 + $0x768] sm:$0xff]
    %v329 = vld [vmem:[#allocation5 + $0x770] sm:$0xff]
    %v330 = vld [vmem:[#allocation5 + $0x778] sm:$0xff]
    %v331 = vld [vmem:[#allocation5 + $0x780] sm:$0xff]
    %v332 = vld [vmem:[#allocation5 + $0x788] sm:$0xff]
    %v333 = vld [vmem:[#allocation5 + $0x790] sm:$0xff]
    %v334 = vld [vmem:[#allocation5 + $0x798] sm:$0xff]
    %v335 = vld [vmem:[#allocation5 + $0x7a0] sm:$0xff]
    %v336 = vld [vmem:[#allocation5 + $0x7a8] sm:$0xff]
    %v337 = vld [vmem:[#allocation5 + $0x7b0] sm:$0xff]
    %v338 = vld [vmem:[#allocation5 + $0x7b8] sm:$0xff]
    %v339 = vld [vmem:[#allocation5 + $0x7c0] sm:$0xff]
    %v340 = vld [vmem:[#allocation5 + $0x7c8] sm:$0xff]
    %v341 = vld [vmem:[#allocation5 + $0x7d0] sm:$0xff]
    %v342 = vld [vmem:[#allocation5 + $0x7d8] sm:$0xff]
    %v343 = vld [vmem:[#allocation5 + $0x7e0] sm:$0xff]
    %v344 = vld [vmem:[#allocation5 + $0x7e8] sm:$0xff]
    %v345 = vld [vmem:[#allocation5 + $0x7f0] sm:$0xff]
    %v346 = vld [vmem:[#allocation5 + $0x7f8] sm:$0xff]
    %v347 = vld [vmem:[#allocation5 + $0x800] sm:$0xff]
    %v348 = vld [vmem:[#allocation5 + $0x808] sm:$0xff]
    %v349 = vld [vmem:[#allocation5 + $0x810] sm:$0xff]
    %v350 = vld [vmem:[#allocation5 + $0x818] sm:$0xff]
    %v351 = vld [vmem:[#allocation5 + $0x820] sm:$0xff]
    %v352 = vld [vmem:[#allocation5 + $0x828] sm:$0xff]
    %v353 = vld [vmem:[#allocation5 + $0x830] sm:$0xff]
    %v354 = vld [vmem:[#allocation5 + $0x838] sm:$0xff]
    %v355 = vld [vmem:[#allocation5 + $0x840] sm:$0xff]
    %v356 = vld [vmem:[#allocation5 + $0x848] sm:$0xff]
    %v357 = vld [vmem:[#allocation5 + $0x850] sm:$0xff]
    %v358 = vld [vmem:[#allocation5 + $0x858] sm:$0xff]
    %v359 = vld [vmem:[#allocation5 + $0x860] sm:$0xff]
    %v360 = vld [vmem:[#allocation5 + $0x868] sm:$0xff]
    %v361 = vld [vmem:[#allocation5 + $0x870] sm:$0xff]
    %v362 = vld [vmem:[#allocation5 + $0x878] sm:$0xff]
    %v363 = vld [vmem:[#allocation5 + $0x880] sm:$0xff]
    %v364 = vld [vmem:[#allocation5 + $0x888] sm:$0xff]
    %v365 = vld [vmem:[#allocation5 + $0x890] sm:$0xff]
    %v366 = vld [vmem:[#allocation5 + $0x898] sm:$0xff]
    %v367 = vld [vmem:[#allocation5 + $0x8a0] sm:$0xff]
    %v368 = vld [vmem:[#allocation5 + $0x8a8] sm:$0xff]
    %v369 = vld [vmem:[#allocation5 + $0x8b0] sm:$0xff]
    %v370 = vld [vmem:[#allocation5 + $0x8b8] sm:$0xff]
    %v371 = vld [vmem:[#allocation5 + $0x8c0] sm:$0xff]
    %v372 = vld [vmem:[#allocation5 + $0x8c8] sm:$0xff]
    %v373 = vld [vmem:[#allocation5 + $0x8d0] sm:$0xff]
    %v374 = vld [vmem:[#allocation5 + $0x8d8] sm:$0xff]
    %v375 = vld [vmem:[#allocation5 + $0x8e0] sm:$0xff]
    %v376 = vld [vmem:[#allocation5 + $0x8e8] sm:$0xff]
    %v377 = vld [vmem:[#allocation5 + $0x8f0] sm:$0xff]
    %v378 = vld [vmem:[#allocation5 + $0x8f8] sm:$0xff]
    %v379 = vld [vmem:[#allocation5 + $0x900] sm:$0xff]
    %v380 = vld [vmem:[#allocation5 + $0x908] sm:$0xff]
    %v381 = vld [vmem:[#allocation5 + $0x910] sm:$0xff]
    %v382 = vld [vmem:[#allocation5 + $0x918] sm:$0xff]
    %v383 = vld [vmem:[#allocation5 + $0x920] sm:$0xff]
    %v384 = vld [vmem:[#allocation5 + $0x928] sm:$0xff]
    %v385 = vld [vmem:[#allocation5 + $0x930] sm:$0xff]
    %v386 = vld [vmem:[#allocation5 + $0x938] sm:$0xff]
    %v387 = vld [vmem:[#allocation5 + $0x940] sm:$0xff]
    %v388 = vld [vmem:[#allocation5 + $0x948] sm:$0xff]
    %v389 = vld [vmem:[#allocation5 + $0x950] sm:$0xff]
    %v390 = vld [vmem:[#allocation5 + $0x958] sm:$0xff]
    %v391 = vld [vmem:[#allocation5 + $0x960] sm:$0xff]
    %v392 = vld [vmem:[#allocation5 + $0x968] sm:$0xff]
    %v393 = vld [vmem:[#allocation5 + $0x970] sm:$0xff]
    %v394 = vld [vmem:[#allocation5 + $0x978] sm:$0xff]
    %v395 = vld [vmem:[#allocation5 + $0x980] sm:$0xff]
    %v396 = vld [vmem:[#allocation5 + $0x988] sm:$0xff]
    %v397 = vld [vmem:[#allocation5 + $0x990] sm:$0xff]
    %v398 = vld [vmem:[#allocation5 + $0x998] sm:$0xff]
    %v399 = vld [vmem:[#allocation5 + $0x9a0] sm:$0xff]
    %v400 = vld [vmem:[#allocation5 + $0x9a8] sm:$0xff]
    %v401 = vld [vmem:[#allocation5 + $0x9b0] sm:$0xff]
    %v402 = vld [vmem:[#allocation5 + $0x9b8] sm:$0xff]
    %v403 = vld [vmem:[#allocation5 + $0x9c0] sm:$0xff]
    %v404 = vld [vmem:[#allocation5 + $0x9c8] sm:$0xff]
    %v405 = vld [vmem:[#allocation5 + $0x9d0] sm:$0xff]
    %v406 = vld [vmem:[#allocation5 + $0x9d8] sm:$0xff]
    %v407 = vld [vmem:[#allocation5 + $0x9e0] sm:$0xff]
    %v408 = vld [vmem:[#allocation5 + $0x9e8] sm:$0xff]
    %v409 = vld [vmem:[#allocation5 + $0x9f0] sm:$0xff]
    %v410 = vld [vmem:[#allocation5 + $0x9f8] sm:$0xff]
    %v411 = vld [vmem:[#allocation5 + $0xa00] sm:$0xff]
    %v412 = vld [vmem:[#allocation5 + $0xa08] sm:$0xff]
    %v413 = vld [vmem:[#allocation5 + $0xa10] sm:$0xff]
    %v414 = vld [vmem:[#allocation5 + $0xa18] sm:$0xff]
    %v415 = vld [vmem:[#allocation5 + $0xa20] sm:$0xff]
    %v416 = vld [vmem:[#allocation5 + $0xa28] sm:$0xff]
    %v417 = vld [vmem:[#allocation5 + $0xa30] sm:$0xff]
    %v418 = vld [vmem:[#allocation5 + $0xa38] sm:$0xff]
    %v419 = vld [vmem:[#allocation5 + $0xa40] sm:$0xff]
    %v420 = vld [vmem:[#allocation5 + $0xa48] sm:$0xff]
    %v421 = vld [vmem:[#allocation5 + $0xa50] sm:$0xff]
    %v422 = vld [vmem:[#allocation5 + $0xa58] sm:$0xff]
    %v423 = vld [vmem:[#allocation5 + $0xa60] sm:$0xff]
    %v424 = vld [vmem:[#allocation5 + $0xa68] sm:$0xff]
    %v425 = vld [vmem:[#allocation5 + $0xa70] sm:$0xff]
    %v426 = vld [vmem:[#allocation5 + $0xa78] sm:$0xff]
    %v427 = vld [vmem:[#allocation5 + $0xa80] sm:$0xff]
    %v428 = vld [vmem:[#allocation5 + $0xa88] sm:$0xff]
    %v429 = vld [vmem:[#allocation5 + $0xa90] sm:$0xff]
    %v430 = vld [vmem:[#allocation5 + $0xa98] sm:$0xff]
    %v431 = vld [vmem:[#allocation5 + $0xaa0] sm:$0xff]
    %v432 = vld [vmem:[#allocation5 + $0xaa8] sm:$0xff]
    %v433 = vld [vmem:[#allocation5 + $0xab0] sm:$0xff]
    %v434 = vld [vmem:[#allocation5 + $0xab8] sm:$0xff]
    %v435 = vld [vmem:[#allocation5 + $0xac0] sm:$0xff]
    %v436 = vld [vmem:[#allocation5 + $0xac8] sm:$0xff]
    %v437 = vld [vmem:[#allocation5 + $0xad0] sm:$0xff]
    %v438 = vld [vmem:[#allocation5 + $0xad8] sm:$0xff]
    %v439 = vld [vmem:[#allocation5 + $0xae0] sm:$0xff]
    %v440 = vld [vmem:[#allocation5 + $0xae8] sm:$0xff]
    %v441 = vld [vmem:[#allocation5 + $0xaf0] sm:$0xff]
    %v442 = vld [vmem:[#allocation5 + $0xaf8] sm:$0xff]
    %v443 = vld [vmem:[#allocation5 + $0xb00] sm:$0xff]
    %v444 = vld [vmem:[#allocation5 + $0xb08] sm:$0xff]
    %v445 = vld [vmem:[#allocation5 + $0xb10] sm:$0xff]
    %v446 = vld [vmem:[#allocation5 + $0xb18] sm:$0xff]
    %v447 = vld [vmem:[#allocation5 + $0xb20] sm:$0xff]
    %v448 = vld [vmem:[#allocation5 + $0xb28] sm:$0xff]
    %v449 = vld [vmem:[#allocation5 + $0xb30] sm:$0xff]
    %v450 = vld [vmem:[#allocation5 + $0xb38] sm:$0xff]
    %v451 = vld [vmem:[#allocation5 + $0xb40] sm:$0xff]
    %v452 = vld [vmem:[#allocation5 + $0xb48] sm:$0xff]
    %v453 = vld [vmem:[#allocation5 + $0xb50] sm:$0xff]
    %v454 = vld [vmem:[#allocation5 + $0xb58] sm:$0xff]
    %v455 = vld [vmem:[#allocation5 + $0xb60] sm:$0xff]
    %v456 = vld [vmem:[#allocation5 + $0xb68] sm:$0xff]
    %v457 = vld [vmem:[#allocation5 + $0xb70] sm:$0xff]
    %v458 = vld [vmem:[#allocation5 + $0xb78] sm:$0xff]
    %v459 = vld [vmem:[#allocation5 + $0xb80] sm:$0xff]
    %v460 = vld [vmem:[#allocation5 + $0xb88] sm:$0xff]
    %v461 = vld [vmem:[#allocation5 + $0xb90] sm:$0xff]
    %v462 = vld [vmem:[#allocation5 + $0xb98] sm:$0xff]
    %v463 = vld [vmem:[#allocation5 + $0xba0] sm:$0xff]
    %v464 = vld [vmem:[#allocation5 + $0xba8] sm:$0xff]
    %v465 = vld [vmem:[#allocation5 + $0xbb0] sm:$0xff]
    %v466 = vld [vmem:[#allocation5 + $0xbb8] sm:$0xff]
    %v467 = vld [vmem:[#allocation5 + $0xbc0] sm:$0xff]
    %v468 = vld [vmem:[#allocation5 + $0xbc8] sm:$0xff]
    %v469 = vld [vmem:[#allocation5 + $0xbd0] sm:$0xff]
    %v470 = vld [vmem:[#allocation5 + $0xbd8] sm:$0xff]
    %v471 = vld [vmem:[#allocation5 + $0xbe0] sm:$0xff]
    %v472 = vld [vmem:[#allocation5 + $0xbe8] sm:$0xff]
    %v473 = vld [vmem:[#allocation5 + $0xbf0] sm:$0xff]
    %v474 = vld [vmem:[#allocation5 + $0xbf8] sm:$0xff]
    %v475 = vld [vmem:[#allocation5 + $0xc00] sm:$0xff]
    %v476 = vld [vmem:[#allocation5 + $0xc08] sm:$0xff]
    %v477 = vld [vmem:[#allocation5 + $0xc10] sm:$0xff]
    %v478 = vld [vmem:[#allocation5 + $0xc18] sm:$0xff]
    %v479 = vld [vmem:[#allocation5 + $0xc20] sm:$0xff]
    %v480 = vld [vmem:[#allocation5 + $0xc28] sm:$0xff]
    %v481 = vld [vmem:[#allocation5 + $0xc30] sm:$0xff]
    %v482 = vld [vmem:[#allocation5 + $0xc38] sm:$0xff]
    %v483 = vld [vmem:[#allocation5 + $0xc40] sm:$0xff]
    %v484 = vld [vmem:[#allocation5 + $0xc48] sm:$0xff]
    %v485 = vld [vmem:[#allocation5 + $0xc50] sm:$0xff]
    %v486 = vld [vmem:[#allocation5 + $0xc58] sm:$0xff]
    %v487 = vld [vmem:[#allocation5 + $0xc60] sm:$0xff]
    %v488 = vld [vmem:[#allocation5 + $0xc68] sm:$0xff]
    %v489 = vld [vmem:[#allocation5 + $0xc70] sm:$0xff]
    %v490 = vld [vmem:[#allocation5 + $0xc78] sm:$0xff]
    %v491 = vld [vmem:[#allocation5 + $0xc80] sm:$0xff]
    %v492 = vld [vmem:[#allocation5 + $0xc88] sm:$0xff]
    %v493 = vld [vmem:[#allocation5 + $0xc90] sm:$0xff]
    %v494 = vld [vmem:[#allocation5 + $0xc98] sm:$0xff]
    %v495 = vld [vmem:[#allocation5 + $0xca0] sm:$0xff]
    %v496 = vld [vmem:[#allocation5 + $0xca8] sm:$0xff]
    %v497 = vld [vmem:[#allocation5 + $0xcb0] sm:$0xff]
    %v498 = vld [vmem:[#allocation5 + $0xcb8] sm:$0xff]
    %v499 = vld [vmem:[#allocation5 + $0xcc0] sm:$0xff]
    %v500 = vld [vmem:[#allocation5 + $0xcc8] sm:$0xff]
    %v501 = vld [vmem:[#allocation5 + $0xcd0] sm:$0xff]
    %v502 = vld [vmem:[#allocation5 + $0xcd8] sm:$0xff]
    %v503 = vld [vmem:[#allocation5 + $0xce0] sm:$0xff]
    %v504 = vld [vmem:[#allocation5 + $0xce8] sm:$0xff]
    %v505 = vld [vmem:[#allocation5 + $0xcf0] sm:$0xff]
    %v506 = vld [vmem:[#allocation5 + $0xcf8] sm:$0xff]
    %v507 = vld [vmem:[#allocation5 + $0xd00] sm:$0xff]
    %v508 = vld [vmem:[#allocation5 + $0xd08] sm:$0xff]
    %v509 = vld [vmem:[#allocation5 + $0xd10] sm:$0xff]
    %v510 = vld [vmem:[#allocation5 + $0xd18] sm:$0xff]
    %v511 = vld [vmem:[#allocation5 + $0xd20] sm:$0xff]
    %v512 = vld [vmem:[#allocation5 + $0xd28] sm:$0xff]
    %v513 = vld [vmem:[#allocation5 + $0xd30] sm:$0xff]
    %v514 = vld [vmem:[#allocation5 + $0xd38] sm:$0xff]
    %v515 = vld [vmem:[#allocation5 + $0xd40] sm:$0xff]
    %v516 = vld [vmem:[#allocation5 + $0xd48] sm:$0xff]
    %v517 = vld [vmem:[#allocation5 + $0xd50] sm:$0xff]
    %v518 = vld [vmem:[#allocation5 + $0xd58] sm:$0xff]
    %v519 = vld [vmem:[#allocation5 + $0xd60] sm:$0xff]
    %v520 = vld [vmem:[#allocation5 + $0xd68] sm:$0xff]
    %v521 = vld [vmem:[#allocation5 + $0xd70] sm:$0xff]
    %v522 = vld [vmem:[#allocation5 + $0xd78] sm:$0xff]
    %v523 = vld [vmem:[#allocation5 + $0xd80] sm:$0xff]
    %v524 = vld [vmem:[#allocation5 + $0xd88] sm:$0xff]
    %v525 = vld [vmem:[#allocation5 + $0xd90] sm:$0xff]
    %v526 = vld [vmem:[#allocation5 + $0xd98] sm:$0xff]
    %v527 = vld [vmem:[#allocation5 + $0xda0] sm:$0xff]
    %v528 = vld [vmem:[#allocation5 + $0xda8] sm:$0xff]
    %v529 = vld [vmem:[#allocation5 + $0xdb0] sm:$0xff]
    %v530 = vld [vmem:[#allocation5 + $0xdb8] sm:$0xff]
    %v531 = vld [vmem:[#allocation5 + $0xdc0] sm:$0xff]
    %v532 = vld [vmem:[#allocation5 + $0xdc8] sm:$0xff]
    %v533 = vld [vmem:[#allocation5 + $0xdd0] sm:$0xff]
    %v534 = vld [vmem:[#allocation5 + $0xdd8] sm:$0xff]
    %v535 = vld [vmem:[#allocation5 + $0xde0] sm:$0xff]
    %v536 = vld [vmem:[#allocation5 + $0xde8] sm:$0xff]
    %v537 = vld [vmem:[#allocation5 + $0xdf0] sm:$0xff]
    %v538 = vld [vmem:[#allocation5 + $0xdf8] sm:$0xff]
    %v539 = vld [vmem:[#allocation5 + $0xe00] sm:$0xff]
    %v540 = vld [vmem:[#allocation5 + $0xe08] sm:$0xff]
    %v541 = vld [vmem:[#allocation5 + $0xe10] sm:$0xff]
    %v542 = vld [vmem:[#allocation5 + $0xe18] sm:$0xff]
    %v543 = vld [vmem:[#allocation5 + $0xe20] sm:$0xff]
    %v544 = vld [vmem:[#allocation5 + $0xe28] sm:$0xff]
    %v545 = vld [vmem:[#allocation5 + $0xe30] sm:$0xff]
    %v546 = vld [vmem:[#allocation5 + $0xe38] sm:$0xff]
    %v547 = vld [vmem:[#allocation5 + $0xe40] sm:$0xff]
    %v548 = vld [vmem:[#allocation5 + $0xe48] sm:$0xff]
    %v549 = vld [vmem:[#allocation5 + $0xe50] sm:$0xff]
    %v550 = vld [vmem:[#allocation5 + $0xe58] sm:$0xff]
    %v551 = vld [vmem:[#allocation5 + $0xe60] sm:$0xff]
    %v552 = vld [vmem:[#allocation5 + $0xe68] sm:$0xff]
    %v553 = vld [vmem:[#allocation5 + $0xe70] sm:$0xff]
    %v554 = vld [vmem:[#allocation5 + $0xe78] sm:$0xff]
    %v555 = vld [vmem:[#allocation5 + $0xe80] sm:$0xff]
    %v556 = vld [vmem:[#allocation5 + $0xe88] sm:$0xff]
    %v557 = vld [vmem:[#allocation5 + $0xe90] sm:$0xff]
    %v558 = vld [vmem:[#allocation5 + $0xe98] sm:$0xff]
    %v559 = vld [vmem:[#allocation5 + $0xea0] sm:$0xff]
    %v560 = vld [vmem:[#allocation5 + $0xea8] sm:$0xff]
    %v561 = vld [vmem:[#allocation5 + $0xeb0] sm:$0xff]
    %v562 = vld [vmem:[#allocation5 + $0xeb8] sm:$0xff]
    %v563 = vld [vmem:[#allocation5 + $0xec0] sm:$0xff]
    %v564 = vld [vmem:[#allocation5 + $0xec8] sm:$0xff]
    %v565 = vld [vmem:[#allocation5 + $0xed0] sm:$0xff]
    %v566 = vld [vmem:[#allocation5 + $0xed8] sm:$0xff]
    %v567 = vld [vmem:[#allocation5 + $0xee0] sm:$0xff]
    %v568 = vld [vmem:[#allocation5 + $0xee8] sm:$0xff]
    %v569 = vld [vmem:[#allocation5 + $0xef0] sm:$0xff]
    %v570 = vld [vmem:[#allocation5 + $0xef8] sm:$0xff]
    %v571 = vld [vmem:[#allocation5 + $0xf00] sm:$0xff]
    %v572 = vld [vmem:[#allocation5 + $0xf08] sm:$0xff]
    %v573 = vld [vmem:[#allocation5 + $0xf10] sm:$0xff]
    %v574 = vld [vmem:[#allocation5 + $0xf18] sm:$0xff]
    %v575 = vld [vmem:[#allocation5 + $0xf20] sm:$0xff]
    %v576 = vld [vmem:[#allocation5 + $0xf28] sm:$0xff]
    %v577 = vld [vmem:[#allocation5 + $0xf30] sm:$0xff]
    %v578 = vld [vmem:[#allocation5 + $0xf38] sm:$0xff]
    %v579 = vld [vmem:[#allocation5 + $0xf40] sm:$0xff]
    %v580 = vld [vmem:[#allocation5 + $0xf48] sm:$0xff]
    %v581 = vld [vmem:[#allocation5 + $0xf50] sm:$0xff]
    %v582 = vld [vmem:[#allocation5 + $0xf58] sm:$0xff]
    %v583 = vld [vmem:[#allocation5 + $0xf60] sm:$0xff]
    %v584 = vld [vmem:[#allocation5 + $0xf68] sm:$0xff]
    %v585 = vld [vmem:[#allocation5 + $0xf70] sm:$0xff]
    %v586 = vld [vmem:[#allocation5 + $0xf78] sm:$0xff]
    %v587 = vld [vmem:[#allocation5 + $0xf80] sm:$0xff]
    %v588 = vld [vmem:[#allocation5 + $0xf88] sm:$0xff]
    %v589 = vld [vmem:[#allocation5 + $0xf90] sm:$0xff]
    %v590 = vld [vmem:[#allocation5 + $0xf98] sm:$0xff]
    %v591 = vld [vmem:[#allocation5 + $0xfa0] sm:$0xff]
    %v592 = vld [vmem:[#allocation5 + $0xfa8] sm:$0xff]
    %v593 = vld [vmem:[#allocation5 + $0xfb0] sm:$0xff]
    %v594 = vld [vmem:[#allocation5 + $0xfb8] sm:$0xff]
    %v595 = vld [vmem:[#allocation5 + $0xfc0] sm:$0xff]
    %v596 = vld [vmem:[#allocation5 + $0xfc8] sm:$0xff]
    %v597 = vld [vmem:[#allocation5 + $0xfd0] sm:$0xff]
    %v598 = vld [vmem:[#allocation5 + $0xfd8] sm:$0xff]
    %v599 = vld [vmem:[#allocation5 + $0xfe0] sm:$0xff]
    %v600 = vld [vmem:[#allocation5 + $0xfe8] sm:$0xff]
    %v601 = vld [vmem:[#allocation5 + $0xff0] sm:$0xff]
    %v602 = vld [vmem:[#allocation5 + $0xff8] sm:$0xff]
    %v603 = vld [vmem:[#allocation5 + $0x1000] sm:$0xff]
    %v604 = vld [vmem:[#allocation5 + $0x1008] sm:$0xff]
    %v605 = vld [vmem:[#allocation5 + $0x1010] sm:$0xff]
    %v606 = vld [vmem:[#allocation5 + $0x1018] sm:$0xff]
    %v607 = vld [vmem:[#allocation5 + $0x1020] sm:$0xff]
    %v608 = vld [vmem:[#allocation5 + $0x1028] sm:$0xff]
    %v609 = vld [vmem:[#allocation5 + $0x1030] sm:$0xff]
    %v610 = vld [vmem:[#allocation5 + $0x1038] sm:$0xff]
    %v611 = vld [vmem:[#allocation5 + $0x1040] sm:$0xff]
    %v612 = vld [vmem:[#allocation5 + $0x1048] sm:$0xff]
    %v613 = vld [vmem:[#allocation5 + $0x1050] sm:$0xff]
    %v614 = vld [vmem:[#allocation5 + $0x1058] sm:$0xff]
    %v615 = vld [vmem:[#allocation5 + $0x1060] sm:$0xff]
    %v616 = vld [vmem:[#allocation5 + $0x1068] sm:$0xff]
    %v617 = vld [vmem:[#allocation5 + $0x1070] sm:$0xff]
    %v618 = vld [vmem:[#allocation5 + $0x1078] sm:$0xff]
    %v619 = vld [vmem:[#allocation5 + $0x1080] sm:$0xff]
    %v620 = vld [vmem:[#allocation5 + $0x1088] sm:$0xff]
    %v621 = vld [vmem:[#allocation5 + $0x1090] sm:$0xff]
    %v622 = vld [vmem:[#allocation5 + $0x1098] sm:$0xff]
    %v623 = vld [vmem:[#allocation5 + $0x10a0] sm:$0xff]
    %v624 = vld [vmem:[#allocation5 + $0x10a8] sm:$0xff]
    %v625 = vld [vmem:[#allocation5 + $0x10b0] sm:$0xff]
    %v626 = vld [vmem:[#allocation5 + $0x10b8] sm:$0xff]
    %v627 = vld [vmem:[#allocation5 + $0x10c0] sm:$0xff]
    %v628 = vld [vmem:[#allocation5 + $0x10c8] sm:$0xff]
    %v629 = vld [vmem:[#allocation5 + $0x10d0] sm:$0xff]
    %v630 = vld [vmem:[#allocation5 + $0x10d8] sm:$0xff]
    %v631 = vld [vmem:[#allocation5 + $0x10e0] sm:$0xff]
    %v632 = vld [vmem:[#allocation5 + $0x10e8] sm:$0xff]
    %v633 = vld [vmem:[#allocation5 + $0x10f0] sm:$0xff]
    %v634 = vld [vmem:[#allocation5 + $0x10f8] sm:$0xff]
    %v635 = vld [vmem:[#allocation5 + $0x1100] sm:$0xff]
    %v636 = vld [vmem:[#allocation5 + $0x1108] sm:$0xff]
    %v637 = vld [vmem:[#allocation5 + $0x1110] sm:$0xff]
    %v638 = vld [vmem:[#allocation5 + $0x1118] sm:$0xff]
    %v639 = vld [vmem:[#allocation5 + $0x1120] sm:$0xff]
    %v640 = vld [vmem:[#allocation5 + $0x1128] sm:$0xff]
    %v641 = vld [vmem:[#allocation5 + $0x1130] sm:$0xff]
    %v642 = vld [vmem:[#allocation5 + $0x1138] sm:$0xff]
    %v643 = vld [vmem:[#allocation5 + $0x1140] sm:$0xff]
    %v644 = vld [vmem:[#allocation5 + $0x1148] sm:$0xff]
    %v645 = vld [vmem:[#allocation5 + $0x1150] sm:$0xff]
    %v646 = vld [vmem:[#allocation5 + $0x1158] sm:$0xff]
    %v647 = vld [vmem:[#allocation5 + $0x1160] sm:$0xff]
    %v648 = vld [vmem:[#allocation5 + $0x1168] sm:$0xff]
    %v649 = vld [vmem:[#allocation5 + $0x1170] sm:$0xff]
    %v650 = vld [vmem:[#allocation5 + $0x1178] sm:$0xff]
    %v651 = vld [vmem:[#allocation5 + $0x1180] sm:$0xff]
    %v652 = vld [vmem:[#allocation5 + $0x1188] sm:$0xff]
    %v653 = vld [vmem:[#allocation5 + $0x1190] sm:$0xff]
    %v654 = vld [vmem:[#allocation5 + $0x1198] sm:$0xff]
    %v655 = vld [vmem:[#allocation5 + $0x11a0] sm:$0xff]
    %v656 = vld [vmem:[#allocation5 + $0x11a8] sm:$0xff]
    %v657 = vld [vmem:[#allocation5 + $0x11b0] sm:$0xff]
    %v658 = vld [vmem:[#allocation5 + $0x11b8] sm:$0xff]
    %v659 = vld [vmem:[#allocation5 + $0x11c0] sm:$0xff]
    %v660 = vld [vmem:[#allocation5 + $0x11c8] sm:$0xff]
    %v661 = vld [vmem:[#allocation5 + $0x11d0] sm:$0xff]
    %v662 = vld [vmem:[#allocation5 + $0x11d8] sm:$0xff]
    %v663 = vld [vmem:[#allocation5 + $0x11e0] sm:$0xff]
    %v664 = vld [vmem:[#allocation5 + $0x11e8] sm:$0xff]
    %v665 = vld [vmem:[#allocation5 + $0x11f0] sm:$0xff]
    %v666 = vld [vmem:[#allocation5 + $0x11f8] sm:$0xff]
    %v667 = vld [vmem:[#allocation7] sm:$0xff]
    %v668 = vld [vmem:[#allocation7 + $0x8] sm:$0xf]
    %v671 = vlaneseq
    %v672 = vshrl.u32 %v671, 7
    %v673 = vsub.s32 0, %v672
    %v674 = vrot.slane %v667, %v673
    %v675 = vlaneseq
    %v676 = vshrl.u32 %v675, 7
    %v677 = vsub.s32 1, %v676
    %v678 = vrot.slane %v667, %v677
    %v679 = vlaneseq
    %v680 = vshrl.u32 %v679, 7
    %v681 = vsub.s32 2, %v680
    %v682 = vrot.slane %v667, %v681
    %v683 = vlaneseq
    %v684 = vshrl.u32 %v683, 7
    %v685 = vsub.s32 3, %v684
    %v686 = vrot.slane %v667, %v685
    %v687 = vlaneseq
    %v688 = vshrl.u32 %v687, 7
    %v689 = vsub.s32 4, %v688
    %v690 = vrot.slane %v667, %v689
    %v691 = vlaneseq
    %v692 = vshrl.u32 %v691, 7
    %v693 = vsub.s32 5, %v692
    %v694 = vrot.slane %v667, %v693
    %v695 = vlaneseq
    %v696 = vshrl.u32 %v695, 7
    %v697 = vsub.s32 6, %v696
    %v698 = vrot.slane %v667, %v697
    %v699 = vlaneseq
    %v700 = vshrl.u32 %v699, 7
    %v701 = vsub.s32 7, %v700
    %v702 = vrot.slane %v667, %v701
    %v703 = vlaneseq
    %v704 = vshrl.u32 %v703, 7
    %v705 = vsub.s32 0, %v704
    %v706 = vrot.slane %v668, %v705
    %v707 = vlaneseq
    %v708 = vshrl.u32 %v707, 7
    %v709 = vsub.s32 1, %v708
    %v710 = vrot.slane %v668, %v709
    %v711 = vlaneseq
    %v712 = vshrl.u32 %v711, 7
    %v713 = vsub.s32 2, %v712
    %v714 = vrot.slane %v668, %v713
    %v715 = vlaneseq
    %v716 = vshrl.u32 %v715, 7
    %v717 = vsub.s32 3, %v716
    %v718 = vrot.slane %v668, %v717
    %v737 = vunpack.c.l.b16 %v85
    %v738 = vunpack.c.h.b16 %v85
    %v739 = vunpack.c.l.b16 %v86
    %v740 = vunpack.c.h.b16 %v86
    %v741 = vunpack.c.l.b16 %v87
    %v742 = vunpack.c.h.b16 %v87
    %v743 = vunpack.c.l.b16 %v88
    %v744 = vunpack.c.h.b16 %v88
    %v745 = vunpack.c.l.b16 %v89
    %v746 = vunpack.c.h.b16 %v89
    %v747 = vunpack.c.l.b16 %v90
    %v748 = vunpack.c.h.b16 %v90
    %v749 = vpack.c.b16 %v743, %v737
    %v750 = vpack.c.b16 %v744, %v738
    %v751 = vpack.c.b16 %v745, %v739
    %v752 = vpack.c.b16 %v746, %v740
    %v753 = vpack.c.b16 %v747, %v741
    %v754 = vpack.c.b16 %v748, %v742
    %v1337 = vunpack.c.l.b16 %v91
    %v1338 = vunpack.c.h.b16 %v91
    %v1339 = vunpack.c.l.b16 %v92
    %v1340 = vunpack.c.h.b16 %v92
    %v1341 = vunpack.c.l.b16 %v93
    %v1342 = vunpack.c.h.b16 %v93
    %v1343 = vunpack.c.l.b16 %v94
    %v1344 = vunpack.c.h.b16 %v94
    %v1345 = vunpack.c.l.b16 %v95
    %v1346 = vunpack.c.h.b16 %v95
    %v1347 = vunpack.c.l.b16 %v96
    %v1348 = vunpack.c.h.b16 %v96
    %v1349 = vunpack.c.l.b16 %v97
    %v1350 = vunpack.c.h.b16 %v97
    %v1351 = vunpack.c.l.b16 %v98
    %v1352 = vunpack.c.h.b16 %v98
    %v1353 = vunpack.c.l.b16 %v99
    %v1354 = vunpack.c.h.b16 %v99
    %v1355 = vunpack.c.l.b16 %v100
    %v1356 = vunpack.c.h.b16 %v100
    %v1357 = vunpack.c.l.b16 %v101
    %v1358 = vunpack.c.h.b16 %v101
    %v1359 = vunpack.c.l.b16 %v102
    %v1360 = vunpack.c.h.b16 %v102
    %v1361 = vunpack.c.l.b16 %v103
    %v1362 = vunpack.c.h.b16 %v103
    %v1363 = vunpack.c.l.b16 %v104
    %v1364 = vunpack.c.h.b16 %v104
    %v1365 = vunpack.c.l.b16 %v105
    %v1366 = vunpack.c.h.b16 %v105
    %v1367 = vunpack.c.l.b16 %v106
    %v1368 = vunpack.c.h.b16 %v106
    %v1369 = vunpack.c.l.b16 %v107
    %v1370 = vunpack.c.h.b16 %v107
    %v1371 = vunpack.c.l.b16 %v108
    %v1372 = vunpack.c.h.b16 %v108
    %v1373 = vunpack.c.l.b16 %v109
    %v1374 = vunpack.c.h.b16 %v109
    %v1375 = vunpack.c.l.b16 %v110
    %v1376 = vunpack.c.h.b16 %v110
    %v1377 = vunpack.c.l.b16 %v111
    %v1378 = vunpack.c.h.b16 %v111
    %v1379 = vunpack.c.l.b16 %v112
    %v1380 = vunpack.c.h.b16 %v112
    %v1381 = vunpack.c.l.b16 %v113
    %v1382 = vunpack.c.h.b16 %v113
    %v1383 = vunpack.c.l.b16 %v114
    %v1384 = vunpack.c.h.b16 %v114
    %v1385 = vunpack.c.l.b16 %v115
    %v1386 = vunpack.c.h.b16 %v115
    %v1387 = vunpack.c.l.b16 %v116
    %v1388 = vunpack.c.h.b16 %v116
    %v1389 = vunpack.c.l.b16 %v117
    %v1390 = vunpack.c.h.b16 %v117
    %v1391 = vunpack.c.l.b16 %v118
    %v1392 = vunpack.c.h.b16 %v118
    %v1393 = vunpack.c.l.b16 %v119
    %v1394 = vunpack.c.h.b16 %v119
    %v1395 = vunpack.c.l.b16 %v120
    %v1396 = vunpack.c.h.b16 %v120
    %v1397 = vunpack.c.l.b16 %v121
    %v1398 = vunpack.c.h.b16 %v121
    %v1399 = vunpack.c.l.b16 %v122
    %v1400 = vunpack.c.h.b16 %v122
    %v1401 = vunpack.c.l.b16 %v123
    %v1402 = vunpack.c.h.b16 %v123
    %v1403 = vunpack.c.l.b16 %v124
    %v1404 = vunpack.c.h.b16 %v124
    %v1405 = vunpack.c.l.b16 %v125
    %v1406 = vunpack.c.h.b16 %v125
    %v1407 = vunpack.c.l.b16 %v126
    %v1408 = vunpack.c.h.b16 %v126
    %v1409 = vunpack.c.l.b16 %v127
    %v1410 = vunpack.c.h.b16 %v127
    %v1411 = vunpack.c.l.b16 %v128
    %v1412 = vunpack.c.h.b16 %v128
    %v1413 = vunpack.c.l.b16 %v129
    %v1414 = vunpack.c.h.b16 %v129
    %v1415 = vunpack.c.l.b16 %v130
    %v1416 = vunpack.c.h.b16 %v130
    %v1417 = vunpack.c.l.b16 %v131
    %v1418 = vunpack.c.h.b16 %v131
    %v1419 = vunpack.c.l.b16 %v132
    %v1420 = vunpack.c.h.b16 %v132
    %v1421 = vunpack.c.l.b16 %v133
    %v1422 = vunpack.c.h.b16 %v133
    %v1423 = vunpack.c.l.b16 %v134
    %v1424 = vunpack.c.h.b16 %v134
    %v1425 = vunpack.c.l.b16 %v135
    %v1426 = vunpack.c.h.b16 %v135
    %v1427 = vunpack.c.l.b16 %v136
    %v1428 = vunpack.c.h.b16 %v136
    %v1429 = vunpack.c.l.b16 %v137
    %v1430 = vunpack.c.h.b16 %v137
    %v1431 = vunpack.c.l.b16 %v138
    %v1432 = vunpack.c.h.b16 %v138
    %v1433 = vunpack.c.l.b16 %v139
    %v1434 = vunpack.c.h.b16 %v139
    %v1435 = vunpack.c.l.b16 %v140
    %v1436 = vunpack.c.h.b16 %v140
    %v1437 = vunpack.c.l.b16 %v141
    %v1438 = vunpack.c.h.b16 %v141
    %v1439 = vunpack.c.l.b16 %v142
    %v1440 = vunpack.c.h.b16 %v142
    %v1441 = vunpack.c.l.b16 %v143
    %v1442 = vunpack.c.h.b16 %v143
    %v1443 = vunpack.c.l.b16 %v144
    %v1444 = vunpack.c.h.b16 %v144
    %v1445 = vunpack.c.l.b16 %v145
    %v1446 = vunpack.c.h.b16 %v145
    %v1447 = vunpack.c.l.b16 %v146
    %v1448 = vunpack.c.h.b16 %v146
    %v1449 = vunpack.c.l.b16 %v147
    %v1450 = vunpack.c.h.b16 %v147
    %v1451 = vunpack.c.l.b16 %v148
    %v1452 = vunpack.c.h.b16 %v148
    %v1453 = vunpack.c.l.b16 %v149
    %v1454 = vunpack.c.h.b16 %v149
    %v1455 = vunpack.c.l.b16 %v150
    %v1456 = vunpack.c.h.b16 %v150
    %v1457 = vunpack.c.l.b16 %v151
    %v1458 = vunpack.c.h.b16 %v151
    %v1459 = vunpack.c.l.b16 %v152
    %v1460 = vunpack.c.h.b16 %v152
    %v1461 = vunpack.c.l.b16 %v153
    %v1462 = vunpack.c.h.b16 %v153
    %v1463 = vunpack.c.l.b16 %v154
    %v1464 = vunpack.c.h.b16 %v154
    %v1465 = vunpack.c.l.b16 %v155
    %v1466 = vunpack.c.h.b16 %v155
    %v1467 = vunpack.c.l.b16 %v156
    %v1468 = vunpack.c.h.b16 %v156
    %v1469 = vunpack.c.l.b16 %v157
    %v1470 = vunpack.c.h.b16 %v157
    %v1471 = vunpack.c.l.b16 %v158
    %v1472 = vunpack.c.h.b16 %v158
    %v1473 = vunpack.c.l.b16 %v159
    %v1474 = vunpack.c.h.b16 %v159
    %v1475 = vunpack.c.l.b16 %v160
    %v1476 = vunpack.c.h.b16 %v160
    %v1477 = vunpack.c.l.b16 %v161
    %v1478 = vunpack.c.h.b16 %v161
    %v1479 = vunpack.c.l.b16 %v162
    %v1480 = vunpack.c.h.b16 %v162
    %v1481 = vunpack.c.l.b16 %v163
    %v1482 = vunpack.c.h.b16 %v163
    %v1483 = vunpack.c.l.b16 %v164
    %v1484 = vunpack.c.h.b16 %v164
    %v1485 = vunpack.c.l.b16 %v165
    %v1486 = vunpack.c.h.b16 %v165
    %v1487 = vunpack.c.l.b16 %v166
    %v1488 = vunpack.c.h.b16 %v166
    %v1489 = vunpack.c.l.b16 %v167
    %v1490 = vunpack.c.h.b16 %v167
    %v1491 = vunpack.c.l.b16 %v168
    %v1492 = vunpack.c.h.b16 %v168
    %v1493 = vunpack.c.l.b16 %v169
    %v1494 = vunpack.c.h.b16 %v169
    %v1495 = vunpack.c.l.b16 %v170
    %v1496 = vunpack.c.h.b16 %v170
    %v1497 = vunpack.c.l.b16 %v171
    %v1498 = vunpack.c.h.b16 %v171
    %v1499 = vunpack.c.l.b16 %v172
    %v1500 = vunpack.c.h.b16 %v172
    %v1501 = vunpack.c.l.b16 %v173
    %v1502 = vunpack.c.h.b16 %v173
    %v1503 = vunpack.c.l.b16 %v174
    %v1504 = vunpack.c.h.b16 %v174
    %v1505 = vunpack.c.l.b16 %v175
    %v1506 = vunpack.c.h.b16 %v175
    %v1507 = vunpack.c.l.b16 %v176
    %v1508 = vunpack.c.h.b16 %v176
    %v1509 = vunpack.c.l.b16 %v177
    %v1510 = vunpack.c.h.b16 %v177
    %v1511 = vunpack.c.l.b16 %v178
    %v1512 = vunpack.c.h.b16 %v178
    %v1513 = vunpack.c.l.b16 %v179
    %v1514 = vunpack.c.h.b16 %v179
    %v1515 = vunpack.c.l.b16 %v180
    %v1516 = vunpack.c.h.b16 %v180
    %v1517 = vunpack.c.l.b16 %v181
    %v1518 = vunpack.c.h.b16 %v181
    %v1519 = vunpack.c.l.b16 %v182
    %v1520 = vunpack.c.h.b16 %v182
    %v1521 = vunpack.c.l.b16 %v183
    %v1522 = vunpack.c.h.b16 %v183
    %v1523 = vunpack.c.l.b16 %v184
    %v1524 = vunpack.c.h.b16 %v184
    %v1525 = vunpack.c.l.b16 %v185
    %v1526 = vunpack.c.h.b16 %v185
    %v1527 = vunpack.c.l.b16 %v186
    %v1528 = vunpack.c.h.b16 %v186
    %v1529 = vunpack.c.l.b16 %v187
    %v1530 = vunpack.c.h.b16 %v187
    %v1531 = vunpack.c.l.b16 %v188
    %v1532 = vunpack.c.h.b16 %v188
    %v1533 = vunpack.c.l.b16 %v189
    %v1534 = vunpack.c.h.b16 %v189
    %v1535 = vunpack.c.l.b16 %v190
    %v1536 = vunpack.c.h.b16 %v190
    %v1537 = vunpack.c.l.b16 %v191
    %v1538 = vunpack.c.h.b16 %v191
    %v1539 = vunpack.c.l.b16 %v192
    %v1540 = vunpack.c.h.b16 %v192
    %v1541 = vunpack.c.l.b16 %v193
    %v1542 = vunpack.c.h.b16 %v193
    %v1543 = vunpack.c.l.b16 %v194
    %v1544 = vunpack.c.h.b16 %v194
    %v1545 = vunpack.c.l.b16 %v195
    %v1546 = vunpack.c.h.b16 %v195
    %v1547 = vunpack.c.l.b16 %v196
    %v1548 = vunpack.c.h.b16 %v196
    %v1549 = vunpack.c.l.b16 %v197
    %v1550 = vunpack.c.h.b16 %v197
    %v1551 = vunpack.c.l.b16 %v198
    %v1552 = vunpack.c.h.b16 %v198
    %v1553 = vunpack.c.l.b16 %v199
    %v1554 = vunpack.c.h.b16 %v199
    %v1555 = vunpack.c.l.b16 %v200
    %v1556 = vunpack.c.h.b16 %v200
    %v1557 = vunpack.c.l.b16 %v201
    %v1558 = vunpack.c.h.b16 %v201
    %v1559 = vunpack.c.l.b16 %v202
    %v1560 = vunpack.c.h.b16 %v202
    %v1561 = vunpack.c.l.b16 %v203
    %v1562 = vunpack.c.h.b16 %v203
    %v1563 = vunpack.c.l.b16 %v204
    %v1564 = vunpack.c.h.b16 %v204
    %v1565 = vunpack.c.l.b16 %v205
    %v1566 = vunpack.c.h.b16 %v205
    %v1567 = vunpack.c.l.b16 %v206
    %v1568 = vunpack.c.h.b16 %v206
    %v1569 = vunpack.c.l.b16 %v207
    %v1570 = vunpack.c.h.b16 %v207
    %v1571 = vunpack.c.l.b16 %v208
    %v1572 = vunpack.c.h.b16 %v208
    %v1573 = vunpack.c.l.b16 %v209
    %v1574 = vunpack.c.h.b16 %v209
    %v1575 = vunpack.c.l.b16 %v210
    %v1576 = vunpack.c.h.b16 %v210
    %v1577 = vunpack.c.l.b16 %v211
    %v1578 = vunpack.c.h.b16 %v211
    %v1579 = vunpack.c.l.b16 %v212
    %v1580 = vunpack.c.h.b16 %v212
    %v1581 = vunpack.c.l.b16 %v213
    %v1582 = vunpack.c.h.b16 %v213
    %v1583 = vunpack.c.l.b16 %v214
    %v1584 = vunpack.c.h.b16 %v214
    %v1585 = vunpack.c.l.b16 %v215
    %v1586 = vunpack.c.h.b16 %v215
    %v1587 = vunpack.c.l.b16 %v216
    %v1588 = vunpack.c.h.b16 %v216
    %v1589 = vunpack.c.l.b16 %v217
    %v1590 = vunpack.c.h.b16 %v217
    %v1591 = vunpack.c.l.b16 %v218
    %v1592 = vunpack.c.h.b16 %v218
    %v1593 = vunpack.c.l.b16 %v219
    %v1594 = vunpack.c.h.b16 %v219
    %v1595 = vunpack.c.l.b16 %v220
    %v1596 = vunpack.c.h.b16 %v220
    %v1597 = vunpack.c.l.b16 %v221
    %v1598 = vunpack.c.h.b16 %v221
    %v1599 = vunpack.c.l.b16 %v222
    %v1600 = vunpack.c.h.b16 %v222
    %v1601 = vunpack.c.l.b16 %v223
    %v1602 = vunpack.c.h.b16 %v223
    %v1603 = vunpack.c.l.b16 %v224
    %v1604 = vunpack.c.h.b16 %v224
    %v1605 = vunpack.c.l.b16 %v225
    %v1606 = vunpack.c.h.b16 %v225
    %v1607 = vunpack.c.l.b16 %v226
    %v1608 = vunpack.c.h.b16 %v226
    %v1609 = vunpack.c.l.b16 %v227
    %v1610 = vunpack.c.h.b16 %v227
    %v1611 = vunpack.c.l.b16 %v228
    %v1612 = vunpack.c.h.b16 %v228
    %v1613 = vunpack.c.l.b16 %v229
    %v1614 = vunpack.c.h.b16 %v229
    %v1615 = vunpack.c.l.b16 %v230
    %v1616 = vunpack.c.h.b16 %v230
    %v1617 = vunpack.c.l.b16 %v231
    %v1618 = vunpack.c.h.b16 %v231
    %v1619 = vunpack.c.l.b16 %v232
    %v1620 = vunpack.c.h.b16 %v232
    %v1621 = vunpack.c.l.b16 %v233
    %v1622 = vunpack.c.h.b16 %v233
    %v1623 = vunpack.c.l.b16 %v234
    %v1624 = vunpack.c.h.b16 %v234
    %v1625 = vunpack.c.l.b16 %v235
    %v1626 = vunpack.c.h.b16 %v235
    %v1627 = vunpack.c.l.b16 %v236
    %v1628 = vunpack.c.h.b16 %v236
    %v1629 = vunpack.c.l.b16 %v237
    %v1630 = vunpack.c.h.b16 %v237
    %v1631 = vunpack.c.l.b16 %v238
    %v1632 = vunpack.c.h.b16 %v238
    %v1633 = vunpack.c.l.b16 %v239
    %v1634 = vunpack.c.h.b16 %v239
    %v1635 = vunpack.c.l.b16 %v240
    %v1636 = vunpack.c.h.b16 %v240
    %v1637 = vunpack.c.l.b16 %v241
    %v1638 = vunpack.c.h.b16 %v241
    %v1639 = vunpack.c.l.b16 %v242
    %v1640 = vunpack.c.h.b16 %v242
    %v1641 = vunpack.c.l.b16 %v243
    %v1642 = vunpack.c.h.b16 %v243
    %v1643 = vunpack.c.l.b16 %v244
    %v1644 = vunpack.c.h.b16 %v244
    %v1645 = vunpack.c.l.b16 %v245
    %v1646 = vunpack.c.h.b16 %v245
    %v1647 = vunpack.c.l.b16 %v246
    %v1648 = vunpack.c.h.b16 %v246
    %v1649 = vunpack.c.l.b16 %v247
    %v1650 = vunpack.c.h.b16 %v247
    %v1651 = vunpack.c.l.b16 %v248
    %v1652 = vunpack.c.h.b16 %v248
    %v1653 = vunpack.c.l.b16 %v249
    %v1654 = vunpack.c.h.b16 %v249
    %v1655 = vunpack.c.l.b16 %v250
    %v1656 = vunpack.c.h.b16 %v250
    %v1657 = vunpack.c.l.b16 %v251
    %v1658 = vunpack.c.h.b16 %v251
    %v1659 = vunpack.c.l.b16 %v252
    %v1660 = vunpack.c.h.b16 %v252
    %v1661 = vunpack.c.l.b16 %v253
    %v1662 = vunpack.c.h.b16 %v253
    %v1663 = vunpack.c.l.b16 %v254
    %v1664 = vunpack.c.h.b16 %v254
    %v1665 = vunpack.c.l.b16 %v255
    %v1666 = vunpack.c.h.b16 %v255
    %v1667 = vunpack.c.l.b16 %v256
    %v1668 = vunpack.c.h.b16 %v256
    %v1669 = vunpack.c.l.b16 %v257
    %v1670 = vunpack.c.h.b16 %v257
    %v1671 = vunpack.c.l.b16 %v258
    %v1672 = vunpack.c.h.b16 %v258
    %v1673 = vunpack.c.l.b16 %v259
    %v1674 = vunpack.c.h.b16 %v259
    %v1675 = vunpack.c.l.b16 %v260
    %v1676 = vunpack.c.h.b16 %v260
    %v1677 = vunpack.c.l.b16 %v261
    %v1678 = vunpack.c.h.b16 %v261
    %v1679 = vunpack.c.l.b16 %v262
    %v1680 = vunpack.c.h.b16 %v262
    %v1681 = vunpack.c.l.b16 %v263
    %v1682 = vunpack.c.h.b16 %v263
    %v1683 = vunpack.c.l.b16 %v264
    %v1684 = vunpack.c.h.b16 %v264
    %v1685 = vunpack.c.l.b16 %v265
    %v1686 = vunpack.c.h.b16 %v265
    %v1687 = vunpack.c.l.b16 %v266
    %v1688 = vunpack.c.h.b16 %v266
    %v1689 = vunpack.c.l.b16 %v267
    %v1690 = vunpack.c.h.b16 %v267
    %v1691 = vunpack.c.l.b16 %v268
    %v1692 = vunpack.c.h.b16 %v268
    %v1693 = vunpack.c.l.b16 %v269
    %v1694 = vunpack.c.h.b16 %v269
    %v1695 = vunpack.c.l.b16 %v270
    %v1696 = vunpack.c.h.b16 %v270
    %v1697 = vunpack.c.l.b16 %v271
    %v1698 = vunpack.c.h.b16 %v271
    %v1699 = vunpack.c.l.b16 %v272
    %v1700 = vunpack.c.h.b16 %v272
    %v1701 = vunpack.c.l.b16 %v273
    %v1702 = vunpack.c.h.b16 %v273
    %v1703 = vunpack.c.l.b16 %v274
    %v1704 = vunpack.c.h.b16 %v274
    %v1705 = vunpack.c.l.b16 %v275
    %v1706 = vunpack.c.h.b16 %v275
    %v1707 = vunpack.c.l.b16 %v276
    %v1708 = vunpack.c.h.b16 %v276
    %v1709 = vunpack.c.l.b16 %v277
    %v1710 = vunpack.c.h.b16 %v277
    %v1711 = vunpack.c.l.b16 %v278
    %v1712 = vunpack.c.h.b16 %v278
    %v1713 = vunpack.c.l.b16 %v279
    %v1714 = vunpack.c.h.b16 %v279
    %v1715 = vunpack.c.l.b16 %v280
    %v1716 = vunpack.c.h.b16 %v280
    %v1717 = vunpack.c.l.b16 %v281
    %v1718 = vunpack.c.h.b16 %v281
    %v1719 = vunpack.c.l.b16 %v282
    %v1720 = vunpack.c.h.b16 %v282
    %v1721 = vunpack.c.l.b16 %v283
    %v1722 = vunpack.c.h.b16 %v283
    %v1723 = vunpack.c.l.b16 %v284
    %v1724 = vunpack.c.h.b16 %v284
    %v1725 = vunpack.c.l.b16 %v285
    %v1726 = vunpack.c.h.b16 %v285
    %v1727 = vunpack.c.l.b16 %v286
    %v1728 = vunpack.c.h.b16 %v286
    %v1729 = vunpack.c.l.b16 %v287
    %v1730 = vunpack.c.h.b16 %v287
    %v1731 = vunpack.c.l.b16 %v288
    %v1732 = vunpack.c.h.b16 %v288
    %v1733 = vunpack.c.l.b16 %v289
    %v1734 = vunpack.c.h.b16 %v289
    %v1735 = vunpack.c.l.b16 %v290
    %v1736 = vunpack.c.h.b16 %v290
    %v1737 = vunpack.c.l.b16 %v291
    %v1738 = vunpack.c.h.b16 %v291
    %v1739 = vunpack.c.l.b16 %v292
    %v1740 = vunpack.c.h.b16 %v292
    %v1741 = vunpack.c.l.b16 %v293
    %v1742 = vunpack.c.h.b16 %v293
    %v1743 = vunpack.c.l.b16 %v294
    %v1744 = vunpack.c.h.b16 %v294
    %v1745 = vunpack.c.l.b16 %v295
    %v1746 = vunpack.c.h.b16 %v295
    %v1747 = vunpack.c.l.b16 %v296
    %v1748 = vunpack.c.h.b16 %v296
    %v1749 = vunpack.c.l.b16 %v297
    %v1750 = vunpack.c.h.b16 %v297
    %v1751 = vunpack.c.l.b16 %v298
    %v1752 = vunpack.c.h.b16 %v298
    %v1753 = vunpack.c.l.b16 %v299
    %v1754 = vunpack.c.h.b16 %v299
    %v1755 = vunpack.c.l.b16 %v300
    %v1756 = vunpack.c.h.b16 %v300
    %v1757 = vunpack.c.l.b16 %v301
    %v1758 = vunpack.c.h.b16 %v301
    %v1759 = vunpack.c.l.b16 %v302
    %v1760 = vunpack.c.h.b16 %v302
    %v1761 = vunpack.c.l.b16 %v303
    %v1762 = vunpack.c.h.b16 %v303
    %v1763 = vunpack.c.l.b16 %v304
    %v1764 = vunpack.c.h.b16 %v304
    %v1765 = vunpack.c.l.b16 %v305
    %v1766 = vunpack.c.h.b16 %v305
    %v1767 = vunpack.c.l.b16 %v306
    %v1768 = vunpack.c.h.b16 %v306
    %v1769 = vunpack.c.l.b16 %v307
    %v1770 = vunpack.c.h.b16 %v307
    %v1771 = vunpack.c.l.b16 %v308
    %v1772 = vunpack.c.h.b16 %v308
    %v1773 = vunpack.c.l.b16 %v309
    %v1774 = vunpack.c.h.b16 %v309
    %v1775 = vunpack.c.l.b16 %v310
    %v1776 = vunpack.c.h.b16 %v310
    %v1777 = vunpack.c.l.b16 %v311
    %v1778 = vunpack.c.h.b16 %v311
    %v1779 = vunpack.c.l.b16 %v312
    %v1780 = vunpack.c.h.b16 %v312
    %v1781 = vunpack.c.l.b16 %v313
    %v1782 = vunpack.c.h.b16 %v313
    %v1783 = vunpack.c.l.b16 %v314
    %v1784 = vunpack.c.h.b16 %v314
    %v1785 = vunpack.c.l.b16 %v315
    %v1786 = vunpack.c.h.b16 %v315
    %v1787 = vunpack.c.l.b16 %v316
    %v1788 = vunpack.c.h.b16 %v316
    %v1789 = vunpack.c.l.b16 %v317
    %v1790 = vunpack.c.h.b16 %v317
    %v1791 = vunpack.c.l.b16 %v318
    %v1792 = vunpack.c.h.b16 %v318
    %v1793 = vunpack.c.l.b16 %v319
    %v1794 = vunpack.c.h.b16 %v319
    %v1795 = vunpack.c.l.b16 %v320
    %v1796 = vunpack.c.h.b16 %v320
    %v1797 = vunpack.c.l.b16 %v321
    %v1798 = vunpack.c.h.b16 %v321
    %v1799 = vunpack.c.l.b16 %v322
    %v1800 = vunpack.c.h.b16 %v322
    %v1801 = vunpack.c.l.b16 %v323
    %v1802 = vunpack.c.h.b16 %v323
    %v1803 = vunpack.c.l.b16 %v324
    %v1804 = vunpack.c.h.b16 %v324
    %v1805 = vunpack.c.l.b16 %v325
    %v1806 = vunpack.c.h.b16 %v325
    %v1807 = vunpack.c.l.b16 %v326
    %v1808 = vunpack.c.h.b16 %v326
    %v1809 = vunpack.c.l.b16 %v327
    %v1810 = vunpack.c.h.b16 %v327
    %v1811 = vunpack.c.l.b16 %v328
    %v1812 = vunpack.c.h.b16 %v328
    %v1813 = vunpack.c.l.b16 %v329
    %v1814 = vunpack.c.h.b16 %v329
    %v1815 = vunpack.c.l.b16 %v330
    %v1816 = vunpack.c.h.b16 %v330
    %v1817 = vunpack.c.l.b16 %v331
    %v1818 = vunpack.c.h.b16 %v331
    %v1819 = vunpack.c.l.b16 %v332
    %v1820 = vunpack.c.h.b16 %v332
    %v1821 = vunpack.c.l.b16 %v333
    %v1822 = vunpack.c.h.b16 %v333
    %v1823 = vunpack.c.l.b16 %v334
    %v1824 = vunpack.c.h.b16 %v334
    %v1825 = vunpack.c.l.b16 %v335
    %v1826 = vunpack.c.h.b16 %v335
    %v1827 = vunpack.c.l.b16 %v336
    %v1828 = vunpack.c.h.b16 %v336
    %v1829 = vunpack.c.l.b16 %v337
    %v1830 = vunpack.c.h.b16 %v337
    %v1831 = vunpack.c.l.b16 %v338
    %v1832 = vunpack.c.h.b16 %v338
    %v1833 = vunpack.c.l.b16 %v339
    %v1834 = vunpack.c.h.b16 %v339
    %v1835 = vunpack.c.l.b16 %v340
    %v1836 = vunpack.c.h.b16 %v340
    %v1837 = vunpack.c.l.b16 %v341
    %v1838 = vunpack.c.h.b16 %v341
    %v1839 = vunpack.c.l.b16 %v342
    %v1840 = vunpack.c.h.b16 %v342
    %v1841 = vunpack.c.l.b16 %v343
    %v1842 = vunpack.c.h.b16 %v343
    %v1843 = vunpack.c.l.b16 %v344
    %v1844 = vunpack.c.h.b16 %v344
    %v1845 = vunpack.c.l.b16 %v345
    %v1846 = vunpack.c.h.b16 %v345
    %v1847 = vunpack.c.l.b16 %v346
    %v1848 = vunpack.c.h.b16 %v346
    %v1849 = vunpack.c.l.b16 %v347
    %v1850 = vunpack.c.h.b16 %v347
    %v1851 = vunpack.c.l.b16 %v348
    %v1852 = vunpack.c.h.b16 %v348
    %v1853 = vunpack.c.l.b16 %v349
    %v1854 = vunpack.c.h.b16 %v349
    %v1855 = vunpack.c.l.b16 %v350
    %v1856 = vunpack.c.h.b16 %v350
    %v1857 = vunpack.c.l.b16 %v351
    %v1858 = vunpack.c.h.b16 %v351
    %v1859 = vunpack.c.l.b16 %v352
    %v1860 = vunpack.c.h.b16 %v352
    %v1861 = vunpack.c.l.b16 %v353
    %v1862 = vunpack.c.h.b16 %v353
    %v1863 = vunpack.c.l.b16 %v354
    %v1864 = vunpack.c.h.b16 %v354
    %v1865 = vunpack.c.l.b16 %v355
    %v1866 = vunpack.c.h.b16 %v355
    %v1867 = vunpack.c.l.b16 %v356
    %v1868 = vunpack.c.h.b16 %v356
    %v1869 = vunpack.c.l.b16 %v357
    %v1870 = vunpack.c.h.b16 %v357
    %v1871 = vunpack.c.l.b16 %v358
    %v1872 = vunpack.c.h.b16 %v358
    %v1873 = vunpack.c.l.b16 %v359
    %v1874 = vunpack.c.h.b16 %v359
    %v1875 = vunpack.c.l.b16 %v360
    %v1876 = vunpack.c.h.b16 %v360
    %v1877 = vunpack.c.l.b16 %v361
    %v1878 = vunpack.c.h.b16 %v361
    %v1879 = vunpack.c.l.b16 %v362
    %v1880 = vunpack.c.h.b16 %v362
    %v1881 = vunpack.c.l.b16 %v363
    %v1882 = vunpack.c.h.b16 %v363
    %v1883 = vunpack.c.l.b16 %v364
    %v1884 = vunpack.c.h.b16 %v364
    %v1885 = vunpack.c.l.b16 %v365
    %v1886 = vunpack.c.h.b16 %v365
    %v1887 = vunpack.c.l.b16 %v366
    %v1888 = vunpack.c.h.b16 %v366
    %v1889 = vunpack.c.l.b16 %v367
    %v1890 = vunpack.c.h.b16 %v367
    %v1891 = vunpack.c.l.b16 %v368
    %v1892 = vunpack.c.h.b16 %v368
    %v1893 = vunpack.c.l.b16 %v369
    %v1894 = vunpack.c.h.b16 %v369
    %v1895 = vunpack.c.l.b16 %v370
    %v1896 = vunpack.c.h.b16 %v370
    %v1897 = vunpack.c.l.b16 %v371
    %v1898 = vunpack.c.h.b16 %v371
    %v1899 = vunpack.c.l.b16 %v372
    %v1900 = vunpack.c.h.b16 %v372
    %v1901 = vunpack.c.l.b16 %v373
    %v1902 = vunpack.c.h.b16 %v373
    %v1903 = vunpack.c.l.b16 %v374
    %v1904 = vunpack.c.h.b16 %v374
    %v1905 = vunpack.c.l.b16 %v375
    %v1906 = vunpack.c.h.b16 %v375
    %v1907 = vunpack.c.l.b16 %v376
    %v1908 = vunpack.c.h.b16 %v376
    %v1909 = vunpack.c.l.b16 %v377
    %v1910 = vunpack.c.h.b16 %v377
    %v1911 = vunpack.c.l.b16 %v378
    %v1912 = vunpack.c.h.b16 %v378
    %v1913 = vunpack.c.l.b16 %v379
    %v1914 = vunpack.c.h.b16 %v379
    %v1915 = vunpack.c.l.b16 %v380
    %v1916 = vunpack.c.h.b16 %v380
    %v1917 = vunpack.c.l.b16 %v381
    %v1918 = vunpack.c.h.b16 %v381
    %v1919 = vunpack.c.l.b16 %v382
    %v1920 = vunpack.c.h.b16 %v382
    %v1921 = vunpack.c.l.b16 %v383
    %v1922 = vunpack.c.h.b16 %v383
    %v1923 = vunpack.c.l.b16 %v384
    %v1924 = vunpack.c.h.b16 %v384
    %v1925 = vunpack.c.l.b16 %v385
    %v1926 = vunpack.c.h.b16 %v385
    %v1927 = vunpack.c.l.b16 %v386
    %v1928 = vunpack.c.h.b16 %v386
    %v1929 = vunpack.c.l.b16 %v387
    %v1930 = vunpack.c.h.b16 %v387
    %v1931 = vunpack.c.l.b16 %v388
    %v1932 = vunpack.c.h.b16 %v388
    %v1933 = vunpack.c.l.b16 %v389
    %v1934 = vunpack.c.h.b16 %v389
    %v1935 = vunpack.c.l.b16 %v390
    %v1936 = vunpack.c.h.b16 %v390
    %v1937 = vunpack.c.l.b16 %v391
    %v1938 = vunpack.c.h.b16 %v391
    %v1939 = vunpack.c.l.b16 %v392
    %v1940 = vunpack.c.h.b16 %v392
    %v1941 = vunpack.c.l.b16 %v393
    %v1942 = vunpack.c.h.b16 %v393
    %v1943 = vunpack.c.l.b16 %v394
    %v1944 = vunpack.c.h.b16 %v394
    %v1945 = vunpack.c.l.b16 %v395
    %v1946 = vunpack.c.h.b16 %v395
    %v1947 = vunpack.c.l.b16 %v396
    %v1948 = vunpack.c.h.b16 %v396
    %v1949 = vunpack.c.l.b16 %v397
    %v1950 = vunpack.c.h.b16 %v397
    %v1951 = vunpack.c.l.b16 %v398
    %v1952 = vunpack.c.h.b16 %v398
    %v1953 = vunpack.c.l.b16 %v399
    %v1954 = vunpack.c.h.b16 %v399
    %v1955 = vunpack.c.l.b16 %v400
    %v1956 = vunpack.c.h.b16 %v400
    %v1957 = vunpack.c.l.b16 %v401
    %v1958 = vunpack.c.h.b16 %v401
    %v1959 = vunpack.c.l.b16 %v402
    %v1960 = vunpack.c.h.b16 %v402
    %v1961 = vunpack.c.l.b16 %v403
    %v1962 = vunpack.c.h.b16 %v403
    %v1963 = vunpack.c.l.b16 %v404
    %v1964 = vunpack.c.h.b16 %v404
    %v1965 = vunpack.c.l.b16 %v405
    %v1966 = vunpack.c.h.b16 %v405
    %v1967 = vunpack.c.l.b16 %v406
    %v1968 = vunpack.c.h.b16 %v406
    %v1969 = vunpack.c.l.b16 %v407
    %v1970 = vunpack.c.h.b16 %v407
    %v1971 = vunpack.c.l.b16 %v408
    %v1972 = vunpack.c.h.b16 %v408
    %v1973 = vunpack.c.l.b16 %v409
    %v1974 = vunpack.c.h.b16 %v409
    %v1975 = vunpack.c.l.b16 %v410
    %v1976 = vunpack.c.h.b16 %v410
    %v1977 = vunpack.c.l.b16 %v411
    %v1978 = vunpack.c.h.b16 %v411
    %v1979 = vunpack.c.l.b16 %v412
    %v1980 = vunpack.c.h.b16 %v412
    %v1981 = vunpack.c.l.b16 %v413
    %v1982 = vunpack.c.h.b16 %v413
    %v1983 = vunpack.c.l.b16 %v414
    %v1984 = vunpack.c.h.b16 %v414
    %v1985 = vunpack.c.l.b16 %v415
    %v1986 = vunpack.c.h.b16 %v415
    %v1987 = vunpack.c.l.b16 %v416
    %v1988 = vunpack.c.h.b16 %v416
    %v1989 = vunpack.c.l.b16 %v417
    %v1990 = vunpack.c.h.b16 %v417
    %v1991 = vunpack.c.l.b16 %v418
    %v1992 = vunpack.c.h.b16 %v418
    %v1993 = vunpack.c.l.b16 %v419
    %v1994 = vunpack.c.h.b16 %v419
    %v1995 = vunpack.c.l.b16 %v420
    %v1996 = vunpack.c.h.b16 %v420
    %v1997 = vunpack.c.l.b16 %v421
    %v1998 = vunpack.c.h.b16 %v421
    %v1999 = vunpack.c.l.b16 %v422
    %v2000 = vunpack.c.h.b16 %v422
    %v2001 = vunpack.c.l.b16 %v423
    %v2002 = vunpack.c.h.b16 %v423
    %v2003 = vunpack.c.l.b16 %v424
    %v2004 = vunpack.c.h.b16 %v424
    %v2005 = vunpack.c.l.b16 %v425
    %v2006 = vunpack.c.h.b16 %v425
    %v2007 = vunpack.c.l.b16 %v426
    %v2008 = vunpack.c.h.b16 %v426
    %v2009 = vunpack.c.l.b16 %v427
    %v2010 = vunpack.c.h.b16 %v427
    %v2011 = vunpack.c.l.b16 %v428
    %v2012 = vunpack.c.h.b16 %v428
    %v2013 = vunpack.c.l.b16 %v429
    %v2014 = vunpack.c.h.b16 %v429
    %v2015 = vunpack.c.l.b16 %v430
    %v2016 = vunpack.c.h.b16 %v430
    %v2017 = vunpack.c.l.b16 %v431
    %v2018 = vunpack.c.h.b16 %v431
    %v2019 = vunpack.c.l.b16 %v432
    %v2020 = vunpack.c.h.b16 %v432
    %v2021 = vunpack.c.l.b16 %v433
    %v2022 = vunpack.c.h.b16 %v433
    %v2023 = vunpack.c.l.b16 %v434
    %v2024 = vunpack.c.h.b16 %v434
    %v2025 = vunpack.c.l.b16 %v435
    %v2026 = vunpack.c.h.b16 %v435
    %v2027 = vunpack.c.l.b16 %v436
    %v2028 = vunpack.c.h.b16 %v436
    %v2029 = vunpack.c.l.b16 %v437
    %v2030 = vunpack.c.h.b16 %v437
    %v2031 = vunpack.c.l.b16 %v438
    %v2032 = vunpack.c.h.b16 %v438
    %v2033 = vunpack.c.l.b16 %v439
    %v2034 = vunpack.c.h.b16 %v439
    %v2035 = vunpack.c.l.b16 %v440
    %v2036 = vunpack.c.h.b16 %v440
    %v2037 = vunpack.c.l.b16 %v441
    %v2038 = vunpack.c.h.b16 %v441
    %v2039 = vunpack.c.l.b16 %v442
    %v2040 = vunpack.c.h.b16 %v442
    %v2041 = vunpack.c.l.b16 %v443
    %v2042 = vunpack.c.h.b16 %v443
    %v2043 = vunpack.c.l.b16 %v444
    %v2044 = vunpack.c.h.b16 %v444
    %v2045 = vunpack.c.l.b16 %v445
    %v2046 = vunpack.c.h.b16 %v445
    %v2047 = vunpack.c.l.b16 %v446
    %v2048 = vunpack.c.h.b16 %v446
    %v2049 = vunpack.c.l.b16 %v447
    %v2050 = vunpack.c.h.b16 %v447
    %v2051 = vunpack.c.l.b16 %v448
    %v2052 = vunpack.c.h.b16 %v448
    %v2053 = vunpack.c.l.b16 %v449
    %v2054 = vunpack.c.h.b16 %v449
    %v2055 = vunpack.c.l.b16 %v450
    %v2056 = vunpack.c.h.b16 %v450
    %v2057 = vunpack.c.l.b16 %v451
    %v2058 = vunpack.c.h.b16 %v451
    %v2059 = vunpack.c.l.b16 %v452
    %v2060 = vunpack.c.h.b16 %v452
    %v2061 = vunpack.c.l.b16 %v453
    %v2062 = vunpack.c.h.b16 %v453
    %v2063 = vunpack.c.l.b16 %v454
    %v2064 = vunpack.c.h.b16 %v454
    %v2065 = vunpack.c.l.b16 %v455
    %v2066 = vunpack.c.h.b16 %v455
    %v2067 = vunpack.c.l.b16 %v456
    %v2068 = vunpack.c.h.b16 %v456
    %v2069 = vunpack.c.l.b16 %v457
    %v2070 = vunpack.c.h.b16 %v457
    %v2071 = vunpack.c.l.b16 %v458
    %v2072 = vunpack.c.h.b16 %v458
    %v2073 = vunpack.c.l.b16 %v459
    %v2074 = vunpack.c.h.b16 %v459
    %v2075 = vunpack.c.l.b16 %v460
    %v2076 = vunpack.c.h.b16 %v460
    %v2077 = vunpack.c.l.b16 %v461
    %v2078 = vunpack.c.h.b16 %v461
    %v2079 = vunpack.c.l.b16 %v462
    %v2080 = vunpack.c.h.b16 %v462
    %v2081 = vunpack.c.l.b16 %v463
    %v2082 = vunpack.c.h.b16 %v463
    %v2083 = vunpack.c.l.b16 %v464
    %v2084 = vunpack.c.h.b16 %v464
    %v2085 = vunpack.c.l.b16 %v465
    %v2086 = vunpack.c.h.b16 %v465
    %v2087 = vunpack.c.l.b16 %v466
    %v2088 = vunpack.c.h.b16 %v466
    %v2089 = vunpack.c.l.b16 %v467
    %v2090 = vunpack.c.h.b16 %v467
    %v2091 = vunpack.c.l.b16 %v468
    %v2092 = vunpack.c.h.b16 %v468
    %v2093 = vunpack.c.l.b16 %v469
    %v2094 = vunpack.c.h.b16 %v469
    %v2095 = vunpack.c.l.b16 %v470
    %v2096 = vunpack.c.h.b16 %v470
    %v2097 = vunpack.c.l.b16 %v471
    %v2098 = vunpack.c.h.b16 %v471
    %v2099 = vunpack.c.l.b16 %v472
    %v2100 = vunpack.c.h.b16 %v472
    %v2101 = vunpack.c.l.b16 %v473
    %v2102 = vunpack.c.h.b16 %v473
    %v2103 = vunpack.c.l.b16 %v474
    %v2104 = vunpack.c.h.b16 %v474
    %v2105 = vunpack.c.l.b16 %v475
    %v2106 = vunpack.c.h.b16 %v475
    %v2107 = vunpack.c.l.b16 %v476
    %v2108 = vunpack.c.h.b16 %v476
    %v2109 = vunpack.c.l.b16 %v477
    %v2110 = vunpack.c.h.b16 %v477
    %v2111 = vunpack.c.l.b16 %v478
    %v2112 = vunpack.c.h.b16 %v478
    %v2113 = vunpack.c.l.b16 %v479
    %v2114 = vunpack.c.h.b16 %v479
    %v2115 = vunpack.c.l.b16 %v480
    %v2116 = vunpack.c.h.b16 %v480
    %v2117 = vunpack.c.l.b16 %v481
    %v2118 = vunpack.c.h.b16 %v481
    %v2119 = vunpack.c.l.b16 %v482
    %v2120 = vunpack.c.h.b16 %v482
    %v2121 = vunpack.c.l.b16 %v483
    %v2122 = vunpack.c.h.b16 %v483
    %v2123 = vunpack.c.l.b16 %v484
    %v2124 = vunpack.c.h.b16 %v484
    %v2125 = vunpack.c.l.b16 %v485
    %v2126 = vunpack.c.h.b16 %v485
    %v2127 = vunpack.c.l.b16 %v486
    %v2128 = vunpack.c.h.b16 %v486
    %v2129 = vunpack.c.l.b16 %v487
    %v2130 = vunpack.c.h.b16 %v487
    %v2131 = vunpack.c.l.b16 %v488
    %v2132 = vunpack.c.h.b16 %v488
    %v2133 = vunpack.c.l.b16 %v489
    %v2134 = vunpack.c.h.b16 %v489
    %v2135 = vunpack.c.l.b16 %v490
    %v2136 = vunpack.c.h.b16 %v490
    %v2137 = vunpack.c.l.b16 %v491
    %v2138 = vunpack.c.h.b16 %v491
    %v2139 = vunpack.c.l.b16 %v492
    %v2140 = vunpack.c.h.b16 %v492
    %v2141 = vunpack.c.l.b16 %v493
    %v2142 = vunpack.c.h.b16 %v493
    %v2143 = vunpack.c.l.b16 %v494
    %v2144 = vunpack.c.h.b16 %v494
    %v2145 = vunpack.c.l.b16 %v495
    %v2146 = vunpack.c.h.b16 %v495
    %v2147 = vunpack.c.l.b16 %v496
    %v2148 = vunpack.c.h.b16 %v496
    %v2149 = vunpack.c.l.b16 %v497
    %v2150 = vunpack.c.h.b16 %v497
    %v2151 = vunpack.c.l.b16 %v498
    %v2152 = vunpack.c.h.b16 %v498
    %v2153 = vunpack.c.l.b16 %v499
    %v2154 = vunpack.c.h.b16 %v499
    %v2155 = vunpack.c.l.b16 %v500
    %v2156 = vunpack.c.h.b16 %v500
    %v2157 = vunpack.c.l.b16 %v501
    %v2158 = vunpack.c.h.b16 %v501
    %v2159 = vunpack.c.l.b16 %v502
    %v2160 = vunpack.c.h.b16 %v502
    %v2161 = vunpack.c.l.b16 %v503
    %v2162 = vunpack.c.h.b16 %v503
    %v2163 = vunpack.c.l.b16 %v504
    %v2164 = vunpack.c.h.b16 %v504
    %v2165 = vunpack.c.l.b16 %v505
    %v2166 = vunpack.c.h.b16 %v505
    %v2167 = vunpack.c.l.b16 %v506
    %v2168 = vunpack.c.h.b16 %v506
    %v2169 = vunpack.c.l.b16 %v507
    %v2170 = vunpack.c.h.b16 %v507
    %v2171 = vunpack.c.l.b16 %v508
    %v2172 = vunpack.c.h.b16 %v508
    %v2173 = vunpack.c.l.b16 %v509
    %v2174 = vunpack.c.h.b16 %v509
    %v2175 = vunpack.c.l.b16 %v510
    %v2176 = vunpack.c.h.b16 %v510
    %v2177 = vunpack.c.l.b16 %v511
    %v2178 = vunpack.c.h.b16 %v511
    %v2179 = vunpack.c.l.b16 %v512
    %v2180 = vunpack.c.h.b16 %v512
    %v2181 = vunpack.c.l.b16 %v513
    %v2182 = vunpack.c.h.b16 %v513
    %v2183 = vunpack.c.l.b16 %v514
    %v2184 = vunpack.c.h.b16 %v514
    %v2185 = vunpack.c.l.b16 %v515
    %v2186 = vunpack.c.h.b16 %v515
    %v2187 = vunpack.c.l.b16 %v516
    %v2188 = vunpack.c.h.b16 %v516
    %v2189 = vunpack.c.l.b16 %v517
    %v2190 = vunpack.c.h.b16 %v517
    %v2191 = vunpack.c.l.b16 %v518
    %v2192 = vunpack.c.h.b16 %v518
    %v2193 = vunpack.c.l.b16 %v519
    %v2194 = vunpack.c.h.b16 %v519
    %v2195 = vunpack.c.l.b16 %v520
    %v2196 = vunpack.c.h.b16 %v520
    %v2197 = vunpack.c.l.b16 %v521
    %v2198 = vunpack.c.h.b16 %v521
    %v2199 = vunpack.c.l.b16 %v522
    %v2200 = vunpack.c.h.b16 %v522
    %v2201 = vunpack.c.l.b16 %v523
    %v2202 = vunpack.c.h.b16 %v523
    %v2203 = vunpack.c.l.b16 %v524
    %v2204 = vunpack.c.h.b16 %v524
    %v2205 = vunpack.c.l.b16 %v525
    %v2206 = vunpack.c.h.b16 %v525
    %v2207 = vunpack.c.l.b16 %v526
    %v2208 = vunpack.c.h.b16 %v526
    %v2209 = vunpack.c.l.b16 %v527
    %v2210 = vunpack.c.h.b16 %v527
    %v2211 = vunpack.c.l.b16 %v528
    %v2212 = vunpack.c.h.b16 %v528
    %v2213 = vunpack.c.l.b16 %v529
    %v2214 = vunpack.c.h.b16 %v529
    %v2215 = vunpack.c.l.b16 %v530
    %v2216 = vunpack.c.h.b16 %v530
    %v2217 = vunpack.c.l.b16 %v531
    %v2218 = vunpack.c.h.b16 %v531
    %v2219 = vunpack.c.l.b16 %v532
    %v2220 = vunpack.c.h.b16 %v532
    %v2221 = vunpack.c.l.b16 %v533
    %v2222 = vunpack.c.h.b16 %v533
    %v2223 = vunpack.c.l.b16 %v534
    %v2224 = vunpack.c.h.b16 %v534
    %v2225 = vunpack.c.l.b16 %v535
    %v2226 = vunpack.c.h.b16 %v535
    %v2227 = vunpack.c.l.b16 %v536
    %v2228 = vunpack.c.h.b16 %v536
    %v2229 = vunpack.c.l.b16 %v537
    %v2230 = vunpack.c.h.b16 %v537
    %v2231 = vunpack.c.l.b16 %v538
    %v2232 = vunpack.c.h.b16 %v538
    %v2233 = vunpack.c.l.b16 %v539
    %v2234 = vunpack.c.h.b16 %v539
    %v2235 = vunpack.c.l.b16 %v540
    %v2236 = vunpack.c.h.b16 %v540
    %v2237 = vunpack.c.l.b16 %v541
    %v2238 = vunpack.c.h.b16 %v541
    %v2239 = vunpack.c.l.b16 %v542
    %v2240 = vunpack.c.h.b16 %v542
    %v2241 = vunpack.c.l.b16 %v543
    %v2242 = vunpack.c.h.b16 %v543
    %v2243 = vunpack.c.l.b16 %v544
    %v2244 = vunpack.c.h.b16 %v544
    %v2245 = vunpack.c.l.b16 %v545
    %v2246 = vunpack.c.h.b16 %v545
    %v2247 = vunpack.c.l.b16 %v546
    %v2248 = vunpack.c.h.b16 %v546
    %v2249 = vunpack.c.l.b16 %v547
    %v2250 = vunpack.c.h.b16 %v547
    %v2251 = vunpack.c.l.b16 %v548
    %v2252 = vunpack.c.h.b16 %v548
    %v2253 = vunpack.c.l.b16 %v549
    %v2254 = vunpack.c.h.b16 %v549
    %v2255 = vunpack.c.l.b16 %v550
    %v2256 = vunpack.c.h.b16 %v550
    %v2257 = vunpack.c.l.b16 %v551
    %v2258 = vunpack.c.h.b16 %v551
    %v2259 = vunpack.c.l.b16 %v552
    %v2260 = vunpack.c.h.b16 %v552
    %v2261 = vunpack.c.l.b16 %v553
    %v2262 = vunpack.c.h.b16 %v553
    %v2263 = vunpack.c.l.b16 %v554
    %v2264 = vunpack.c.h.b16 %v554
    %v2265 = vunpack.c.l.b16 %v555
    %v2266 = vunpack.c.h.b16 %v555
    %v2267 = vunpack.c.l.b16 %v556
    %v2268 = vunpack.c.h.b16 %v556
    %v2269 = vunpack.c.l.b16 %v557
    %v2270 = vunpack.c.h.b16 %v557
    %v2271 = vunpack.c.l.b16 %v558
    %v2272 = vunpack.c.h.b16 %v558
    %v2273 = vunpack.c.l.b16 %v559
    %v2274 = vunpack.c.h.b16 %v559
    %v2275 = vunpack.c.l.b16 %v560
    %v2276 = vunpack.c.h.b16 %v560
    %v2277 = vunpack.c.l.b16 %v561
    %v2278 = vunpack.c.h.b16 %v561
    %v2279 = vunpack.c.l.b16 %v562
    %v2280 = vunpack.c.h.b16 %v562
    %v2281 = vunpack.c.l.b16 %v563
    %v2282 = vunpack.c.h.b16 %v563
    %v2283 = vunpack.c.l.b16 %v564
    %v2284 = vunpack.c.h.b16 %v564
    %v2285 = vunpack.c.l.b16 %v565
    %v2286 = vunpack.c.h.b16 %v565
    %v2287 = vunpack.c.l.b16 %v566
    %v2288 = vunpack.c.h.b16 %v566
    %v2289 = vunpack.c.l.b16 %v567
    %v2290 = vunpack.c.h.b16 %v567
    %v2291 = vunpack.c.l.b16 %v568
    %v2292 = vunpack.c.h.b16 %v568
    %v2293 = vunpack.c.l.b16 %v569
    %v2294 = vunpack.c.h.b16 %v569
    %v2295 = vunpack.c.l.b16 %v570
    %v2296 = vunpack.c.h.b16 %v570
    %v2297 = vunpack.c.l.b16 %v571
    %v2298 = vunpack.c.h.b16 %v571
    %v2299 = vunpack.c.l.b16 %v572
    %v2300 = vunpack.c.h.b16 %v572
    %v2301 = vunpack.c.l.b16 %v573
    %v2302 = vunpack.c.h.b16 %v573
    %v2303 = vunpack.c.l.b16 %v574
    %v2304 = vunpack.c.h.b16 %v574
    %v2305 = vunpack.c.l.b16 %v575
    %v2306 = vunpack.c.h.b16 %v575
    %v2307 = vunpack.c.l.b16 %v576
    %v2308 = vunpack.c.h.b16 %v576
    %v2309 = vunpack.c.l.b16 %v577
    %v2310 = vunpack.c.h.b16 %v577
    %v2311 = vunpack.c.l.b16 %v578
    %v2312 = vunpack.c.h.b16 %v578
    %v2313 = vunpack.c.l.b16 %v579
    %v2314 = vunpack.c.h.b16 %v579
    %v2315 = vunpack.c.l.b16 %v580
    %v2316 = vunpack.c.h.b16 %v580
    %v2317 = vunpack.c.l.b16 %v581
    %v2318 = vunpack.c.h.b16 %v581
    %v2319 = vunpack.c.l.b16 %v582
    %v2320 = vunpack.c.h.b16 %v582
    %v2321 = vunpack.c.l.b16 %v583
    %v2322 = vunpack.c.h.b16 %v583
    %v2323 = vunpack.c.l.b16 %v584
    %v2324 = vunpack.c.h.b16 %v584
    %v2325 = vunpack.c.l.b16 %v585
    %v2326 = vunpack.c.h.b16 %v585
    %v2327 = vunpack.c.l.b16 %v586
    %v2328 = vunpack.c.h.b16 %v586
    %v2329 = vunpack.c.l.b16 %v587
    %v2330 = vunpack.c.h.b16 %v587
    %v2331 = vunpack.c.l.b16 %v588
    %v2332 = vunpack.c.h.b16 %v588
    %v2333 = vunpack.c.l.b16 %v589
    %v2334 = vunpack.c.h.b16 %v589
    %v2335 = vunpack.c.l.b16 %v590
    %v2336 = vunpack.c.h.b16 %v590
    %v2337 = vunpack.c.l.b16 %v591
    %v2338 = vunpack.c.h.b16 %v591
    %v2339 = vunpack.c.l.b16 %v592
    %v2340 = vunpack.c.h.b16 %v592
    %v2341 = vunpack.c.l.b16 %v593
    %v2342 = vunpack.c.h.b16 %v593
    %v2343 = vunpack.c.l.b16 %v594
    %v2344 = vunpack.c.h.b16 %v594
    %v2345 = vunpack.c.l.b16 %v595
    %v2346 = vunpack.c.h.b16 %v595
    %v2347 = vunpack.c.l.b16 %v596
    %v2348 = vunpack.c.h.b16 %v596
    %v2349 = vunpack.c.l.b16 %v597
    %v2350 = vunpack.c.h.b16 %v597
    %v2351 = vunpack.c.l.b16 %v598
    %v2352 = vunpack.c.h.b16 %v598
    %v2353 = vunpack.c.l.b16 %v599
    %v2354 = vunpack.c.h.b16 %v599
    %v2355 = vunpack.c.l.b16 %v600
    %v2356 = vunpack.c.h.b16 %v600
    %v2357 = vunpack.c.l.b16 %v601
    %v2358 = vunpack.c.h.b16 %v601
    %v2359 = vunpack.c.l.b16 %v602
    %v2360 = vunpack.c.h.b16 %v602
    %v2361 = vunpack.c.l.b16 %v603
    %v2362 = vunpack.c.h.b16 %v603
    %v2363 = vunpack.c.l.b16 %v604
    %v2364 = vunpack.c.h.b16 %v604
    %v2365 = vunpack.c.l.b16 %v605
    %v2366 = vunpack.c.h.b16 %v605
    %v2367 = vunpack.c.l.b16 %v606
    %v2368 = vunpack.c.h.b16 %v606
    %v2369 = vunpack.c.l.b16 %v607
    %v2370 = vunpack.c.h.b16 %v607
    %v2371 = vunpack.c.l.b16 %v608
    %v2372 = vunpack.c.h.b16 %v608
    %v2373 = vunpack.c.l.b16 %v609
    %v2374 = vunpack.c.h.b16 %v609
    %v2375 = vunpack.c.l.b16 %v610
    %v2376 = vunpack.c.h.b16 %v610
    %v2377 = vunpack.c.l.b16 %v611
    %v2378 = vunpack.c.h.b16 %v611
    %v2379 = vunpack.c.l.b16 %v612
    %v2380 = vunpack.c.h.b16 %v612
    %v2381 = vunpack.c.l.b16 %v613
    %v2382 = vunpack.c.h.b16 %v613
    %v2383 = vunpack.c.l.b16 %v614
    %v2384 = vunpack.c.h.b16 %v614
    %v2385 = vunpack.c.l.b16 %v615
    %v2386 = vunpack.c.h.b16 %v615
    %v2387 = vunpack.c.l.b16 %v616
    %v2388 = vunpack.c.h.b16 %v616
    %v2389 = vunpack.c.l.b16 %v617
    %v2390 = vunpack.c.h.b16 %v617
    %v2391 = vunpack.c.l.b16 %v618
    %v2392 = vunpack.c.h.b16 %v618
    %v2393 = vunpack.c.l.b16 %v619
    %v2394 = vunpack.c.h.b16 %v619
    %v2395 = vunpack.c.l.b16 %v620
    %v2396 = vunpack.c.h.b16 %v620
    %v2397 = vunpack.c.l.b16 %v621
    %v2398 = vunpack.c.h.b16 %v621
    %v2399 = vunpack.c.l.b16 %v622
    %v2400 = vunpack.c.h.b16 %v622
    %v2401 = vunpack.c.l.b16 %v623
    %v2402 = vunpack.c.h.b16 %v623
    %v2403 = vunpack.c.l.b16 %v624
    %v2404 = vunpack.c.h.b16 %v624
    %v2405 = vunpack.c.l.b16 %v625
    %v2406 = vunpack.c.h.b16 %v625
    %v2407 = vunpack.c.l.b16 %v626
    %v2408 = vunpack.c.h.b16 %v626
    %v2409 = vunpack.c.l.b16 %v627
    %v2410 = vunpack.c.h.b16 %v627
    %v2411 = vunpack.c.l.b16 %v628
    %v2412 = vunpack.c.h.b16 %v628
    %v2413 = vunpack.c.l.b16 %v629
    %v2414 = vunpack.c.h.b16 %v629
    %v2415 = vunpack.c.l.b16 %v630
    %v2416 = vunpack.c.h.b16 %v630
    %v2417 = vunpack.c.l.b16 %v631
    %v2418 = vunpack.c.h.b16 %v631
    %v2419 = vunpack.c.l.b16 %v632
    %v2420 = vunpack.c.h.b16 %v632
    %v2421 = vunpack.c.l.b16 %v633
    %v2422 = vunpack.c.h.b16 %v633
    %v2423 = vunpack.c.l.b16 %v634
    %v2424 = vunpack.c.h.b16 %v634
    %v2425 = vunpack.c.l.b16 %v635
    %v2426 = vunpack.c.h.b16 %v635
    %v2427 = vunpack.c.l.b16 %v636
    %v2428 = vunpack.c.h.b16 %v636
    %v2429 = vunpack.c.l.b16 %v637
    %v2430 = vunpack.c.h.b16 %v637
    %v2431 = vunpack.c.l.b16 %v638
    %v2432 = vunpack.c.h.b16 %v638
    %v2433 = vunpack.c.l.b16 %v639
    %v2434 = vunpack.c.h.b16 %v639
    %v2435 = vunpack.c.l.b16 %v640
    %v2436 = vunpack.c.h.b16 %v640
    %v2437 = vunpack.c.l.b16 %v641
    %v2438 = vunpack.c.h.b16 %v641
    %v2439 = vunpack.c.l.b16 %v642
    %v2440 = vunpack.c.h.b16 %v642
    %v2441 = vunpack.c.l.b16 %v643
    %v2442 = vunpack.c.h.b16 %v643
    %v2443 = vunpack.c.l.b16 %v644
    %v2444 = vunpack.c.h.b16 %v644
    %v2445 = vunpack.c.l.b16 %v645
    %v2446 = vunpack.c.h.b16 %v645
    %v2447 = vunpack.c.l.b16 %v646
    %v2448 = vunpack.c.h.b16 %v646
    %v2449 = vunpack.c.l.b16 %v647
    %v2450 = vunpack.c.h.b16 %v647
    %v2451 = vunpack.c.l.b16 %v648
    %v2452 = vunpack.c.h.b16 %v648
    %v2453 = vunpack.c.l.b16 %v649
    %v2454 = vunpack.c.h.b16 %v649
    %v2455 = vunpack.c.l.b16 %v650
    %v2456 = vunpack.c.h.b16 %v650
    %v2457 = vunpack.c.l.b16 %v651
    %v2458 = vunpack.c.h.b16 %v651
    %v2459 = vunpack.c.l.b16 %v652
    %v2460 = vunpack.c.h.b16 %v652
    %v2461 = vunpack.c.l.b16 %v653
    %v2462 = vunpack.c.h.b16 %v653
    %v2463 = vunpack.c.l.b16 %v654
    %v2464 = vunpack.c.h.b16 %v654
    %v2465 = vunpack.c.l.b16 %v655
    %v2466 = vunpack.c.h.b16 %v655
    %v2467 = vunpack.c.l.b16 %v656
    %v2468 = vunpack.c.h.b16 %v656
    %v2469 = vunpack.c.l.b16 %v657
    %v2470 = vunpack.c.h.b16 %v657
    %v2471 = vunpack.c.l.b16 %v658
    %v2472 = vunpack.c.h.b16 %v658
    %v2473 = vunpack.c.l.b16 %v659
    %v2474 = vunpack.c.h.b16 %v659
    %v2475 = vunpack.c.l.b16 %v660
    %v2476 = vunpack.c.h.b16 %v660
    %v2477 = vunpack.c.l.b16 %v661
    %v2478 = vunpack.c.h.b16 %v661
    %v2479 = vunpack.c.l.b16 %v662
    %v2480 = vunpack.c.h.b16 %v662
    %v2481 = vunpack.c.l.b16 %v663
    %v2482 = vunpack.c.h.b16 %v663
    %v2483 = vunpack.c.l.b16 %v664
    %v2484 = vunpack.c.h.b16 %v664
    %v2485 = vunpack.c.l.b16 %v665
    %v2486 = vunpack.c.h.b16 %v665
    %v2487 = vunpack.c.l.b16 %v666
    %v2488 = vunpack.c.h.b16 %v666
    %v2489 = vpack.c.b16 %v1349, %v1337
    %v2490 = vpack.c.b16 %v1350, %v1338
    %v2491 = vpack.c.b16 %v1351, %v1339
    %v2492 = vpack.c.b16 %v1352, %v1340
    %v2493 = vpack.c.b16 %v1353, %v1341
    %v2494 = vpack.c.b16 %v1354, %v1342
    %v2495 = vpack.c.b16 %v1355, %v1343
    %v2496 = vpack.c.b16 %v1356, %v1344
    %v2497 = vpack.c.b16 %v1357, %v1345
    %v2498 = vpack.c.b16 %v1358, %v1346
    %v2499 = vpack.c.b16 %v1359, %v1347
    %v2500 = vpack.c.b16 %v1360, %v1348
    %v2501 = vpack.c.b16 %v1373, %v1361
    %v2502 = vpack.c.b16 %v1374, %v1362
    %v2503 = vpack.c.b16 %v1375, %v1363
    %v2504 = vpack.c.b16 %v1376, %v1364
    %v2505 = vpack.c.b16 %v1377, %v1365
    %v2506 = vpack.c.b16 %v1378, %v1366
    %v2507 = vpack.c.b16 %v1379, %v1367
    %v2508 = vpack.c.b16 %v1380, %v1368
    %v2509 = vpack.c.b16 %v1381, %v1369
    %v2510 = vpack.c.b16 %v1382, %v1370
    %v2511 = vpack.c.b16 %v1383, %v1371
    %v2512 = vpack.c.b16 %v1384, %v1372
    %v2513 = vpack.c.b16 %v1397, %v1385
    %v2514 = vpack.c.b16 %v1398, %v1386
    %v2515 = vpack.c.b16 %v1399, %v1387
    %v2516 = vpack.c.b16 %v1400, %v1388
    %v2517 = vpack.c.b16 %v1401, %v1389
    %v2518 = vpack.c.b16 %v1402, %v1390
    %v2519 = vpack.c.b16 %v1403, %v1391
    %v2520 = vpack.c.b16 %v1404, %v1392
    %v2521 = vpack.c.b16 %v1405, %v1393
    %v2522 = vpack.c.b16 %v1406, %v1394
    %v2523 = vpack.c.b16 %v1407, %v1395
    %v2524 = vpack.c.b16 %v1408, %v1396
    %v2525 = vpack.c.b16 %v1421, %v1409
    %v2526 = vpack.c.b16 %v1422, %v1410
    %v2527 = vpack.c.b16 %v1423, %v1411
    %v2528 = vpack.c.b16 %v1424, %v1412
    %v2529 = vpack.c.b16 %v1425, %v1413
    %v2530 = vpack.c.b16 %v1426, %v1414
    %v2531 = vpack.c.b16 %v1427, %v1415
    %v2532 = vpack.c.b16 %v1428, %v1416
    %v2533 = vpack.c.b16 %v1429, %v1417
    %v2534 = vpack.c.b16 %v1430, %v1418
    %v2535 = vpack.c.b16 %v1431, %v1419
    %v2536 = vpack.c.b16 %v1432, %v1420
    %v2537 = vpack.c.b16 %v1445, %v1433
    %v2538 = vpack.c.b16 %v1446, %v1434
    %v2539 = vpack.c.b16 %v1447, %v1435
    %v2540 = vpack.c.b16 %v1448, %v1436
    %v2541 = vpack.c.b16 %v1449, %v1437
    %v2542 = vpack.c.b16 %v1450, %v1438
    %v2543 = vpack.c.b16 %v1451, %v1439
    %v2544 = vpack.c.b16 %v1452, %v1440
    %v2545 = vpack.c.b16 %v1453, %v1441
    %v2546 = vpack.c.b16 %v1454, %v1442
    %v2547 = vpack.c.b16 %v1455, %v1443
    %v2548 = vpack.c.b16 %v1456, %v1444
    %v2549 = vpack.c.b16 %v1469, %v1457
    %v2550 = vpack.c.b16 %v1470, %v1458
    %v2551 = vpack.c.b16 %v1471, %v1459
    %v2552 = vpack.c.b16 %v1472, %v1460
    %v2553 = vpack.c.b16 %v1473, %v1461
    %v2554 = vpack.c.b16 %v1474, %v1462
    %v2555 = vpack.c.b16 %v1475, %v1463
    %v2556 = vpack.c.b16 %v1476, %v1464
    %v2557 = vpack.c.b16 %v1477, %v1465
    %v2558 = vpack.c.b16 %v1478, %v1466
    %v2559 = vpack.c.b16 %v1479, %v1467
    %v2560 = vpack.c.b16 %v1480, %v1468
    %v2561 = vpack.c.b16 %v1493, %v1481
    %v2562 = vpack.c.b16 %v1494, %v1482
    %v2563 = vpack.c.b16 %v1495, %v1483
    %v2564 = vpack.c.b16 %v1496, %v1484
    %v2565 = vpack.c.b16 %v1497, %v1485
    %v2566 = vpack.c.b16 %v1498, %v1486
    %v2567 = vpack.c.b16 %v1499, %v1487
    %v2568 = vpack.c.b16 %v1500, %v1488
    %v2569 = vpack.c.b16 %v1501, %v1489
    %v2570 = vpack.c.b16 %v1502, %v1490
    %v2571 = vpack.c.b16 %v1503, %v1491
    %v2572 = vpack.c.b16 %v1504, %v1492
    %v2573 = vpack.c.b16 %v1517, %v1505
    %v2574 = vpack.c.b16 %v1518, %v1506
    %v2575 = vpack.c.b16 %v1519, %v1507
    %v2576 = vpack.c.b16 %v1520, %v1508
    %v2577 = vpack.c.b16 %v1521, %v1509
    %v2578 = vpack.c.b16 %v1522, %v1510
    %v2579 = vpack.c.b16 %v1523, %v1511
    %v2580 = vpack.c.b16 %v1524, %v1512
    %v2581 = vpack.c.b16 %v1525, %v1513
    %v2582 = vpack.c.b16 %v1526, %v1514
    %v2583 = vpack.c.b16 %v1527, %v1515
    %v2584 = vpack.c.b16 %v1528, %v1516
    %v2585 = vpack.c.b16 %v1541, %v1529
    %v2586 = vpack.c.b16 %v1542, %v1530
    %v2587 = vpack.c.b16 %v1543, %v1531
    %v2588 = vpack.c.b16 %v1544, %v1532
    %v2589 = vpack.c.b16 %v1545, %v1533
    %v2590 = vpack.c.b16 %v1546, %v1534
    %v2591 = vpack.c.b16 %v1547, %v1535
    %v2592 = vpack.c.b16 %v1548, %v1536
    %v2593 = vpack.c.b16 %v1549, %v1537
    %v2594 = vpack.c.b16 %v1550, %v1538
    %v2595 = vpack.c.b16 %v1551, %v1539
    %v2596 = vpack.c.b16 %v1552, %v1540
    %v2597 = vpack.c.b16 %v1565, %v1553
    %v2598 = vpack.c.b16 %v1566, %v1554
    %v2599 = vpack.c.b16 %v1567, %v1555
    %v2600 = vpack.c.b16 %v1568, %v1556
    %v2601 = vpack.c.b16 %v1569, %v1557
    %v2602 = vpack.c.b16 %v1570, %v1558
    %v2603 = vpack.c.b16 %v1571, %v1559
    %v2604 = vpack.c.b16 %v1572, %v1560
    %v2605 = vpack.c.b16 %v1573, %v1561
    %v2606 = vpack.c.b16 %v1574, %v1562
    %v2607 = vpack.c.b16 %v1575, %v1563
    %v2608 = vpack.c.b16 %v1576, %v1564
    %v2609 = vpack.c.b16 %v1589, %v1577
    %v2610 = vpack.c.b16 %v1590, %v1578
    %v2611 = vpack.c.b16 %v1591, %v1579
    %v2612 = vpack.c.b16 %v1592, %v1580
    %v2613 = vpack.c.b16 %v1593, %v1581
    %v2614 = vpack.c.b16 %v1594, %v1582
    %v2615 = vpack.c.b16 %v1595, %v1583
    %v2616 = vpack.c.b16 %v1596, %v1584
    %v2617 = vpack.c.b16 %v1597, %v1585
    %v2618 = vpack.c.b16 %v1598, %v1586
    %v2619 = vpack.c.b16 %v1599, %v1587
    %v2620 = vpack.c.b16 %v1600, %v1588
    %v2621 = vpack.c.b16 %v1613, %v1601
    %v2622 = vpack.c.b16 %v1614, %v1602
    %v2623 = vpack.c.b16 %v1615, %v1603
    %v2624 = vpack.c.b16 %v1616, %v1604
    %v2625 = vpack.c.b16 %v1617, %v1605
    %v2626 = vpack.c.b16 %v1618, %v1606
    %v2627 = vpack.c.b16 %v1619, %v1607
    %v2628 = vpack.c.b16 %v1620, %v1608
    %v2629 = vpack.c.b16 %v1621, %v1609
    %v2630 = vpack.c.b16 %v1622, %v1610
    %v2631 = vpack.c.b16 %v1623, %v1611
    %v2632 = vpack.c.b16 %v1624, %v1612
    %v2633 = vpack.c.b16 %v1637, %v1625
    %v2634 = vpack.c.b16 %v1638, %v1626
    %v2635 = vpack.c.b16 %v1639, %v1627
    %v2636 = vpack.c.b16 %v1640, %v1628
    %v2637 = vpack.c.b16 %v1641, %v1629
    %v2638 = vpack.c.b16 %v1642, %v1630
    %v2639 = vpack.c.b16 %v1643, %v1631
    %v2640 = vpack.c.b16 %v1644, %v1632
    %v2641 = vpack.c.b16 %v1645, %v1633
    %v2642 = vpack.c.b16 %v1646, %v1634
    %v2643 = vpack.c.b16 %v1647, %v1635
    %v2644 = vpack.c.b16 %v1648, %v1636
    %v2645 = vpack.c.b16 %v1661, %v1649
    %v2646 = vpack.c.b16 %v1662, %v1650
    %v2647 = vpack.c.b16 %v1663, %v1651
    %v2648 = vpack.c.b16 %v1664, %v1652
    %v2649 = vpack.c.b16 %v1665, %v1653
    %v2650 = vpack.c.b16 %v1666, %v1654
    %v2651 = vpack.c.b16 %v1667, %v1655
    %v2652 = vpack.c.b16 %v1668, %v1656
    %v2653 = vpack.c.b16 %v1669, %v1657
    %v2654 = vpack.c.b16 %v1670, %v1658
    %v2655 = vpack.c.b16 %v1671, %v1659
    %v2656 = vpack.c.b16 %v1672, %v1660
    %v2657 = vpack.c.b16 %v1685, %v1673
    %v2658 = vpack.c.b16 %v1686, %v1674
    %v2659 = vpack.c.b16 %v1687, %v1675
    %v2660 = vpack.c.b16 %v1688, %v1676
    %v2661 = vpack.c.b16 %v1689, %v1677
    %v2662 = vpack.c.b16 %v1690, %v1678
    %v2663 = vpack.c.b16 %v1691, %v1679
    %v2664 = vpack.c.b16 %v1692, %v1680
    %v2665 = vpack.c.b16 %v1693, %v1681
    %v2666 = vpack.c.b16 %v1694, %v1682
    %v2667 = vpack.c.b16 %v1695, %v1683
    %v2668 = vpack.c.b16 %v1696, %v1684
    %v2669 = vpack.c.b16 %v1709, %v1697
    %v2670 = vpack.c.b16 %v1710, %v1698
    %v2671 = vpack.c.b16 %v1711, %v1699
    %v2672 = vpack.c.b16 %v1712, %v1700
    %v2673 = vpack.c.b16 %v1713, %v1701
    %v2674 = vpack.c.b16 %v1714, %v1702
    %v2675 = vpack.c.b16 %v1715, %v1703
    %v2676 = vpack.c.b16 %v1716, %v1704
    %v2677 = vpack.c.b16 %v1717, %v1705
    %v2678 = vpack.c.b16 %v1718, %v1706
    %v2679 = vpack.c.b16 %v1719, %v1707
    %v2680 = vpack.c.b16 %v1720, %v1708
    %v2681 = vpack.c.b16 %v1733, %v1721
    %v2682 = vpack.c.b16 %v1734, %v1722
    %v2683 = vpack.c.b16 %v1735, %v1723
    %v2684 = vpack.c.b16 %v1736, %v1724
    %v2685 = vpack.c.b16 %v1737, %v1725
    %v2686 = vpack.c.b16 %v1738, %v1726
    %v2687 = vpack.c.b16 %v1739, %v1727
    %v2688 = vpack.c.b16 %v1740, %v1728
    %v2689 = vpack.c.b16 %v1741, %v1729
    %v2690 = vpack.c.b16 %v1742, %v1730
    %v2691 = vpack.c.b16 %v1743, %v1731
    %v2692 = vpack.c.b16 %v1744, %v1732
    %v2693 = vpack.c.b16 %v1757, %v1745
    %v2694 = vpack.c.b16 %v1758, %v1746
    %v2695 = vpack.c.b16 %v1759, %v1747
    %v2696 = vpack.c.b16 %v1760, %v1748
    %v2697 = vpack.c.b16 %v1761, %v1749
    %v2698 = vpack.c.b16 %v1762, %v1750
    %v2699 = vpack.c.b16 %v1763, %v1751
    %v2700 = vpack.c.b16 %v1764, %v1752
    %v2701 = vpack.c.b16 %v1765, %v1753
    %v2702 = vpack.c.b16 %v1766, %v1754
    %v2703 = vpack.c.b16 %v1767, %v1755
    %v2704 = vpack.c.b16 %v1768, %v1756
    %v2705 = vpack.c.b16 %v1781, %v1769
    %v2706 = vpack.c.b16 %v1782, %v1770
    %v2707 = vpack.c.b16 %v1783, %v1771
    %v2708 = vpack.c.b16 %v1784, %v1772
    %v2709 = vpack.c.b16 %v1785, %v1773
    %v2710 = vpack.c.b16 %v1786, %v1774
    %v2711 = vpack.c.b16 %v1787, %v1775
    %v2712 = vpack.c.b16 %v1788, %v1776
    %v2713 = vpack.c.b16 %v1789, %v1777
    %v2714 = vpack.c.b16 %v1790, %v1778
    %v2715 = vpack.c.b16 %v1791, %v1779
    %v2716 = vpack.c.b16 %v1792, %v1780
    %v2717 = vpack.c.b16 %v1805, %v1793
    %v2718 = vpack.c.b16 %v1806, %v1794
    %v2719 = vpack.c.b16 %v1807, %v1795
    %v2720 = vpack.c.b16 %v1808, %v1796
    %v2721 = vpack.c.b16 %v1809, %v1797
    %v2722 = vpack.c.b16 %v1810, %v1798
    %v2723 = vpack.c.b16 %v1811, %v1799
    %v2724 = vpack.c.b16 %v1812, %v1800
    %v2725 = vpack.c.b16 %v1813, %v1801
    %v2726 = vpack.c.b16 %v1814, %v1802
    %v2727 = vpack.c.b16 %v1815, %v1803
    %v2728 = vpack.c.b16 %v1816, %v1804
    %v2729 = vpack.c.b16 %v1829, %v1817
    %v2730 = vpack.c.b16 %v1830, %v1818
    %v2731 = vpack.c.b16 %v1831, %v1819
    %v2732 = vpack.c.b16 %v1832, %v1820
    %v2733 = vpack.c.b16 %v1833, %v1821
    %v2734 = vpack.c.b16 %v1834, %v1822
    %v2735 = vpack.c.b16 %v1835, %v1823
    %v2736 = vpack.c.b16 %v1836, %v1824
    %v2737 = vpack.c.b16 %v1837, %v1825
    %v2738 = vpack.c.b16 %v1838, %v1826
    %v2739 = vpack.c.b16 %v1839, %v1827
    %v2740 = vpack.c.b16 %v1840, %v1828
    %v2741 = vpack.c.b16 %v1853, %v1841
    %v2742 = vpack.c.b16 %v1854, %v1842
    %v2743 = vpack.c.b16 %v1855, %v1843
    %v2744 = vpack.c.b16 %v1856, %v1844
    %v2745 = vpack.c.b16 %v1857, %v1845
    %v2746 = vpack.c.b16 %v1858, %v1846
    %v2747 = vpack.c.b16 %v1859, %v1847
    %v2748 = vpack.c.b16 %v1860, %v1848
    %v2749 = vpack.c.b16 %v1861, %v1849
    %v2750 = vpack.c.b16 %v1862, %v1850
    %v2751 = vpack.c.b16 %v1863, %v1851
    %v2752 = vpack.c.b16 %v1864, %v1852
    %v2753 = vpack.c.b16 %v1877, %v1865
    %v2754 = vpack.c.b16 %v1878, %v1866
    %v2755 = vpack.c.b16 %v1879, %v1867
    %v2756 = vpack.c.b16 %v1880, %v1868
    %v2757 = vpack.c.b16 %v1881, %v1869
    %v2758 = vpack.c.b16 %v1882, %v1870
    %v2759 = vpack.c.b16 %v1883, %v1871
    %v2760 = vpack.c.b16 %v1884, %v1872
    %v2761 = vpack.c.b16 %v1885, %v1873
    %v2762 = vpack.c.b16 %v1886, %v1874
    %v2763 = vpack.c.b16 %v1887, %v1875
    %v2764 = vpack.c.b16 %v1888, %v1876
    %v2765 = vpack.c.b16 %v1901, %v1889
    %v2766 = vpack.c.b16 %v1902, %v1890
    %v2767 = vpack.c.b16 %v1903, %v1891
    %v2768 = vpack.c.b16 %v1904, %v1892
    %v2769 = vpack.c.b16 %v1905, %v1893
    %v2770 = vpack.c.b16 %v1906, %v1894
    %v2771 = vpack.c.b16 %v1907, %v1895
    %v2772 = vpack.c.b16 %v1908, %v1896
    %v2773 = vpack.c.b16 %v1909, %v1897
    %v2774 = vpack.c.b16 %v1910, %v1898
    %v2775 = vpack.c.b16 %v1911, %v1899
    %v2776 = vpack.c.b16 %v1912, %v1900
    %v2777 = vpack.c.b16 %v1925, %v1913
    %v2778 = vpack.c.b16 %v1926, %v1914
    %v2779 = vpack.c.b16 %v1927, %v1915
    %v2780 = vpack.c.b16 %v1928, %v1916
    %v2781 = vpack.c.b16 %v1929, %v1917
    %v2782 = vpack.c.b16 %v1930, %v1918
    %v2783 = vpack.c.b16 %v1931, %v1919
    %v2784 = vpack.c.b16 %v1932, %v1920
    %v2785 = vpack.c.b16 %v1933, %v1921
    %v2786 = vpack.c.b16 %v1934, %v1922
    %v2787 = vpack.c.b16 %v1935, %v1923
    %v2788 = vpack.c.b16 %v1936, %v1924
    %v2789 = vpack.c.b16 %v1949, %v1937
    %v2790 = vpack.c.b16 %v1950, %v1938
    %v2791 = vpack.c.b16 %v1951, %v1939
    %v2792 = vpack.c.b16 %v1952, %v1940
    %v2793 = vpack.c.b16 %v1953, %v1941
    %v2794 = vpack.c.b16 %v1954, %v1942
    %v2795 = vpack.c.b16 %v1955, %v1943
    %v2796 = vpack.c.b16 %v1956, %v1944
    %v2797 = vpack.c.b16 %v1957, %v1945
    %v2798 = vpack.c.b16 %v1958, %v1946
    %v2799 = vpack.c.b16 %v1959, %v1947
    %v2800 = vpack.c.b16 %v1960, %v1948
    %v2801 = vpack.c.b16 %v1973, %v1961
    %v2802 = vpack.c.b16 %v1974, %v1962
    %v2803 = vpack.c.b16 %v1975, %v1963
    %v2804 = vpack.c.b16 %v1976, %v1964
    %v2805 = vpack.c.b16 %v1977, %v1965
    %v2806 = vpack.c.b16 %v1978, %v1966
    %v2807 = vpack.c.b16 %v1979, %v1967
    %v2808 = vpack.c.b16 %v1980, %v1968
    %v2809 = vpack.c.b16 %v1981, %v1969
    %v2810 = vpack.c.b16 %v1982, %v1970
    %v2811 = vpack.c.b16 %v1983, %v1971
    %v2812 = vpack.c.b16 %v1984, %v1972
    %v2813 = vpack.c.b16 %v1997, %v1985
    %v2814 = vpack.c.b16 %v1998, %v1986
    %v2815 = vpack.c.b16 %v1999, %v1987
    %v2816 = vpack.c.b16 %v2000, %v1988
    %v2817 = vpack.c.b16 %v2001, %v1989
    %v2818 = vpack.c.b16 %v2002, %v1990
    %v2819 = vpack.c.b16 %v2003, %v1991
    %v2820 = vpack.c.b16 %v2004, %v1992
    %v2821 = vpack.c.b16 %v2005, %v1993
    %v2822 = vpack.c.b16 %v2006, %v1994
    %v2823 = vpack.c.b16 %v2007, %v1995
    %v2824 = vpack.c.b16 %v2008, %v1996
    %v2825 = vpack.c.b16 %v2021, %v2009
    %v2826 = vpack.c.b16 %v2022, %v2010
    %v2827 = vpack.c.b16 %v2023, %v2011
    %v2828 = vpack.c.b16 %v2024, %v2012
    %v2829 = vpack.c.b16 %v2025, %v2013
    %v2830 = vpack.c.b16 %v2026, %v2014
    %v2831 = vpack.c.b16 %v2027, %v2015
    %v2832 = vpack.c.b16 %v2028, %v2016
    %v2833 = vpack.c.b16 %v2029, %v2017
    %v2834 = vpack.c.b16 %v2030, %v2018
    %v2835 = vpack.c.b16 %v2031, %v2019
    %v2836 = vpack.c.b16 %v2032, %v2020
    %v2837 = vpack.c.b16 %v2045, %v2033
    %v2838 = vpack.c.b16 %v2046, %v2034
    %v2839 = vpack.c.b16 %v2047, %v2035
    %v2840 = vpack.c.b16 %v2048, %v2036
    %v2841 = vpack.c.b16 %v2049, %v2037
    %v2842 = vpack.c.b16 %v2050, %v2038
    %v2843 = vpack.c.b16 %v2051, %v2039
    %v2844 = vpack.c.b16 %v2052, %v2040
    %v2845 = vpack.c.b16 %v2053, %v2041
    %v2846 = vpack.c.b16 %v2054, %v2042
    %v2847 = vpack.c.b16 %v2055, %v2043
    %v2848 = vpack.c.b16 %v2056, %v2044
    %v2849 = vpack.c.b16 %v2069, %v2057
    %v2850 = vpack.c.b16 %v2070, %v2058
    %v2851 = vpack.c.b16 %v2071, %v2059
    %v2852 = vpack.c.b16 %v2072, %v2060
    %v2853 = vpack.c.b16 %v2073, %v2061
    %v2854 = vpack.c.b16 %v2074, %v2062
    %v2855 = vpack.c.b16 %v2075, %v2063
    %v2856 = vpack.c.b16 %v2076, %v2064
    %v2857 = vpack.c.b16 %v2077, %v2065
    %v2858 = vpack.c.b16 %v2078, %v2066
    %v2859 = vpack.c.b16 %v2079, %v2067
    %v2860 = vpack.c.b16 %v2080, %v2068
    %v2861 = vpack.c.b16 %v2093, %v2081
    %v2862 = vpack.c.b16 %v2094, %v2082
    %v2863 = vpack.c.b16 %v2095, %v2083
    %v2864 = vpack.c.b16 %v2096, %v2084
    %v2865 = vpack.c.b16 %v2097, %v2085
    %v2866 = vpack.c.b16 %v2098, %v2086
    %v2867 = vpack.c.b16 %v2099, %v2087
    %v2868 = vpack.c.b16 %v2100, %v2088
    %v2869 = vpack.c.b16 %v2101, %v2089
    %v2870 = vpack.c.b16 %v2102, %v2090
    %v2871 = vpack.c.b16 %v2103, %v2091
    %v2872 = vpack.c.b16 %v2104, %v2092
    %v2873 = vpack.c.b16 %v2117, %v2105
    %v2874 = vpack.c.b16 %v2118, %v2106
    %v2875 = vpack.c.b16 %v2119, %v2107
    %v2876 = vpack.c.b16 %v2120, %v2108
    %v2877 = vpack.c.b16 %v2121, %v2109
    %v2878 = vpack.c.b16 %v2122, %v2110
    %v2879 = vpack.c.b16 %v2123, %v2111
    %v2880 = vpack.c.b16 %v2124, %v2112
    %v2881 = vpack.c.b16 %v2125, %v2113
    %v2882 = vpack.c.b16 %v2126, %v2114
    %v2883 = vpack.c.b16 %v2127, %v2115
    %v2884 = vpack.c.b16 %v2128, %v2116
    %v2885 = vpack.c.b16 %v2141, %v2129
    %v2886 = vpack.c.b16 %v2142, %v2130
    %v2887 = vpack.c.b16 %v2143, %v2131
    %v2888 = vpack.c.b16 %v2144, %v2132
    %v2889 = vpack.c.b16 %v2145, %v2133
    %v2890 = vpack.c.b16 %v2146, %v2134
    %v2891 = vpack.c.b16 %v2147, %v2135
    %v2892 = vpack.c.b16 %v2148, %v2136
    %v2893 = vpack.c.b16 %v2149, %v2137
    %v2894 = vpack.c.b16 %v2150, %v2138
    %v2895 = vpack.c.b16 %v2151, %v2139
    %v2896 = vpack.c.b16 %v2152, %v2140
    %v2897 = vpack.c.b16 %v2165, %v2153
    %v2898 = vpack.c.b16 %v2166, %v2154
    %v2899 = vpack.c.b16 %v2167, %v2155
    %v2900 = vpack.c.b16 %v2168, %v2156
    %v2901 = vpack.c.b16 %v2169, %v2157
    %v2902 = vpack.c.b16 %v2170, %v2158
    %v2903 = vpack.c.b16 %v2171, %v2159
    %v2904 = vpack.c.b16 %v2172, %v2160
    %v2905 = vpack.c.b16 %v2173, %v2161
    %v2906 = vpack.c.b16 %v2174, %v2162
    %v2907 = vpack.c.b16 %v2175, %v2163
    %v2908 = vpack.c.b16 %v2176, %v2164
    %v2909 = vpack.c.b16 %v2189, %v2177
    %v2910 = vpack.c.b16 %v2190, %v2178
    %v2911 = vpack.c.b16 %v2191, %v2179
    %v2912 = vpack.c.b16 %v2192, %v2180
    %v2913 = vpack.c.b16 %v2193, %v2181
    %v2914 = vpack.c.b16 %v2194, %v2182
    %v2915 = vpack.c.b16 %v2195, %v2183
    %v2916 = vpack.c.b16 %v2196, %v2184
    %v2917 = vpack.c.b16 %v2197, %v2185
    %v2918 = vpack.c.b16 %v2198, %v2186
    %v2919 = vpack.c.b16 %v2199, %v2187
    %v2920 = vpack.c.b16 %v2200, %v2188
    %v2921 = vpack.c.b16 %v2213, %v2201
    %v2922 = vpack.c.b16 %v2214, %v2202
    %v2923 = vpack.c.b16 %v2215, %v2203
    %v2924 = vpack.c.b16 %v2216, %v2204
    %v2925 = vpack.c.b16 %v2217, %v2205
    %v2926 = vpack.c.b16 %v2218, %v2206
    %v2927 = vpack.c.b16 %v2219, %v2207
    %v2928 = vpack.c.b16 %v2220, %v2208
    %v2929 = vpack.c.b16 %v2221, %v2209
    %v2930 = vpack.c.b16 %v2222, %v2210
    %v2931 = vpack.c.b16 %v2223, %v2211
    %v2932 = vpack.c.b16 %v2224, %v2212
    %v2933 = vpack.c.b16 %v2237, %v2225
    %v2934 = vpack.c.b16 %v2238, %v2226
    %v2935 = vpack.c.b16 %v2239, %v2227
    %v2936 = vpack.c.b16 %v2240, %v2228
    %v2937 = vpack.c.b16 %v2241, %v2229
    %v2938 = vpack.c.b16 %v2242, %v2230
    %v2939 = vpack.c.b16 %v2243, %v2231
    %v2940 = vpack.c.b16 %v2244, %v2232
    %v2941 = vpack.c.b16 %v2245, %v2233
    %v2942 = vpack.c.b16 %v2246, %v2234
    %v2943 = vpack.c.b16 %v2247, %v2235
    %v2944 = vpack.c.b16 %v2248, %v2236
    %v2945 = vpack.c.b16 %v2261, %v2249
    %v2946 = vpack.c.b16 %v2262, %v2250
    %v2947 = vpack.c.b16 %v2263, %v2251
    %v2948 = vpack.c.b16 %v2264, %v2252
    %v2949 = vpack.c.b16 %v2265, %v2253
    %v2950 = vpack.c.b16 %v2266, %v2254
    %v2951 = vpack.c.b16 %v2267, %v2255
    %v2952 = vpack.c.b16 %v2268, %v2256
    %v2953 = vpack.c.b16 %v2269, %v2257
    %v2954 = vpack.c.b16 %v2270, %v2258
    %v2955 = vpack.c.b16 %v2271, %v2259
    %v2956 = vpack.c.b16 %v2272, %v2260
    %v2957 = vpack.c.b16 %v2285, %v2273
    %v2958 = vpack.c.b16 %v2286, %v2274
    %v2959 = vpack.c.b16 %v2287, %v2275
    %v2960 = vpack.c.b16 %v2288, %v2276
    %v2961 = vpack.c.b16 %v2289, %v2277
    %v2962 = vpack.c.b16 %v2290, %v2278
    %v2963 = vpack.c.b16 %v2291, %v2279
    %v2964 = vpack.c.b16 %v2292, %v2280
    %v2965 = vpack.c.b16 %v2293, %v2281
    %v2966 = vpack.c.b16 %v2294, %v2282
    %v2967 = vpack.c.b16 %v2295, %v2283
    %v2968 = vpack.c.b16 %v2296, %v2284
    %v2969 = vpack.c.b16 %v2309, %v2297
    %v2970 = vpack.c.b16 %v2310, %v2298
    %v2971 = vpack.c.b16 %v2311, %v2299
    %v2972 = vpack.c.b16 %v2312, %v2300
    %v2973 = vpack.c.b16 %v2313, %v2301
    %v2974 = vpack.c.b16 %v2314, %v2302
    %v2975 = vpack.c.b16 %v2315, %v2303
    %v2976 = vpack.c.b16 %v2316, %v2304
    %v2977 = vpack.c.b16 %v2317, %v2305
    %v2978 = vpack.c.b16 %v2318, %v2306
    %v2979 = vpack.c.b16 %v2319, %v2307
    %v2980 = vpack.c.b16 %v2320, %v2308
    %v2981 = vpack.c.b16 %v2333, %v2321
    %v2982 = vpack.c.b16 %v2334, %v2322
    %v2983 = vpack.c.b16 %v2335, %v2323
    %v2984 = vpack.c.b16 %v2336, %v2324
    %v2985 = vpack.c.b16 %v2337, %v2325
    %v2986 = vpack.c.b16 %v2338, %v2326
    %v2987 = vpack.c.b16 %v2339, %v2327
    %v2988 = vpack.c.b16 %v2340, %v2328
    %v2989 = vpack.c.b16 %v2341, %v2329
    %v2990 = vpack.c.b16 %v2342, %v2330
    %v2991 = vpack.c.b16 %v2343, %v2331
    %v2992 = vpack.c.b16 %v2344, %v2332
    %v2993 = vpack.c.b16 %v2357, %v2345
    %v2994 = vpack.c.b16 %v2358, %v2346
    %v2995 = vpack.c.b16 %v2359, %v2347
    %v2996 = vpack.c.b16 %v2360, %v2348
    %v2997 = vpack.c.b16 %v2361, %v2349
    %v2998 = vpack.c.b16 %v2362, %v2350
    %v2999 = vpack.c.b16 %v2363, %v2351
    %v3000 = vpack.c.b16 %v2364, %v2352
    %v3001 = vpack.c.b16 %v2365, %v2353
    %v3002 = vpack.c.b16 %v2366, %v2354
    %v3003 = vpack.c.b16 %v2367, %v2355
    %v3004 = vpack.c.b16 %v2368, %v2356
    %v3005 = vpack.c.b16 %v2381, %v2369
    %v3006 = vpack.c.b16 %v2382, %v2370
    %v3007 = vpack.c.b16 %v2383, %v2371
    %v3008 = vpack.c.b16 %v2384, %v2372
    %v3009 = vpack.c.b16 %v2385, %v2373
    %v3010 = vpack.c.b16 %v2386, %v2374
    %v3011 = vpack.c.b16 %v2387, %v2375
    %v3012 = vpack.c.b16 %v2388, %v2376
    %v3013 = vpack.c.b16 %v2389, %v2377
    %v3014 = vpack.c.b16 %v2390, %v2378
    %v3015 = vpack.c.b16 %v2391, %v2379
    %v3016 = vpack.c.b16 %v2392, %v2380
    %v3017 = vpack.c.b16 %v2405, %v2393
    %v3018 = vpack.c.b16 %v2406, %v2394
    %v3019 = vpack.c.b16 %v2407, %v2395
    %v3020 = vpack.c.b16 %v2408, %v2396
    %v3021 = vpack.c.b16 %v2409, %v2397
    %v3022 = vpack.c.b16 %v2410, %v2398
    %v3023 = vpack.c.b16 %v2411, %v2399
    %v3024 = vpack.c.b16 %v2412, %v2400
    %v3025 = vpack.c.b16 %v2413, %v2401
    %v3026 = vpack.c.b16 %v2414, %v2402
    %v3027 = vpack.c.b16 %v2415, %v2403
    %v3028 = vpack.c.b16 %v2416, %v2404
    %v3029 = vpack.c.b16 %v2429, %v2417
    %v3030 = vpack.c.b16 %v2430, %v2418
    %v3031 = vpack.c.b16 %v2431, %v2419
    %v3032 = vpack.c.b16 %v2432, %v2420
    %v3033 = vpack.c.b16 %v2433, %v2421
    %v3034 = vpack.c.b16 %v2434, %v2422
    %v3035 = vpack.c.b16 %v2435, %v2423
    %v3036 = vpack.c.b16 %v2436, %v2424
    %v3037 = vpack.c.b16 %v2437, %v2425
    %v3038 = vpack.c.b16 %v2438, %v2426
    %v3039 = vpack.c.b16 %v2439, %v2427
    %v3040 = vpack.c.b16 %v2440, %v2428
    %v3041 = vpack.c.b16 %v2453, %v2441
    %v3042 = vpack.c.b16 %v2454, %v2442
    %v3043 = vpack.c.b16 %v2455, %v2443
    %v3044 = vpack.c.b16 %v2456, %v2444
    %v3045 = vpack.c.b16 %v2457, %v2445
    %v3046 = vpack.c.b16 %v2458, %v2446
    %v3047 = vpack.c.b16 %v2459, %v2447
    %v3048 = vpack.c.b16 %v2460, %v2448
    %v3049 = vpack.c.b16 %v2461, %v2449
    %v3050 = vpack.c.b16 %v2462, %v2450
    %v3051 = vpack.c.b16 %v2463, %v2451
    %v3052 = vpack.c.b16 %v2464, %v2452
    %v3053 = vpack.c.b16 %v2477, %v2465
    %v3054 = vpack.c.b16 %v2478, %v2466
    %v3055 = vpack.c.b16 %v2479, %v2467
    %v3056 = vpack.c.b16 %v2480, %v2468
    %v3057 = vpack.c.b16 %v2481, %v2469
    %v3058 = vpack.c.b16 %v2482, %v2470
    %v3059 = vpack.c.b16 %v2483, %v2471
    %v3060 = vpack.c.b16 %v2484, %v2472
    %v3061 = vpack.c.b16 %v2485, %v2473
    %v3062 = vpack.c.b16 %v2486, %v2474
    %v3063 = vpack.c.b16 %v2487, %v2475
    %v3064 = vpack.c.b16 %v2488, %v2476
    %3641 = vmatprep.subr.bf16.mxu0 %v2574
    %3642 = vmatpush1.bf16.msra.mxu0 %v2573
    %3643 = vmatprep.subr.bf16.mxu0 %v2562
    %3644 = vmatpush1.bf16.msra.mxu0 %v2561
    %3645 = vmatprep.subr.bf16.mxu0 %v2550
    %3646 = vmatpush1.bf16.msra.mxu0 %v2549
    %3647 = vmatprep.subr.bf16.mxu0 %v2538
    %3648 = vmatpush1.bf16.msra.mxu0 %v2537
    %3649 = vmatprep.subr.bf16.mxu0 %v2526
    %3650 = vmatpush1.bf16.msra.mxu0 %v2525
    %3651 = vmatprep.subr.bf16.mxu0 %v2514
    %3652 = vmatpush1.bf16.msra.mxu0 %v2513
    %3653 = vmatprep.subr.bf16.mxu0 %v2502
    %3654 = vmatpush1.bf16.msra.mxu0 %v2501
    %3655 = vmatprep.subr.bf16.mxu0 %v2490
    %3656 = vmatpush1.bf16.msra.mxu0 %v2489
    %3657 = vmatprep.subr.bf16.mxu0 %v2670
    %3658 = vmatpush2.bf16.msra.mxu0 %v2669
    %3659 = vmatprep.subr.bf16.mxu0 %v2658
    %3660 = vmatpush2.bf16.msra.mxu0 %v2657
    %3661 = vmatprep.subr.bf16.mxu0 %v2646
    %3662 = vmatpush2.bf16.msra.mxu0 %v2645
    %3663 = vmatprep.subr.bf16.mxu0 %v2634
    %3664 = vmatpush2.bf16.msra.mxu0 %v2633
    %3665 = vmatprep.subr.bf16.mxu0 %v2622
    %3666 = vmatpush2.bf16.msra.mxu0 %v2621
    %3667 = vmatprep.subr.bf16.mxu0 %v2610
    %3668 = vmatpush2.bf16.msra.mxu0 %v2609
    %3669 = vmatprep.subr.bf16.mxu0 %v2598
    %3670 = vmatpush2.bf16.msra.mxu0 %v2597
    %3671 = vmatprep.subr.bf16.mxu0 %v2586
    %3672 = vmatpush2.bf16.msra.mxu0 %v2585
    %3673 = vmatprep.mubr.bf16.mxu0 %v750
    %3674 = vmatmul.mubr.bf16.gmra.mxu0 %v749
    %v3675 = vpop.f32.mrf.mxu0
    %v3676 = vadd.f32 %v674, %v3675
    %v3677 = vpop.f32.mrf.mxu0
    %v3678 = vadd.f32 %v678, %v3677
    %v3679 = vpop.f32.mrf.mxu0
    %v3680 = vadd.f32 %v674, %v3679
    %v3681 = vpop.f32.mrf.mxu0
    %v3682 = vadd.f32 %v678, %v3681
    %3683 = vdwg.mxu0
    %3684 = vmatprep.subr.bf16.mxu0 %v2766
    %3685 = vmatpush1.bf16.msra.mxu0 %v2765
    %3686 = vmatprep.subr.bf16.mxu0 %v2754
    %3687 = vmatpush1.bf16.msra.mxu0 %v2753
    %3688 = vmatprep.subr.bf16.mxu0 %v2742
    %3689 = vmatpush1.bf16.msra.mxu0 %v2741
    %3690 = vmatprep.subr.bf16.mxu0 %v2730
    %3691 = vmatpush1.bf16.msra.mxu0 %v2729
    %3692 = vmatprep.subr.bf16.mxu0 %v2718
    %3693 = vmatpush1.bf16.msra.mxu0 %v2717
    %3694 = vmatprep.subr.bf16.mxu0 %v2706
    %3695 = vmatpush1.bf16.msra.mxu0 %v2705
    %3696 = vmatprep.subr.bf16.mxu0 %v2694
    %3697 = vmatpush1.bf16.msra.mxu0 %v2693
    %3698 = vmatprep.subr.bf16.mxu0 %v2682
    %3699 = vmatpush1.bf16.msra.mxu0 %v2681
    %3700 = vmatprep.subr.bf16.mxu0 %v2862
    %3701 = vmatpush2.bf16.msra.mxu0 %v2861
    %3702 = vmatprep.subr.bf16.mxu0 %v2850
    %3703 = vmatpush2.bf16.msra.mxu0 %v2849
    %3704 = vmatprep.subr.bf16.mxu0 %v2838
    %3705 = vmatpush2.bf16.msra.mxu0 %v2837
    %3706 = vmatprep.subr.bf16.mxu0 %v2826
    %3707 = vmatpush2.bf16.msra.mxu0 %v2825
    %3708 = vmatprep.subr.bf16.mxu0 %v2814
    %3709 = vmatpush2.bf16.msra.mxu0 %v2813
    %3710 = vmatprep.subr.bf16.mxu0 %v2802
    %3711 = vmatpush2.bf16.msra.mxu0 %v2801
    %3712 = vmatprep.subr.bf16.mxu0 %v2790
    %3713 = vmatpush2.bf16.msra.mxu0 %v2789
    %3714 = vmatprep.subr.bf16.mxu0 %v2778
    %3715 = vmatpush2.bf16.msra.mxu0 %v2777
    %3716 = vmatprep.mubr.bf16.mxu0 %v752
    %3717 = vmatmul.mubr.bf16.gmra.mxu0 %v751
    %v3718 = vpop.f32.mrf.mxu0
    %v3719 = vadd.f32 %v3676, %v3718
    %v3720 = vpop.f32.mrf.mxu0
    %v3721 = vadd.f32 %v3678, %v3720
    %v3722 = vpop.f32.mrf.mxu0
    %v3723 = vadd.f32 %v3680, %v3722
    %v3724 = vpop.f32.mrf.mxu0
    %v3725 = vadd.f32 %v3682, %v3724
    %3726 = vdwg.mxu0
    %3727 = vmatprep.subr.bf16.mxu0 %v2958
    %3728 = vmatpush1.bf16.msra.mxu0 %v2957
    %3729 = vmatprep.subr.bf16.mxu0 %v2946
    %3730 = vmatpush1.bf16.msra.mxu0 %v2945
    %3731 = vmatprep.subr.bf16.mxu0 %v2934
    %3732 = vmatpush1.bf16.msra.mxu0 %v2933
    %3733 = vmatprep.subr.bf16.mxu0 %v2922
    %3734 = vmatpush1.bf16.msra.mxu0 %v2921
    %3735 = vmatprep.subr.bf16.mxu0 %v2910
    %3736 = vmatpush1.bf16.msra.mxu0 %v2909
    %3737 = vmatprep.subr.bf16.mxu0 %v2898
    %3738 = vmatpush1.bf16.msra.mxu0 %v2897
    %3739 = vmatprep.subr.bf16.mxu0 %v2886
    %3740 = vmatpush1.bf16.msra.mxu0 %v2885
    %3741 = vmatprep.subr.bf16.mxu0 %v2874
    %3742 = vmatpush1.bf16.msra.mxu0 %v2873
    %3743 = vmatprep.subr.bf16.mxu0 %v3054
    %3744 = vmatpush2.bf16.msra.mxu0 %v3053
    %3745 = vmatprep.subr.bf16.mxu0 %v3042
    %3746 = vmatpush2.bf16.msra.mxu0 %v3041
    %3747 = vmatprep.subr.bf16.mxu0 %v3030
    %3748 = vmatpush2.bf16.msra.mxu0 %v3029
    %3749 = vmatprep.subr.bf16.mxu0 %v3018
    %3750 = vmatpush2.bf16.msra.mxu0 %v3017
    %3751 = vmatprep.subr.bf16.mxu0 %v3006
    %3752 = vmatpush2.bf16.msra.mxu0 %v3005
    %3753 = vmatprep.subr.bf16.mxu0 %v2994
    %3754 = vmatpush2.bf16.msra.mxu0 %v2993
    %3755 = vmatprep.subr.bf16.mxu0 %v2982
    %3756 = vmatpush2.bf16.msra.mxu0 %v2981
    %3757 = vmatprep.subr.bf16.mxu0 %v2970
    %3758 = vmatpush2.bf16.msra.mxu0 %v2969
    %3759 = vmatprep.mubr.bf16.mxu0 %v754
    %3760 = vmatmul.mubr.bf16.gmra.mxu0 %v753
    %v3761 = vpop.f32.mrf.mxu0
    %v3762 = vadd.f32 %v3719, %v3761
    %v3763 = vpop.f32.mrf.mxu0
    %v3764 = vadd.f32 %v3721, %v3763
    %v3765 = vpop.f32.mrf.mxu0
    %v3766 = vadd.f32 %v3723, %v3765
    %v3767 = vpop.f32.mrf.mxu0
    %v3768 = vadd.f32 %v3725, %v3767
    %3769 = vdwg.mxu0
    %3770 = vmatprep.subr.bf16.mxu0 %v2576
    %3771 = vmatpush1.bf16.msra.mxu0 %v2575
    %3772 = vmatprep.subr.bf16.mxu0 %v2564
    %3773 = vmatpush1.bf16.msra.mxu0 %v2563
    %3774 = vmatprep.subr.bf16.mxu0 %v2552
    %3775 = vmatpush1.bf16.msra.mxu0 %v2551
    %3776 = vmatprep.subr.bf16.mxu0 %v2540
    %3777 = vmatpush1.bf16.msra.mxu0 %v2539
    %3778 = vmatprep.subr.bf16.mxu0 %v2528
    %3779 = vmatpush1.bf16.msra.mxu0 %v2527
    %3780 = vmatprep.subr.bf16.mxu0 %v2516
    %3781 = vmatpush1.bf16.msra.mxu0 %v2515
    %3782 = vmatprep.subr.bf16.mxu0 %v2504
    %3783 = vmatpush1.bf16.msra.mxu0 %v2503
    %3784 = vmatprep.subr.bf16.mxu0 %v2492
    %3785 = vmatpush1.bf16.msra.mxu0 %v2491
    %3786 = vmatprep.subr.bf16.mxu0 %v2672
    %3787 = vmatpush2.bf16.msra.mxu0 %v2671
    %3788 = vmatprep.subr.bf16.mxu0 %v2660
    %3789 = vmatpush2.bf16.msra.mxu0 %v2659
    %3790 = vmatprep.subr.bf16.mxu0 %v2648
    %3791 = vmatpush2.bf16.msra.mxu0 %v2647
    %3792 = vmatprep.subr.bf16.mxu0 %v2636
    %3793 = vmatpush2.bf16.msra.mxu0 %v2635
    %3794 = vmatprep.subr.bf16.mxu0 %v2624
    %3795 = vmatpush2.bf16.msra.mxu0 %v2623
    %3796 = vmatprep.subr.bf16.mxu0 %v2612
    %3797 = vmatpush2.bf16.msra.mxu0 %v2611
    %3798 = vmatprep.subr.bf16.mxu0 %v2600
    %3799 = vmatpush2.bf16.msra.mxu0 %v2599
    %3800 = vmatprep.subr.bf16.mxu0 %v2588
    %3801 = vmatpush2.bf16.msra.mxu0 %v2587
    %3802 = vmatprep.mubr.bf16.mxu0 %v750
    %3803 = vmatmul.mubr.bf16.gmra.mxu0 %v749
    %v3804 = vpop.f32.mrf.mxu0
    %v3805 = vadd.f32 %v682, %v3804
    %v3806 = vpop.f32.mrf.mxu0
    %v3807 = vadd.f32 %v686, %v3806
    %v3808 = vpop.f32.mrf.mxu0
    %v3809 = vadd.f32 %v682, %v3808
    %v3810 = vpop.f32.mrf.mxu0
    %v3811 = vadd.f32 %v686, %v3810
    %3812 = vdwg.mxu0
    %3813 = vmatprep.subr.bf16.mxu0 %v2768
    %3814 = vmatpush1.bf16.msra.mxu0 %v2767
    %3815 = vmatprep.subr.bf16.mxu0 %v2756
    %3816 = vmatpush1.bf16.msra.mxu0 %v2755
    %3817 = vmatprep.subr.bf16.mxu0 %v2744
    %3818 = vmatpush1.bf16.msra.mxu0 %v2743
    %3819 = vmatprep.subr.bf16.mxu0 %v2732
    %3820 = vmatpush1.bf16.msra.mxu0 %v2731
    %3821 = vmatprep.subr.bf16.mxu0 %v2720
    %3822 = vmatpush1.bf16.msra.mxu0 %v2719
    %3823 = vmatprep.subr.bf16.mxu0 %v2708
    %3824 = vmatpush1.bf16.msra.mxu0 %v2707
    %3825 = vmatprep.subr.bf16.mxu0 %v2696
    %3826 = vmatpush1.bf16.msra.mxu0 %v2695
    %3827 = vmatprep.subr.bf16.mxu0 %v2684
    %3828 = vmatpush1.bf16.msra.mxu0 %v2683
    %3829 = vmatprep.subr.bf16.mxu0 %v2864
    %3830 = vmatpush2.bf16.msra.mxu0 %v2863
    %3831 = vmatprep.subr.bf16.mxu0 %v2852
    %3832 = vmatpush2.bf16.msra.mxu0 %v2851
    %3833 = vmatprep.subr.bf16.mxu0 %v2840
    %3834 = vmatpush2.bf16.msra.mxu0 %v2839
    %3835 = vmatprep.subr.bf16.mxu0 %v2828
    %3836 = vmatpush2.bf16.msra.mxu0 %v2827
    %3837 = vmatprep.subr.bf16.mxu0 %v2816
    %3838 = vmatpush2.bf16.msra.mxu0 %v2815
    %3839 = vmatprep.subr.bf16.mxu0 %v2804
    %3840 = vmatpush2.bf16.msra.mxu0 %v2803
    %3841 = vmatprep.subr.bf16.mxu0 %v2792
    %3842 = vmatpush2.bf16.msra.mxu0 %v2791
    %3843 = vmatprep.subr.bf16.mxu0 %v2780
    %3844 = vmatpush2.bf16.msra.mxu0 %v2779
    %3845 = vmatprep.mubr.bf16.mxu0 %v752
    %3846 = vmatmul.mubr.bf16.gmra.mxu0 %v751
    %v3847 = vpop.f32.mrf.mxu0
    %v3848 = vadd.f32 %v3805, %v3847
    %v3849 = vpop.f32.mrf.mxu0
    %v3850 = vadd.f32 %v3807, %v3849
    %v3851 = vpop.f32.mrf.mxu0
    %v3852 = vadd.f32 %v3809, %v3851
    %v3853 = vpop.f32.mrf.mxu0
    %v3854 = vadd.f32 %v3811, %v3853
    %3855 = vdwg.mxu0
    %3856 = vmatprep.subr.bf16.mxu0 %v2960
    %3857 = vmatpush1.bf16.msra.mxu0 %v2959
    %3858 = vmatprep.subr.bf16.mxu0 %v2948
    %3859 = vmatpush1.bf16.msra.mxu0 %v2947
    %3860 = vmatprep.subr.bf16.mxu0 %v2936
    %3861 = vmatpush1.bf16.msra.mxu0 %v2935
    %3862 = vmatprep.subr.bf16.mxu0 %v2924
    %3863 = vmatpush1.bf16.msra.mxu0 %v2923
    %3864 = vmatprep.subr.bf16.mxu0 %v2912
    %3865 = vmatpush1.bf16.msra.mxu0 %v2911
    %3866 = vmatprep.subr.bf16.mxu0 %v2900
    %3867 = vmatpush1.bf16.msra.mxu0 %v2899
    %3868 = vmatprep.subr.bf16.mxu0 %v2888
    %3869 = vmatpush1.bf16.msra.mxu0 %v2887
    %3870 = vmatprep.subr.bf16.mxu0 %v2876
    %3871 = vmatpush1.bf16.msra.mxu0 %v2875
    %3872 = vmatprep.subr.bf16.mxu0 %v3056
    %3873 = vmatpush2.bf16.msra.mxu0 %v3055
    %3874 = vmatprep.subr.bf16.mxu0 %v3044
    %3875 = vmatpush2.bf16.msra.mxu0 %v3043
    %3876 = vmatprep.subr.bf16.mxu0 %v3032
    %3877 = vmatpush2.bf16.msra.mxu0 %v3031
    %3878 = vmatprep.subr.bf16.mxu0 %v3020
    %3879 = vmatpush2.bf16.msra.mxu0 %v3019
    %3880 = vmatprep.subr.bf16.mxu0 %v3008
    %3881 = vmatpush2.bf16.msra.mxu0 %v3007
    %3882 = vmatprep.subr.bf16.mxu0 %v2996
    %3883 = vmatpush2.bf16.msra.mxu0 %v2995
    %3884 = vmatprep.subr.bf16.mxu0 %v2984
    %3885 = vmatpush2.bf16.msra.mxu0 %v2983
    %3886 = vmatprep.subr.bf16.mxu0 %v2972
    %3887 = vmatpush2.bf16.msra.mxu0 %v2971
    %3888 = vmatprep.mubr.bf16.mxu0 %v754
    %3889 = vmatmul.mubr.bf16.gmra.mxu0 %v753
    %v3890 = vpop.f32.mrf.mxu0
    %v3891 = vadd.f32 %v3848, %v3890
    %v3892 = vpop.f32.mrf.mxu0
    %v3893 = vadd.f32 %v3850, %v3892
    %v3894 = vpop.f32.mrf.mxu0
    %v3895 = vadd.f32 %v3852, %v3894
    %v3896 = vpop.f32.mrf.mxu0
    %v3897 = vadd.f32 %v3854, %v3896
    %3898 = vdwg.mxu0
    %3899 = vmatprep.subr.bf16.mxu0 %v2578
    %3900 = vmatpush1.bf16.msra.mxu0 %v2577
    %3901 = vmatprep.subr.bf16.mxu0 %v2566
    %3902 = vmatpush1.bf16.msra.mxu0 %v2565
    %3903 = vmatprep.subr.bf16.mxu0 %v2554
    %3904 = vmatpush1.bf16.msra.mxu0 %v2553
    %3905 = vmatprep.subr.bf16.mxu0 %v2542
    %3906 = vmatpush1.bf16.msra.mxu0 %v2541
    %3907 = vmatprep.subr.bf16.mxu0 %v2530
    %3908 = vmatpush1.bf16.msra.mxu0 %v2529
    %3909 = vmatprep.subr.bf16.mxu0 %v2518
    %3910 = vmatpush1.bf16.msra.mxu0 %v2517
    %3911 = vmatprep.subr.bf16.mxu0 %v2506
    %3912 = vmatpush1.bf16.msra.mxu0 %v2505
    %3913 = vmatprep.subr.bf16.mxu0 %v2494
    %3914 = vmatpush1.bf16.msra.mxu0 %v2493
    %3915 = vmatprep.subr.bf16.mxu0 %v2674
    %3916 = vmatpush2.bf16.msra.mxu0 %v2673
    %3917 = vmatprep.subr.bf16.mxu0 %v2662
    %3918 = vmatpush2.bf16.msra.mxu0 %v2661
    %3919 = vmatprep.subr.bf16.mxu0 %v2650
    %3920 = vmatpush2.bf16.msra.mxu0 %v2649
    %3921 = vmatprep.subr.bf16.mxu0 %v2638
    %3922 = vmatpush2.bf16.msra.mxu0 %v2637
    %3923 = vmatprep.subr.bf16.mxu0 %v2626
    %3924 = vmatpush2.bf16.msra.mxu0 %v2625
    %3925 = vmatprep.subr.bf16.mxu0 %v2614
    %3926 = vmatpush2.bf16.msra.mxu0 %v2613
    %3927 = vmatprep.subr.bf16.mxu0 %v2602
    %3928 = vmatpush2.bf16.msra.mxu0 %v2601
    %3929 = vmatprep.subr.bf16.mxu0 %v2590
    %3930 = vmatpush2.bf16.msra.mxu0 %v2589
    %3931 = vmatprep.mubr.bf16.mxu0 %v750
    %3932 = vmatmul.mubr.bf16.gmra.mxu0 %v749
    %v3933 = vpop.f32.mrf.mxu0
    %v3934 = vadd.f32 %v690, %v3933
    %v3935 = vpop.f32.mrf.mxu0
    %v3936 = vadd.f32 %v694, %v3935
    %v3937 = vpop.f32.mrf.mxu0
    %v3938 = vadd.f32 %v690, %v3937
    %v3939 = vpop.f32.mrf.mxu0
    %v3940 = vadd.f32 %v694, %v3939
    %3941 = vdwg.mxu0
    %3942 = vmatprep.subr.bf16.mxu0 %v2770
    %3943 = vmatpush1.bf16.msra.mxu0 %v2769
    %3944 = vmatprep.subr.bf16.mxu0 %v2758
    %3945 = vmatpush1.bf16.msra.mxu0 %v2757
    %3946 = vmatprep.subr.bf16.mxu0 %v2746
    %3947 = vmatpush1.bf16.msra.mxu0 %v2745
    %3948 = vmatprep.subr.bf16.mxu0 %v2734
    %3949 = vmatpush1.bf16.msra.mxu0 %v2733
    %3950 = vmatprep.subr.bf16.mxu0 %v2722
    %3951 = vmatpush1.bf16.msra.mxu0 %v2721
    %3952 = vmatprep.subr.bf16.mxu0 %v2710
    %3953 = vmatpush1.bf16.msra.mxu0 %v2709
    %3954 = vmatprep.subr.bf16.mxu0 %v2698
    %3955 = vmatpush1.bf16.msra.mxu0 %v2697
    %3956 = vmatprep.subr.bf16.mxu0 %v2686
    %3957 = vmatpush1.bf16.msra.mxu0 %v2685
    %3958 = vmatprep.subr.bf16.mxu0 %v2866
    %3959 = vmatpush2.bf16.msra.mxu0 %v2865
    %3960 = vmatprep.subr.bf16.mxu0 %v2854
    %3961 = vmatpush2.bf16.msra.mxu0 %v2853
    %3962 = vmatprep.subr.bf16.mxu0 %v2842
    %3963 = vmatpush2.bf16.msra.mxu0 %v2841
    %3964 = vmatprep.subr.bf16.mxu0 %v2830
    %3965 = vmatpush2.bf16.msra.mxu0 %v2829
    %3966 = vmatprep.subr.bf16.mxu0 %v2818
    %3967 = vmatpush2.bf16.msra.mxu0 %v2817
    %3968 = vmatprep.subr.bf16.mxu0 %v2806
    %3969 = vmatpush2.bf16.msra.mxu0 %v2805
    %3970 = vmatprep.subr.bf16.mxu0 %v2794
    %3971 = vmatpush2.bf16.msra.mxu0 %v2793
    %3972 = vmatprep.subr.bf16.mxu0 %v2782
    %3973 = vmatpush2.bf16.msra.mxu0 %v2781
    %3974 = vmatprep.mubr.bf16.mxu0 %v752
    %3975 = vmatmul.mubr.bf16.gmra.mxu0 %v751
    %v3976 = vpop.f32.mrf.mxu0
    %v3977 = vadd.f32 %v3934, %v3976
    %v3978 = vpop.f32.mrf.mxu0
    %v3979 = vadd.f32 %v3936, %v3978
    %v3980 = vpop.f32.mrf.mxu0
    %v3981 = vadd.f32 %v3938, %v3980
    %v3982 = vpop.f32.mrf.mxu0
    %v3983 = vadd.f32 %v3940, %v3982
    %3984 = vdwg.mxu0
    %3985 = vmatprep.subr.bf16.mxu0 %v2962
    %3986 = vmatpush1.bf16.msra.mxu0 %v2961
    %3987 = vmatprep.subr.bf16.mxu0 %v2950
    %3988 = vmatpush1.bf16.msra.mxu0 %v2949
    %3989 = vmatprep.subr.bf16.mxu0 %v2938
    %3990 = vmatpush1.bf16.msra.mxu0 %v2937
    %3991 = vmatprep.subr.bf16.mxu0 %v2926
    %3992 = vmatpush1.bf16.msra.mxu0 %v2925
    %3993 = vmatprep.subr.bf16.mxu0 %v2914
    %3994 = vmatpush1.bf16.msra.mxu0 %v2913
    %3995 = vmatprep.subr.bf16.mxu0 %v2902
    %3996 = vmatpush1.bf16.msra.mxu0 %v2901
    %3997 = vmatprep.subr.bf16.mxu0 %v2890
    %3998 = vmatpush1.bf16.msra.mxu0 %v2889
    %3999 = vmatprep.subr.bf16.mxu0 %v2878
    %4000 = vmatpush1.bf16.msra.mxu0 %v2877
    %4001 = vmatprep.subr.bf16.mxu0 %v3058
    %4002 = vmatpush2.bf16.msra.mxu0 %v3057
    %4003 = vmatprep.subr.bf16.mxu0 %v3046
    %4004 = vmatpush2.bf16.msra.mxu0 %v3045
    %4005 = vmatprep.subr.bf16.mxu0 %v3034
    %4006 = vmatpush2.bf16.msra.mxu0 %v3033
    %4007 = vmatprep.subr.bf16.mxu0 %v3022
    %4008 = vmatpush2.bf16.msra.mxu0 %v3021
    %4009 = vmatprep.subr.bf16.mxu0 %v3010
    %4010 = vmatpush2.bf16.msra.mxu0 %v3009
    %4011 = vmatprep.subr.bf16.mxu0 %v2998
    %4012 = vmatpush2.bf16.msra.mxu0 %v2997
    %4013 = vmatprep.subr.bf16.mxu0 %v2986
    %4014 = vmatpush2.bf16.msra.mxu0 %v2985
    %4015 = vmatprep.subr.bf16.mxu0 %v2974
    %4016 = vmatpush2.bf16.msra.mxu0 %v2973
    %4017 = vmatprep.mubr.bf16.mxu0 %v754
    %4018 = vmatmul.mubr.bf16.gmra.mxu0 %v753
    %v4019 = vpop.f32.mrf.mxu0
    %v4020 = vadd.f32 %v3977, %v4019
    %v4021 = vpop.f32.mrf.mxu0
    %v4022 = vadd.f32 %v3979, %v4021
    %v4023 = vpop.f32.mrf.mxu0
    %v4024 = vadd.f32 %v3981, %v4023
    %v4025 = vpop.f32.mrf.mxu0
    %v4026 = vadd.f32 %v3983, %v4025
    %4027 = vdwg.mxu0
    %4028 = vmatprep.subr.bf16.mxu0 %v2580
    %4029 = vmatpush1.bf16.msra.mxu0 %v2579
    %4030 = vmatprep.subr.bf16.mxu0 %v2568
    %4031 = vmatpush1.bf16.msra.mxu0 %v2567
    %4032 = vmatprep.subr.bf16.mxu0 %v2556
    %4033 = vmatpush1.bf16.msra.mxu0 %v2555
    %4034 = vmatprep.subr.bf16.mxu0 %v2544
    %4035 = vmatpush1.bf16.msra.mxu0 %v2543
    %4036 = vmatprep.subr.bf16.mxu0 %v2532
    %4037 = vmatpush1.bf16.msra.mxu0 %v2531
    %4038 = vmatprep.subr.bf16.mxu0 %v2520
    %4039 = vmatpush1.bf16.msra.mxu0 %v2519
    %4040 = vmatprep.subr.bf16.mxu0 %v2508
    %4041 = vmatpush1.bf16.msra.mxu0 %v2507
    %4042 = vmatprep.subr.bf16.mxu0 %v2496
    %4043 = vmatpush1.bf16.msra.mxu0 %v2495
    %4044 = vmatprep.subr.bf16.mxu0 %v2676
    %4045 = vmatpush2.bf16.msra.mxu0 %v2675
    %4046 = vmatprep.subr.bf16.mxu0 %v2664
    %4047 = vmatpush2.bf16.msra.mxu0 %v2663
    %4048 = vmatprep.subr.bf16.mxu0 %v2652
    %4049 = vmatpush2.bf16.msra.mxu0 %v2651
    %4050 = vmatprep.subr.bf16.mxu0 %v2640
    %4051 = vmatpush2.bf16.msra.mxu0 %v2639
    %4052 = vmatprep.subr.bf16.mxu0 %v2628
    %4053 = vmatpush2.bf16.msra.mxu0 %v2627
    %4054 = vmatprep.subr.bf16.mxu0 %v2616
    %4055 = vmatpush2.bf16.msra.mxu0 %v2615
    %4056 = vmatprep.subr.bf16.mxu0 %v2604
    %4057 = vmatpush2.bf16.msra.mxu0 %v2603
    %4058 = vmatprep.subr.bf16.mxu0 %v2592
    %4059 = vmatpush2.bf16.msra.mxu0 %v2591
    %4060 = vmatprep.mubr.bf16.mxu0 %v750
    %4061 = vmatmul.mubr.bf16.gmra.mxu0 %v749
    %v4062 = vpop.f32.mrf.mxu0
    %v4063 = vadd.f32 %v698, %v4062
    %v4064 = vpop.f32.mrf.mxu0
    %v4065 = vadd.f32 %v702, %v4064
    %v4066 = vpop.f32.mrf.mxu0
    %v4067 = vadd.f32 %v698, %v4066
    %v4068 = vpop.f32.mrf.mxu0
    %v4069 = vadd.f32 %v702, %v4068
    %4070 = vdwg.mxu0
    %4071 = vmatprep.subr.bf16.mxu0 %v2772
    %4072 = vmatpush1.bf16.msra.mxu0 %v2771
    %4073 = vmatprep.subr.bf16.mxu0 %v2760
    %4074 = vmatpush1.bf16.msra.mxu0 %v2759
    %4075 = vmatprep.subr.bf16.mxu0 %v2748
    %4076 = vmatpush1.bf16.msra.mxu0 %v2747
    %4077 = vmatprep.subr.bf16.mxu0 %v2736
    %4078 = vmatpush1.bf16.msra.mxu0 %v2735
    %4079 = vmatprep.subr.bf16.mxu0 %v2724
    %4080 = vmatpush1.bf16.msra.mxu0 %v2723
    %4081 = vmatprep.subr.bf16.mxu0 %v2712
    %4082 = vmatpush1.bf16.msra.mxu0 %v2711
    %4083 = vmatprep.subr.bf16.mxu0 %v2700
    %4084 = vmatpush1.bf16.msra.mxu0 %v2699
    %4085 = vmatprep.subr.bf16.mxu0 %v2688
    %4086 = vmatpush1.bf16.msra.mxu0 %v2687
    %4087 = vmatprep.subr.bf16.mxu0 %v2868
    %4088 = vmatpush2.bf16.msra.mxu0 %v2867
    %4089 = vmatprep.subr.bf16.mxu0 %v2856
    %4090 = vmatpush2.bf16.msra.mxu0 %v2855
    %4091 = vmatprep.subr.bf16.mxu0 %v2844
    %4092 = vmatpush2.bf16.msra.mxu0 %v2843
    %4093 = vmatprep.subr.bf16.mxu0 %v2832
    %4094 = vmatpush2.bf16.msra.mxu0 %v2831
    %4095 = vmatprep.subr.bf16.mxu0 %v2820
    %4096 = vmatpush2.bf16.msra.mxu0 %v2819
    %4097 = vmatprep.subr.bf16.mxu0 %v2808
    %4098 = vmatpush2.bf16.msra.mxu0 %v2807
    %4099 = vmatprep.subr.bf16.mxu0 %v2796
    %4100 = vmatpush2.bf16.msra.mxu0 %v2795
    %4101 = vmatprep.subr.bf16.mxu0 %v2784
    %4102 = vmatpush2.bf16.msra.mxu0 %v2783
    %4103 = vmatprep.mubr.bf16.mxu0 %v752
    %4104 = vmatmul.mubr.bf16.gmra.mxu0 %v751
    %v4105 = vpop.f32.mrf.mxu0
    %v4106 = vadd.f32 %v4063, %v4105
    %v4107 = vpop.f32.mrf.mxu0
    %v4108 = vadd.f32 %v4065, %v4107
    %v4109 = vpop.f32.mrf.mxu0
    %v4110 = vadd.f32 %v4067, %v4109
    %v4111 = vpop.f32.mrf.mxu0
    %v4112 = vadd.f32 %v4069, %v4111
    %4113 = vdwg.mxu0
    %4114 = vmatprep.subr.bf16.mxu0 %v2964
    %4115 = vmatpush1.bf16.msra.mxu0 %v2963
    %4116 = vmatprep.subr.bf16.mxu0 %v2952
    %4117 = vmatpush1.bf16.msra.mxu0 %v2951
    %4118 = vmatprep.subr.bf16.mxu0 %v2940
    %4119 = vmatpush1.bf16.msra.mxu0 %v2939
    %4120 = vmatprep.subr.bf16.mxu0 %v2928
    %4121 = vmatpush1.bf16.msra.mxu0 %v2927
    %4122 = vmatprep.subr.bf16.mxu0 %v2916
    %4123 = vmatpush1.bf16.msra.mxu0 %v2915
    %4124 = vmatprep.subr.bf16.mxu0 %v2904
    %4125 = vmatpush1.bf16.msra.mxu0 %v2903
    %4126 = vmatprep.subr.bf16.mxu0 %v2892
    %4127 = vmatpush1.bf16.msra.mxu0 %v2891
    %4128 = vmatprep.subr.bf16.mxu0 %v2880
    %4129 = vmatpush1.bf16.msra.mxu0 %v2879
    %4130 = vmatprep.subr.bf16.mxu0 %v3060
    %4131 = vmatpush2.bf16.msra.mxu0 %v3059
    %4132 = vmatprep.subr.bf16.mxu0 %v3048
    %4133 = vmatpush2.bf16.msra.mxu0 %v3047
    %4134 = vmatprep.subr.bf16.mxu0 %v3036
    %4135 = vmatpush2.bf16.msra.mxu0 %v3035
    %4136 = vmatprep.subr.bf16.mxu0 %v3024
    %4137 = vmatpush2.bf16.msra.mxu0 %v3023
    %4138 = vmatprep.subr.bf16.mxu0 %v3012
    %4139 = vmatpush2.bf16.msra.mxu0 %v3011
    %4140 = vmatprep.subr.bf16.mxu0 %v3000
    %4141 = vmatpush2.bf16.msra.mxu0 %v2999
    %4142 = vmatprep.subr.bf16.mxu0 %v2988
    %4143 = vmatpush2.bf16.msra.mxu0 %v2987
    %4144 = vmatprep.subr.bf16.mxu0 %v2976
    %4145 = vmatpush2.bf16.msra.mxu0 %v2975
    %4146 = vmatprep.mubr.bf16.mxu0 %v754
    %4147 = vmatmul.mubr.bf16.gmra.mxu0 %v753
    %v4148 = vpop.f32.mrf.mxu0
    %v4149 = vadd.f32 %v4106, %v4148
    %v4150 = vpop.f32.mrf.mxu0
    %v4151 = vadd.f32 %v4108, %v4150
    %v4152 = vpop.f32.mrf.mxu0
    %v4153 = vadd.f32 %v4110, %v4152
    %v4154 = vpop.f32.mrf.mxu0
    %v4155 = vadd.f32 %v4112, %v4154
    %4156 = vdwg.mxu0
    %4157 = vmatprep.subr.bf16.mxu0 %v2582
    %4158 = vmatpush1.bf16.msra.mxu0 %v2581
    %4159 = vmatprep.subr.bf16.mxu0 %v2570
    %4160 = vmatpush1.bf16.msra.mxu0 %v2569
    %4161 = vmatprep.subr.bf16.mxu0 %v2558
    %4162 = vmatpush1.bf16.msra.mxu0 %v2557
    %4163 = vmatprep.subr.bf16.mxu0 %v2546
    %4164 = vmatpush1.bf16.msra.mxu0 %v2545
    %4165 = vmatprep.subr.bf16.mxu0 %v2534
    %4166 = vmatpush1.bf16.msra.mxu0 %v2533
    %4167 = vmatprep.subr.bf16.mxu0 %v2522
    %4168 = vmatpush1.bf16.msra.mxu0 %v2521
    %4169 = vmatprep.subr.bf16.mxu0 %v2510
    %4170 = vmatpush1.bf16.msra.mxu0 %v2509
    %4171 = vmatprep.subr.bf16.mxu0 %v2498
    %4172 = vmatpush1.bf16.msra.mxu0 %v2497
    %4173 = vmatprep.subr.bf16.mxu0 %v2678
    %4174 = vmatpush2.bf16.msra.mxu0 %v2677
    %4175 = vmatprep.subr.bf16.mxu0 %v2666
    %4176 = vmatpush2.bf16.msra.mxu0 %v2665
    %4177 = vmatprep.subr.bf16.mxu0 %v2654
    %4178 = vmatpush2.bf16.msra.mxu0 %v2653
    %4179 = vmatprep.subr.bf16.mxu0 %v2642
    %4180 = vmatpush2.bf16.msra.mxu0 %v2641
    %4181 = vmatprep.subr.bf16.mxu0 %v2630
    %4182 = vmatpush2.bf16.msra.mxu0 %v2629
    %4183 = vmatprep.subr.bf16.mxu0 %v2618
    %4184 = vmatpush2.bf16.msra.mxu0 %v2617
    %4185 = vmatprep.subr.bf16.mxu0 %v2606
    %4186 = vmatpush2.bf16.msra.mxu0 %v2605
    %4187 = vmatprep.subr.bf16.mxu0 %v2594
    %4188 = vmatpush2.bf16.msra.mxu0 %v2593
    %4189 = vmatprep.mubr.bf16.mxu0 %v750
    %4190 = vmatmul.mubr.bf16.gmra.mxu0 %v749
    %v4191 = vpop.f32.mrf.mxu0
    %v4192 = vadd.f32 %v706, %v4191
    %v4193 = vpop.f32.mrf.mxu0
    %v4194 = vadd.f32 %v710, %v4193
    %v4195 = vpop.f32.mrf.mxu0
    %v4196 = vadd.f32 %v706, %v4195
    %v4197 = vpop.f32.mrf.mxu0
    %v4198 = vadd.f32 %v710, %v4197
    %4199 = vdwg.mxu0
    %4200 = vmatprep.subr.bf16.mxu0 %v2774
    %4201 = vmatpush1.bf16.msra.mxu0 %v2773
    %4202 = vmatprep.subr.bf16.mxu0 %v2762
    %4203 = vmatpush1.bf16.msra.mxu0 %v2761
    %4204 = vmatprep.subr.bf16.mxu0 %v2750
    %4205 = vmatpush1.bf16.msra.mxu0 %v2749
    %4206 = vmatprep.subr.bf16.mxu0 %v2738
    %4207 = vmatpush1.bf16.msra.mxu0 %v2737
    %4208 = vmatprep.subr.bf16.mxu0 %v2726
    %4209 = vmatpush1.bf16.msra.mxu0 %v2725
    %4210 = vmatprep.subr.bf16.mxu0 %v2714
    %4211 = vmatpush1.bf16.msra.mxu0 %v2713
    %4212 = vmatprep.subr.bf16.mxu0 %v2702
    %4213 = vmatpush1.bf16.msra.mxu0 %v2701
    %4214 = vmatprep.subr.bf16.mxu0 %v2690
    %4215 = vmatpush1.bf16.msra.mxu0 %v2689
    %4216 = vmatprep.subr.bf16.mxu0 %v2870
    %4217 = vmatpush2.bf16.msra.mxu0 %v2869
    %4218 = vmatprep.subr.bf16.mxu0 %v2858
    %4219 = vmatpush2.bf16.msra.mxu0 %v2857
    %4220 = vmatprep.subr.bf16.mxu0 %v2846
    %4221 = vmatpush2.bf16.msra.mxu0 %v2845
    %4222 = vmatprep.subr.bf16.mxu0 %v2834
    %4223 = vmatpush2.bf16.msra.mxu0 %v2833
    %4224 = vmatprep.subr.bf16.mxu0 %v2822
    %4225 = vmatpush2.bf16.msra.mxu0 %v2821
    %4226 = vmatprep.subr.bf16.mxu0 %v2810
    %4227 = vmatpush2.bf16.msra.mxu0 %v2809
    %4228 = vmatprep.subr.bf16.mxu0 %v2798
    %4229 = vmatpush2.bf16.msra.mxu0 %v2797
    %4230 = vmatprep.subr.bf16.mxu0 %v2786
    %4231 = vmatpush2.bf16.msra.mxu0 %v2785
    %4232 = vmatprep.mubr.bf16.mxu0 %v752
    %4233 = vmatmul.mubr.bf16.gmra.mxu0 %v751
    %v4234 = vpop.f32.mrf.mxu0
    %v4235 = vadd.f32 %v4192, %v4234
    %v4236 = vpop.f32.mrf.mxu0
    %v4237 = vadd.f32 %v4194, %v4236
    %v4238 = vpop.f32.mrf.mxu0
    %v4239 = vadd.f32 %v4196, %v4238
    %v4240 = vpop.f32.mrf.mxu0
    %v4241 = vadd.f32 %v4198, %v4240
    %4242 = vdwg.mxu0
    %4243 = vmatprep.subr.bf16.mxu0 %v2966
    %4244 = vmatpush1.bf16.msra.mxu0 %v2965
    %4245 = vmatprep.subr.bf16.mxu0 %v2954
    %4246 = vmatpush1.bf16.msra.mxu0 %v2953
    %4247 = vmatprep.subr.bf16.mxu0 %v2942
    %4248 = vmatpush1.bf16.msra.mxu0 %v2941
    %4249 = vmatprep.subr.bf16.mxu0 %v2930
    %4250 = vmatpush1.bf16.msra.mxu0 %v2929
    %4251 = vmatprep.subr.bf16.mxu0 %v2918
    %4252 = vmatpush1.bf16.msra.mxu0 %v2917
    %4253 = vmatprep.subr.bf16.mxu0 %v2906
    %4254 = vmatpush1.bf16.msra.mxu0 %v2905
    %4255 = vmatprep.subr.bf16.mxu0 %v2894
    %4256 = vmatpush1.bf16.msra.mxu0 %v2893
    %4257 = vmatprep.subr.bf16.mxu0 %v2882
    %4258 = vmatpush1.bf16.msra.mxu0 %v2881
    %4259 = vmatprep.subr.bf16.mxu0 %v3062
    %4260 = vmatpush2.bf16.msra.mxu0 %v3061
    %4261 = vmatprep.subr.bf16.mxu0 %v3050
    %4262 = vmatpush2.bf16.msra.mxu0 %v3049
    %4263 = vmatprep.subr.bf16.mxu0 %v3038
    %4264 = vmatpush2.bf16.msra.mxu0 %v3037
    %4265 = vmatprep.subr.bf16.mxu0 %v3026
    %4266 = vmatpush2.bf16.msra.mxu0 %v3025
    %4267 = vmatprep.subr.bf16.mxu0 %v3014
    %4268 = vmatpush2.bf16.msra.mxu0 %v3013
    %4269 = vmatprep.subr.bf16.mxu0 %v3002
    %4270 = vmatpush2.bf16.msra.mxu0 %v3001
    %4271 = vmatprep.subr.bf16.mxu0 %v2990
    %4272 = vmatpush2.bf16.msra.mxu0 %v2989
    %4273 = vmatprep.subr.bf16.mxu0 %v2978
    %4274 = vmatpush2.bf16.msra.mxu0 %v2977
    %4275 = vmatprep.mubr.bf16.mxu0 %v754
    %4276 = vmatmul.mubr.bf16.gmra.mxu0 %v753
    %v4277 = vpop.f32.mrf.mxu0
    %v4278 = vadd.f32 %v4235, %v4277
    %v4279 = vpop.f32.mrf.mxu0
    %v4280 = vadd.f32 %v4237, %v4279
    %v4281 = vpop.f32.mrf.mxu0
    %v4282 = vadd.f32 %v4239, %v4281
    %v4283 = vpop.f32.mrf.mxu0
    %v4284 = vadd.f32 %v4241, %v4283
    %4285 = vdwg.mxu0
    %4286 = vmatprep.subr.bf16.mxu0 %v2584
    %4287 = vmatpush1.bf16.msra.mxu0 %v2583
    %4288 = vmatprep.subr.bf16.mxu0 %v2572
    %4289 = vmatpush1.bf16.msra.mxu0 %v2571
    %4290 = vmatprep.subr.bf16.mxu0 %v2560
    %4291 = vmatpush1.bf16.msra.mxu0 %v2559
    %4292 = vmatprep.subr.bf16.mxu0 %v2548
    %4293 = vmatpush1.bf16.msra.mxu0 %v2547
    %4294 = vmatprep.subr.bf16.mxu0 %v2536
    %4295 = vmatpush1.bf16.msra.mxu0 %v2535
    %4296 = vmatprep.subr.bf16.mxu0 %v2524
    %4297 = vmatpush1.bf16.msra.mxu0 %v2523
    %4298 = vmatprep.subr.bf16.mxu0 %v2512
    %4299 = vmatpush1.bf16.msra.mxu0 %v2511
    %4300 = vmatprep.subr.bf16.mxu0 %v2500
    %4301 = vmatpush1.bf16.msra.mxu0 %v2499
    %4302 = vmatprep.subr.bf16.mxu0 %v2680
    %4303 = vmatpush2.bf16.msra.mxu0 %v2679
    %4304 = vmatprep.subr.bf16.mxu0 %v2668
    %4305 = vmatpush2.bf16.msra.mxu0 %v2667
    %4306 = vmatprep.subr.bf16.mxu0 %v2656
    %4307 = vmatpush2.bf16.msra.mxu0 %v2655
    %4308 = vmatprep.subr.bf16.mxu0 %v2644
    %4309 = vmatpush2.bf16.msra.mxu0 %v2643
    %4310 = vmatprep.subr.bf16.mxu0 %v2632
    %4311 = vmatpush2.bf16.msra.mxu0 %v2631
    %4312 = vmatprep.subr.bf16.mxu0 %v2620
    %4313 = vmatpush2.bf16.msra.mxu0 %v2619
    %4314 = vmatprep.subr.bf16.mxu0 %v2608
    %4315 = vmatpush2.bf16.msra.mxu0 %v2607
    %4316 = vmatprep.subr.bf16.mxu0 %v2596
    %4317 = vmatpush2.bf16.msra.mxu0 %v2595
    %4318 = vmatprep.mubr.bf16.mxu0 %v750
    %4319 = vmatmul.mubr.bf16.gmra.mxu0 %v749
    %v4320 = vpop.f32.mrf.mxu0
    %v4321 = vadd.f32 %v714, %v4320
    %v4322 = vpop.f32.mrf.mxu0
    %v4323 = vadd.f32 %v718, %v4322
    %v4324 = vpop.f32.mrf.mxu0
    %v4325 = vadd.f32 %v714, %v4324
    %v4326 = vpop.f32.mrf.mxu0
    %v4327 = vadd.f32 %v718, %v4326
    %4328 = vdwg.mxu0
    %4329 = vmatprep.subr.bf16.mxu0 %v2776
    %4330 = vmatpush1.bf16.msra.mxu0 %v2775
    %4331 = vmatprep.subr.bf16.mxu0 %v2764
    %4332 = vmatpush1.bf16.msra.mxu0 %v2763
    %4333 = vmatprep.subr.bf16.mxu0 %v2752
    %4334 = vmatpush1.bf16.msra.mxu0 %v2751
    %4335 = vmatprep.subr.bf16.mxu0 %v2740
    %4336 = vmatpush1.bf16.msra.mxu0 %v2739
    %4337 = vmatprep.subr.bf16.mxu0 %v2728
    %4338 = vmatpush1.bf16.msra.mxu0 %v2727
    %4339 = vmatprep.subr.bf16.mxu0 %v2716
    %4340 = vmatpush1.bf16.msra.mxu0 %v2715
    %4341 = vmatprep.subr.bf16.mxu0 %v2704
    %4342 = vmatpush1.bf16.msra.mxu0 %v2703
    %4343 = vmatprep.subr.bf16.mxu0 %v2692
    %4344 = vmatpush1.bf16.msra.mxu0 %v2691
    %4345 = vmatprep.subr.bf16.mxu0 %v2872
    %4346 = vmatpush2.bf16.msra.mxu0 %v2871
    %4347 = vmatprep.subr.bf16.mxu0 %v2860
    %4348 = vmatpush2.bf16.msra.mxu0 %v2859
    %4349 = vmatprep.subr.bf16.mxu0 %v2848
    %4350 = vmatpush2.bf16.msra.mxu0 %v2847
    %4351 = vmatprep.subr.bf16.mxu0 %v2836
    %4352 = vmatpush2.bf16.msra.mxu0 %v2835
    %4353 = vmatprep.subr.bf16.mxu0 %v2824
    %4354 = vmatpush2.bf16.msra.mxu0 %v2823
    %4355 = vmatprep.subr.bf16.mxu0 %v2812
    %4356 = vmatpush2.bf16.msra.mxu0 %v2811
    %4357 = vmatprep.subr.bf16.mxu0 %v2800
    %4358 = vmatpush2.bf16.msra.mxu0 %v2799
    %4359 = vmatprep.subr.bf16.mxu0 %v2788
    %4360 = vmatpush2.bf16.msra.mxu0 %v2787
    %4361 = vmatprep.mubr.bf16.mxu0 %v752
    %4362 = vmatmul.mubr.bf16.gmra.mxu0 %v751
    %v4363 = vpop.f32.mrf.mxu0
    %v4364 = vadd.f32 %v4321, %v4363
    %v4365 = vpop.f32.mrf.mxu0
    %v4366 = vadd.f32 %v4323, %v4365
    %v4367 = vpop.f32.mrf.mxu0
    %v4368 = vadd.f32 %v4325, %v4367
    %v4369 = vpop.f32.mrf.mxu0
    %v4370 = vadd.f32 %v4327, %v4369
    %4371 = vdwg.mxu0
    %4372 = vmatprep.subr.bf16.mxu0 %v2968
    %4373 = vmatpush1.bf16.msra.mxu0 %v2967
    %4374 = vmatprep.subr.bf16.mxu0 %v2956
    %4375 = vmatpush1.bf16.msra.mxu0 %v2955
    %4376 = vmatprep.subr.bf16.mxu0 %v2944
    %4377 = vmatpush1.bf16.msra.mxu0 %v2943
    %4378 = vmatprep.subr.bf16.mxu0 %v2932
    %4379 = vmatpush1.bf16.msra.mxu0 %v2931
    %4380 = vmatprep.subr.bf16.mxu0 %v2920
    %4381 = vmatpush1.bf16.msra.mxu0 %v2919
    %4382 = vmatprep.subr.bf16.mxu0 %v2908
    %4383 = vmatpush1.bf16.msra.mxu0 %v2907
    %4384 = vmatprep.subr.bf16.mxu0 %v2896
    %4385 = vmatpush1.bf16.msra.mxu0 %v2895
    %4386 = vmatprep.subr.bf16.mxu0 %v2884
    %4387 = vmatpush1.bf16.msra.mxu0 %v2883
    %4388 = vmatprep.subr.bf16.mxu0 %v3064
    %4389 = vmatpush2.bf16.msra.mxu0 %v3063
    %4390 = vmatprep.subr.bf16.mxu0 %v3052
    %4391 = vmatpush2.bf16.msra.mxu0 %v3051
    %4392 = vmatprep.subr.bf16.mxu0 %v3040
    %4393 = vmatpush2.bf16.msra.mxu0 %v3039
    %4394 = vmatprep.subr.bf16.mxu0 %v3028
    %4395 = vmatpush2.bf16.msra.mxu0 %v3027
    %4396 = vmatprep.subr.bf16.mxu0 %v3016
    %4397 = vmatpush2.bf16.msra.mxu0 %v3015
    %4398 = vmatprep.subr.bf16.mxu0 %v3004
    %4399 = vmatpush2.bf16.msra.mxu0 %v3003
    %4400 = vmatprep.subr.bf16.mxu0 %v2992
    %4401 = vmatpush2.bf16.msra.mxu0 %v2991
    %4402 = vmatprep.subr.bf16.mxu0 %v2980
    %4403 = vmatpush2.bf16.msra.mxu0 %v2979
    %4404 = vmatprep.mubr.bf16.mxu0 %v754
    %4405 = vmatmul.mubr.bf16.gmra.mxu0 %v753
    %v4406 = vpop.f32.mrf.mxu0
    %v4407 = vadd.f32 %v4364, %v4406
    %v4408 = vpop.f32.mrf.mxu0
    %v4409 = vadd.f32 %v4366, %v4408
    %v4410 = vpop.f32.mrf.mxu0
    %v4411 = vadd.f32 %v4368, %v4410
    %v4412 = vpop.f32.mrf.mxu0
    %v4413 = vadd.f32 %v4370, %v4412
    %4414 = vdwg.mxu0
    %v4415 = vmax.f32 %v3762, 0.0
    %v4416 = vmax.f32 %v3764, 0.0
    %v4417 = vmax.f32 %v3891, 0.0
    %v4418 = vmax.f32 %v3893, 0.0
    %v4419 = vmax.f32 %v4020, 0.0
    %v4420 = vmax.f32 %v4022, 0.0
    %v4421 = vmax.f32 %v4149, 0.0
    %v4422 = vmax.f32 %v4151, 0.0
    %v4423 = vmax.f32 %v4278, 0.0
    %v4424 = vmax.f32 %v4280, 0.0
    %v4425 = vmax.f32 %v4407, 0.0
    %v4426 = vmax.f32 %v4409, 0.0
    %v4427 = vmax.f32 %v3766, 0.0
    %v4428 = vmax.f32 %v3768, 0.0
    %v4429 = vmax.f32 %v3895, 0.0
    %v4430 = vmax.f32 %v3897, 0.0
    %v4431 = vmax.f32 %v4024, 0.0
    %v4432 = vmax.f32 %v4026, 0.0
    %v4433 = vmax.f32 %v4153, 0.0
    %v4434 = vmax.f32 %v4155, 0.0
    %v4435 = vmax.f32 %v4282, 0.0
    %v4436 = vmax.f32 %v4284, 0.0
    %v4437 = vmax.f32 %v4411, 0.0
    %v4438 = vmax.f32 %v4413, 0.0
    %v4439 = vrot.slane %v4415, 4
    %v4440 = vadd.f32 %v4415, %v4439
    %v4441 = vrot.slane %v4440, 2
    %v4442 = vadd.f32 %v4440, %v4441
    %v4443 = vrot.slane %v4442, 1
    %v4444 = vadd.f32 %v4442, %v4443
    %v4445 = vrot.slane %v4416, 4
    %v4446 = vadd.f32 %v4416, %v4445
    %v4447 = vrot.slane %v4446, 2
    %v4448 = vadd.f32 %v4446, %v4447
    %v4449 = vrot.slane %v4448, 1
    %v4450 = vadd.f32 %v4448, %v4449
    %v4451 = vrot.slane %v4417, 4
    %v4452 = vadd.f32 %v4417, %v4451
    %v4453 = vrot.slane %v4452, 2
    %v4454 = vadd.f32 %v4452, %v4453
    %v4455 = vrot.slane %v4454, 1
    %v4456 = vadd.f32 %v4454, %v4455
    %v4457 = vrot.slane %v4418, 4
    %v4458 = vadd.f32 %v4418, %v4457
    %v4459 = vrot.slane %v4458, 2
    %v4460 = vadd.f32 %v4458, %v4459
    %v4461 = vrot.slane %v4460, 1
    %v4462 = vadd.f32 %v4460, %v4461
    %v4463 = vrot.slane %v4419, 4
    %v4464 = vadd.f32 %v4419, %v4463
    %v4465 = vrot.slane %v4464, 2
    %v4466 = vadd.f32 %v4464, %v4465
    %v4467 = vrot.slane %v4466, 1
    %v4468 = vadd.f32 %v4466, %v4467
    %v4469 = vrot.slane %v4420, 4
    %v4470 = vadd.f32 %v4420, %v4469
    %v4471 = vrot.slane %v4470, 2
    %v4472 = vadd.f32 %v4470, %v4471
    %v4473 = vrot.slane %v4472, 1
    %v4474 = vadd.f32 %v4472, %v4473
    %v4475 = vrot.slane %v4421, 4
    %v4476 = vadd.f32 %v4421, %v4475
    %v4477 = vrot.slane %v4476, 2
    %v4478 = vadd.f32 %v4476, %v4477
    %v4479 = vrot.slane %v4478, 1
    %v4480 = vadd.f32 %v4478, %v4479
    %v4481 = vrot.slane %v4422, 4
    %v4482 = vadd.f32 %v4422, %v4481
    %v4483 = vrot.slane %v4482, 2
    %v4484 = vadd.f32 %v4482, %v4483
    %v4485 = vrot.slane %v4484, 1
    %v4486 = vadd.f32 %v4484, %v4485
    %v4487 = vrot.slane %v4423, 4
    %v4488 = vadd.f32 %v4423, %v4487
    %v4489 = vrot.slane %v4488, 2
    %v4490 = vadd.f32 %v4488, %v4489
    %v4491 = vrot.slane %v4490, 1
    %v4492 = vadd.f32 %v4490, %v4491
    %v4493 = vrot.slane %v4424, 4
    %v4494 = vadd.f32 %v4424, %v4493
    %v4495 = vrot.slane %v4494, 2
    %v4496 = vadd.f32 %v4494, %v4495
    %v4497 = vrot.slane %v4496, 1
    %v4498 = vadd.f32 %v4496, %v4497
    %v4499 = vrot.slane %v4425, 4
    %v4500 = vadd.f32 %v4425, %v4499
    %v4501 = vrot.slane %v4500, 2
    %v4502 = vadd.f32 %v4500, %v4501
    %v4503 = vrot.slane %v4502, 1
    %v4504 = vadd.f32 %v4502, %v4503
    %v4505 = vrot.slane %v4426, 4
    %v4506 = vadd.f32 %v4426, %v4505
    %v4507 = vrot.slane %v4506, 2
    %v4508 = vadd.f32 %v4506, %v4507
    %v4509 = vrot.slane %v4508, 1
    %v4510 = vadd.f32 %v4508, %v4509
    %v4511 = vrot.slane %v4427, 4
    %v4512 = vadd.f32 %v4427, %v4511
    %v4513 = vrot.slane %v4512, 2
    %v4514 = vadd.f32 %v4512, %v4513
    %v4515 = vrot.slane %v4514, 1
    %v4516 = vadd.f32 %v4514, %v4515
    %v4517 = vrot.slane %v4428, 4
    %v4518 = vadd.f32 %v4428, %v4517
    %v4519 = vrot.slane %v4518, 2
    %v4520 = vadd.f32 %v4518, %v4519
    %v4521 = vrot.slane %v4520, 1
    %v4522 = vadd.f32 %v4520, %v4521
    %v4523 = vrot.slane %v4429, 4
    %v4524 = vadd.f32 %v4429, %v4523
    %v4525 = vrot.slane %v4524, 2
    %v4526 = vadd.f32 %v4524, %v4525
    %v4527 = vrot.slane %v4526, 1
    %v4528 = vadd.f32 %v4526, %v4527
    %v4529 = vrot.slane %v4430, 4
    %v4530 = vadd.f32 %v4430, %v4529
    %v4531 = vrot.slane %v4530, 2
    %v4532 = vadd.f32 %v4530, %v4531
    %v4533 = vrot.slane %v4532, 1
    %v4534 = vadd.f32 %v4532, %v4533
    %v4535 = vrot.slane %v4431, 4
    %v4536 = vadd.f32 %v4431, %v4535
    %v4537 = vrot.slane %v4536, 2
    %v4538 = vadd.f32 %v4536, %v4537
    %v4539 = vrot.slane %v4538, 1
    %v4540 = vadd.f32 %v4538, %v4539
    %v4541 = vrot.slane %v4432, 4
    %v4542 = vadd.f32 %v4432, %v4541
    %v4543 = vrot.slane %v4542, 2
    %v4544 = vadd.f32 %v4542, %v4543
    %v4545 = vrot.slane %v4544, 1
    %v4546 = vadd.f32 %v4544, %v4545
    %v4547 = vrot.slane %v4433, 4
    %v4548 = vadd.f32 %v4433, %v4547
    %v4549 = vrot.slane %v4548, 2
    %v4550 = vadd.f32 %v4548, %v4549
    %v4551 = vrot.slane %v4550, 1
    %v4552 = vadd.f32 %v4550, %v4551
    %v4553 = vrot.slane %v4434, 4
    %v4554 = vadd.f32 %v4434, %v4553
    %v4555 = vrot.slane %v4554, 2
    %v4556 = vadd.f32 %v4554, %v4555
    %v4557 = vrot.slane %v4556, 1
    %v4558 = vadd.f32 %v4556, %v4557
    %v4559 = vrot.slane %v4435, 4
    %v4560 = vadd.f32 %v4435, %v4559
    %v4561 = vrot.slane %v4560, 2
    %v4562 = vadd.f32 %v4560, %v4561
    %v4563 = vrot.slane %v4562, 1
    %v4564 = vadd.f32 %v4562, %v4563
    %v4565 = vrot.slane %v4436, 4
    %v4566 = vadd.f32 %v4436, %v4565
    %v4567 = vrot.slane %v4566, 2
    %v4568 = vadd.f32 %v4566, %v4567
    %v4569 = vrot.slane %v4568, 1
    %v4570 = vadd.f32 %v4568, %v4569
    %v4571 = vrot.slane %v4437, 4
    %v4572 = vadd.f32 %v4437, %v4571
    %v4573 = vrot.slane %v4572, 2
    %v4574 = vadd.f32 %v4572, %v4573
    %v4575 = vrot.slane %v4574, 1
    %v4576 = vadd.f32 %v4574, %v4575
    %v4577 = vrot.slane %v4438, 4
    %v4578 = vadd.f32 %v4438, %v4577
    %v4579 = vrot.slane %v4578, 2
    %v4580 = vadd.f32 %v4578, %v4579
    %v4581 = vrot.slane %v4580, 1
    %v4582 = vadd.f32 %v4580, %v4581
    %v4583 = vpack.c.bf16 %v4444, %v4444
    %v4584 = vpack.c.bf16 %v4450, %v4450
    %v4585 = vpack.c.bf16 %v4456, %v4456
    %v4586 = vpack.c.bf16 %v4462, %v4462
    %v4587 = vpack.c.bf16 %v4468, %v4468
    %v4588 = vpack.c.bf16 %v4474, %v4474
    %v4589 = vpack.c.bf16 %v4480, %v4480
    %v4590 = vpack.c.bf16 %v4486, %v4486
    %v4591 = vpack.c.bf16 %v4492, %v4492
    %v4592 = vpack.c.bf16 %v4498, %v4498
    %v4593 = vpack.c.bf16 %v4504, %v4504
    %v4594 = vpack.c.bf16 %v4510, %v4510
    %v4595 = vpack.c.bf16 %v4516, %v4516
    %v4596 = vpack.c.bf16 %v4522, %v4522
    %v4597 = vpack.c.bf16 %v4528, %v4528
    %v4598 = vpack.c.bf16 %v4534, %v4534
    %v4599 = vpack.c.bf16 %v4540, %v4540
    %v4600 = vpack.c.bf16 %v4546, %v4546
    %v4601 = vpack.c.bf16 %v4552, %v4552
    %v4602 = vpack.c.bf16 %v4558, %v4558
    %v4603 = vpack.c.bf16 %v4564, %v4564
    %v4604 = vpack.c.bf16 %v4570, %v4570
    %v4605 = vpack.c.bf16 %v4576, %v4576
    %v4606 = vpack.c.bf16 %v4582, %v4582
    %v4607 = vld [vmem:[#allocation8] sm:$0xff]
    %v4608 = vld [vmem:[#allocation8 + $0x8] sm:$0xff]
    %v4609 = vld [vmem:[#allocation8 + $0x10] sm:$0xff]
    %v4610 = vld [vmem:[#allocation8 + $0x18] sm:$0xff]
    %v4611 = vld [vmem:[#allocation8 + $0x20] sm:$0xff]
    %v4612 = vld [vmem:[#allocation8 + $0x28] sm:$0xff]
    %v4613 = vld [vmem:[#allocation8 + $0x30] sm:$0xff]
    %v4614 = vld [vmem:[#allocation8 + $0x38] sm:$0xff]
    %v4615 = vld [vmem:[#allocation8 + $0x40] sm:$0xff]
    %v4616 = vld [vmem:[#allocation8 + $0x48] sm:$0xff]
    %v4617 = vld [vmem:[#allocation8 + $0x50] sm:$0xff]
    %v4618 = vld [vmem:[#allocation8 + $0x58] sm:$0xff]
    %v4619 = vld [vmem:[#allocation8 + $0x60] sm:$0xff]
    %v4620 = vld [vmem:[#allocation8 + $0x68] sm:$0xff]
    %v4621 = vld [vmem:[#allocation8 + $0x70] sm:$0xff]
    %v4622 = vld [vmem:[#allocation8 + $0x78] sm:$0xff]
    %v4623 = vld [vmem:[#allocation8 + $0x80] sm:$0xff]
    %v4624 = vld [vmem:[#allocation8 + $0x88] sm:$0xff]
    %v4625 = vld [vmem:[#allocation8 + $0x90] sm:$0xff]
    %v4626 = vld [vmem:[#allocation8 + $0x98] sm:$0xff]
    %v4627 = vld [vmem:[#allocation8 + $0xa0] sm:$0xff]
    %v4628 = vld [vmem:[#allocation8 + $0xa8] sm:$0xff]
    %v4629 = vld [vmem:[#allocation8 + $0xb0] sm:$0xff]
    %v4630 = vld [vmem:[#allocation8 + $0xb8] sm:$0xff]
    %v4631 = vld [vmem:[#allocation8 + $0xc0] sm:$0xff]
    %v4632 = vld [vmem:[#allocation8 + $0xc8] sm:$0xff]
    %v4633 = vld [vmem:[#allocation8 + $0xd0] sm:$0xff]
    %v4634 = vld [vmem:[#allocation8 + $0xd8] sm:$0xff]
    %v4635 = vld [vmem:[#allocation8 + $0xe0] sm:$0xff]
    %v4636 = vld [vmem:[#allocation8 + $0xe8] sm:$0xff]
    %v4637 = vld [vmem:[#allocation8 + $0xf0] sm:$0xff]
    %v4638 = vld [vmem:[#allocation8 + $0xf8] sm:$0xff]
    %v4639 = vld [vmem:[#allocation8 + $0x100] sm:$0xff]
    %v4640 = vld [vmem:[#allocation8 + $0x108] sm:$0xff]
    %v4641 = vld [vmem:[#allocation8 + $0x110] sm:$0xff]
    %v4642 = vld [vmem:[#allocation8 + $0x118] sm:$0xff]
    %v4643 = vld [vmem:[#allocation8 + $0x120] sm:$0xff]
    %v4644 = vld [vmem:[#allocation8 + $0x128] sm:$0xff]
    %v4645 = vld [vmem:[#allocation8 + $0x130] sm:$0xff]
    %v4646 = vld [vmem:[#allocation8 + $0x138] sm:$0xff]
    %v4647 = vld [vmem:[#allocation8 + $0x140] sm:$0xff]
    %v4648 = vld [vmem:[#allocation8 + $0x148] sm:$0xff]
    %v4649 = vld [vmem:[#allocation8 + $0x150] sm:$0xff]
    %v4650 = vld [vmem:[#allocation8 + $0x158] sm:$0xff]
    %v4651 = vld [vmem:[#allocation8 + $0x160] sm:$0xff]
    %v4652 = vld [vmem:[#allocation8 + $0x168] sm:$0xff]
    %v4653 = vld [vmem:[#allocation8 + $0x170] sm:$0xff]
    %v4654 = vld [vmem:[#allocation8 + $0x178] sm:$0xff]
    %v4655 = vld [vmem:[#allocation8 + $0x180] sm:$0xff]
    %v4656 = vld [vmem:[#allocation8 + $0x188] sm:$0xff]
    %v4657 = vld [vmem:[#allocation8 + $0x190] sm:$0xff]
    %v4658 = vld [vmem:[#allocation8 + $0x198] sm:$0xff]
    %v4659 = vld [vmem:[#allocation8 + $0x1a0] sm:$0xff]
    %v4660 = vld [vmem:[#allocation8 + $0x1a8] sm:$0xff]
    %v4661 = vld [vmem:[#allocation8 + $0x1b0] sm:$0xff]
    %v4662 = vld [vmem:[#allocation8 + $0x1b8] sm:$0xff]
    %v4663 = vld [vmem:[#allocation8 + $0x1c0] sm:$0xff]
    %v4664 = vld [vmem:[#allocation8 + $0x1c8] sm:$0xff]
    %v4665 = vld [vmem:[#allocation8 + $0x1d0] sm:$0xff]
    %v4666 = vld [vmem:[#allocation8 + $0x1d8] sm:$0xff]
    %v4667 = vld [vmem:[#allocation8 + $0x1e0] sm:$0xff]
    %v4668 = vld [vmem:[#allocation8 + $0x1e8] sm:$0xff]
    %v4669 = vld [vmem:[#allocation8 + $0x1f0] sm:$0xff]
    %v4670 = vld [vmem:[#allocation8 + $0x1f8] sm:$0xff]
    %v4671 = vld [vmem:[#allocation8 + $0x200] sm:$0xff]
    %v4672 = vld [vmem:[#allocation8 + $0x208] sm:$0xff]
    %v4673 = vld [vmem:[#allocation8 + $0x210] sm:$0xff]
    %v4674 = vld [vmem:[#allocation8 + $0x218] sm:$0xff]
    %v4675 = vld [vmem:[#allocation8 + $0x220] sm:$0xff]
    %v4676 = vld [vmem:[#allocation8 + $0x228] sm:$0xff]
    %v4677 = vld [vmem:[#allocation8 + $0x230] sm:$0xff]
    %v4678 = vld [vmem:[#allocation8 + $0x238] sm:$0xff]
    %v4679 = vld [vmem:[#allocation8 + $0x240] sm:$0xff]
    %v4680 = vld [vmem:[#allocation8 + $0x248] sm:$0xff]
    %v4681 = vld [vmem:[#allocation8 + $0x250] sm:$0xff]
    %v4682 = vld [vmem:[#allocation8 + $0x258] sm:$0xff]
    %v4683 = vld [vmem:[#allocation8 + $0x260] sm:$0xff]
    %v4684 = vld [vmem:[#allocation8 + $0x268] sm:$0xff]
    %v4685 = vld [vmem:[#allocation8 + $0x270] sm:$0xff]
    %v4686 = vld [vmem:[#allocation8 + $0x278] sm:$0xff]
    %v4687 = vld [vmem:[#allocation8 + $0x280] sm:$0xff]
    %v4688 = vld [vmem:[#allocation8 + $0x288] sm:$0xff]
    %v4689 = vld [vmem:[#allocation8 + $0x290] sm:$0xff]
    %v4690 = vld [vmem:[#allocation8 + $0x298] sm:$0xff]
    %v4691 = vld [vmem:[#allocation8 + $0x2a0] sm:$0xff]
    %v4692 = vld [vmem:[#allocation8 + $0x2a8] sm:$0xff]
    %v4693 = vld [vmem:[#allocation8 + $0x2b0] sm:$0xff]
    %v4694 = vld [vmem:[#allocation8 + $0x2b8] sm:$0xff]
    %v4695 = vld [vmem:[#allocation8 + $0x2c0] sm:$0xff]
    %v4696 = vld [vmem:[#allocation8 + $0x2c8] sm:$0xff]
    %v4697 = vld [vmem:[#allocation8 + $0x2d0] sm:$0xff]
    %v4698 = vld [vmem:[#allocation8 + $0x2d8] sm:$0xff]
    %v4699 = vld [vmem:[#allocation8 + $0x2e0] sm:$0xff]
    %v4700 = vld [vmem:[#allocation8 + $0x2e8] sm:$0xff]
    %v4701 = vld [vmem:[#allocation8 + $0x2f0] sm:$0xff]
    %v4702 = vld [vmem:[#allocation8 + $0x2f8] sm:$0xff]
    %v4703 = vld [vmem:[#allocation8 + $0x300] sm:$0xff]
    %v4704 = vld [vmem:[#allocation8 + $0x308] sm:$0xff]
    %v4705 = vld [vmem:[#allocation8 + $0x310] sm:$0xff]
    %v4706 = vld [vmem:[#allocation8 + $0x318] sm:$0xff]
    %v4707 = vld [vmem:[#allocation8 + $0x320] sm:$0xff]
    %v4708 = vld [vmem:[#allocation8 + $0x328] sm:$0xff]
    %v4709 = vld [vmem:[#allocation8 + $0x330] sm:$0xff]
    %v4710 = vld [vmem:[#allocation8 + $0x338] sm:$0xff]
    %v4711 = vld [vmem:[#allocation8 + $0x340] sm:$0xff]
    %v4712 = vld [vmem:[#allocation8 + $0x348] sm:$0xff]
    %v4713 = vld [vmem:[#allocation8 + $0x350] sm:$0xff]
    %v4714 = vld [vmem:[#allocation8 + $0x358] sm:$0xff]
    %v4715 = vld [vmem:[#allocation8 + $0x360] sm:$0xff]
    %v4716 = vld [vmem:[#allocation8 + $0x368] sm:$0xff]
    %v4717 = vld [vmem:[#allocation8 + $0x370] sm:$0xff]
    %v4718 = vld [vmem:[#allocation8 + $0x378] sm:$0xff]
    %v4719 = vld [vmem:[#allocation8 + $0x380] sm:$0xff]
    %v4720 = vld [vmem:[#allocation8 + $0x388] sm:$0xff]
    %v4721 = vld [vmem:[#allocation8 + $0x390] sm:$0xff]
    %v4722 = vld [vmem:[#allocation8 + $0x398] sm:$0xff]
    %v4723 = vld [vmem:[#allocation8 + $0x3a0] sm:$0xff]
    %v4724 = vld [vmem:[#allocation8 + $0x3a8] sm:$0xff]
    %v4725 = vld [vmem:[#allocation8 + $0x3b0] sm:$0xff]
    %v4726 = vld [vmem:[#allocation8 + $0x3b8] sm:$0xff]
    %v4727 = vld [vmem:[#allocation8 + $0x3c0] sm:$0xff]
    %v4728 = vld [vmem:[#allocation8 + $0x3c8] sm:$0xff]
    %v4729 = vld [vmem:[#allocation8 + $0x3d0] sm:$0xff]
    %v4730 = vld [vmem:[#allocation8 + $0x3d8] sm:$0xff]
    %v4731 = vld [vmem:[#allocation8 + $0x3e0] sm:$0xff]
    %v4732 = vld [vmem:[#allocation8 + $0x3e8] sm:$0xff]
    %v4733 = vld [vmem:[#allocation8 + $0x3f0] sm:$0xff]
    %v4734 = vld [vmem:[#allocation8 + $0x3f8] sm:$0xff]
    %v4735 = vld [vmem:[#allocation8 + $0x400] sm:$0xff]
    %v4736 = vld [vmem:[#allocation8 + $0x408] sm:$0xff]
    %v4737 = vld [vmem:[#allocation8 + $0x410] sm:$0xff]
    %v4738 = vld [vmem:[#allocation8 + $0x418] sm:$0xff]
    %v4739 = vld [vmem:[#allocation8 + $0x420] sm:$0xff]
    %v4740 = vld [vmem:[#allocation8 + $0x428] sm:$0xff]
    %v4741 = vld [vmem:[#allocation8 + $0x430] sm:$0xff]
    %v4742 = vld [vmem:[#allocation8 + $0x438] sm:$0xff]
    %v4743 = vld [vmem:[#allocation8 + $0x440] sm:$0xff]
    %v4744 = vld [vmem:[#allocation8 + $0x448] sm:$0xff]
    %v4745 = vld [vmem:[#allocation8 + $0x450] sm:$0xff]
    %v4746 = vld [vmem:[#allocation8 + $0x458] sm:$0xff]
    %v4747 = vld [vmem:[#allocation8 + $0x460] sm:$0xff]
    %v4748 = vld [vmem:[#allocation8 + $0x468] sm:$0xff]
    %v4749 = vld [vmem:[#allocation8 + $0x470] sm:$0xff]
    %v4750 = vld [vmem:[#allocation8 + $0x478] sm:$0xff]
    %v4751 = vld [vmem:[#allocation8 + $0x480] sm:$0xff]
    %v4752 = vld [vmem:[#allocation8 + $0x488] sm:$0xff]
    %v4753 = vld [vmem:[#allocation8 + $0x490] sm:$0xff]
    %v4754 = vld [vmem:[#allocation8 + $0x498] sm:$0xff]
    %v4755 = vld [vmem:[#allocation8 + $0x4a0] sm:$0xff]
    %v4756 = vld [vmem:[#allocation8 + $0x4a8] sm:$0xff]
    %v4757 = vld [vmem:[#allocation8 + $0x4b0] sm:$0xff]
    %v4758 = vld [vmem:[#allocation8 + $0x4b8] sm:$0xff]
    %v4759 = vld [vmem:[#allocation8 + $0x4c0] sm:$0xff]
    %v4760 = vld [vmem:[#allocation8 + $0x4c8] sm:$0xff]
    %v4761 = vld [vmem:[#allocation8 + $0x4d0] sm:$0xff]
    %v4762 = vld [vmem:[#allocation8 + $0x4d8] sm:$0xff]
    %v4763 = vld [vmem:[#allocation8 + $0x4e0] sm:$0xff]
    %v4764 = vld [vmem:[#allocation8 + $0x4e8] sm:$0xff]
    %v4765 = vld [vmem:[#allocation8 + $0x4f0] sm:$0xff]
    %v4766 = vld [vmem:[#allocation8 + $0x4f8] sm:$0xff]
    %v4767 = vld [vmem:[#allocation8 + $0x500] sm:$0xff]
    %v4768 = vld [vmem:[#allocation8 + $0x508] sm:$0xff]
    %v4769 = vld [vmem:[#allocation8 + $0x510] sm:$0xff]
    %v4770 = vld [vmem:[#allocation8 + $0x518] sm:$0xff]
    %v4771 = vld [vmem:[#allocation8 + $0x520] sm:$0xff]
    %v4772 = vld [vmem:[#allocation8 + $0x528] sm:$0xff]
    %v4773 = vld [vmem:[#allocation8 + $0x530] sm:$0xff]
    %v4774 = vld [vmem:[#allocation8 + $0x538] sm:$0xff]
    %v4775 = vld [vmem:[#allocation8 + $0x540] sm:$0xff]
    %v4776 = vld [vmem:[#allocation8 + $0x548] sm:$0xff]
    %v4777 = vld [vmem:[#allocation8 + $0x550] sm:$0xff]
    %v4778 = vld [vmem:[#allocation8 + $0x558] sm:$0xff]
    %v4779 = vld [vmem:[#allocation8 + $0x560] sm:$0xff]
    %v4780 = vld [vmem:[#allocation8 + $0x568] sm:$0xff]
    %v4781 = vld [vmem:[#allocation8 + $0x570] sm:$0xff]
    %v4782 = vld [vmem:[#allocation8 + $0x578] sm:$0xff]
    %v4783 = vld [vmem:[#allocation8 + $0x580] sm:$0xff]
    %v4784 = vld [vmem:[#allocation8 + $0x588] sm:$0xff]
    %v4785 = vld [vmem:[#allocation8 + $0x590] sm:$0xff]
    %v4786 = vld [vmem:[#allocation8 + $0x598] sm:$0xff]
    %v4787 = vld [vmem:[#allocation8 + $0x5a0] sm:$0xff]
    %v4788 = vld [vmem:[#allocation8 + $0x5a8] sm:$0xff]
    %v4789 = vld [vmem:[#allocation8 + $0x5b0] sm:$0xff]
    %v4790 = vld [vmem:[#allocation8 + $0x5b8] sm:$0xff]
    %v4791 = vld [vmem:[#allocation8 + $0x5c0] sm:$0xff]
    %v4792 = vld [vmem:[#allocation8 + $0x5c8] sm:$0xff]
    %v4793 = vld [vmem:[#allocation8 + $0x5d0] sm:$0xff]
    %v4794 = vld [vmem:[#allocation8 + $0x5d8] sm:$0xff]
    %v4795 = vld [vmem:[#allocation8 + $0x5e0] sm:$0xff]
    %v4796 = vld [vmem:[#allocation8 + $0x5e8] sm:$0xff]
    %v4797 = vld [vmem:[#allocation8 + $0x5f0] sm:$0xff]
    %v4798 = vld [vmem:[#allocation8 + $0x5f8] sm:$0xff]
    %v4799 = vld [vmem:[#allocation10] sm:$0x3]
    %v4801 = vlaneseq
    %v4802 = vshrl.u32 %v4801, 7
    %v4803 = vsub.s32 0, %v4802
    %v4804 = vrot.slane %v4799, %v4803
    %v4805 = vlaneseq
    %v4806 = vshrl.u32 %v4805, 7
    %v4807 = vsub.s32 1, %v4806
    %v4808 = vrot.slane %v4799, %v4807
    %v4835 = vunpack.c.l.b16 %v4583
    %v4836 = vunpack.c.l.b16 %v4584
    %v4837 = vunpack.c.l.b16 %v4585
    %v4838 = vunpack.c.l.b16 %v4586
    %v4839 = vunpack.c.l.b16 %v4587
    %v4840 = vunpack.c.l.b16 %v4588
    %v4841 = vunpack.c.l.b16 %v4589
    %v4842 = vunpack.c.l.b16 %v4590
    %v4843 = vunpack.c.l.b16 %v4591
    %v4844 = vunpack.c.l.b16 %v4592
    %v4845 = vunpack.c.l.b16 %v4593
    %v4846 = vunpack.c.l.b16 %v4594
    %v4847 = vunpack.c.l.b16 %v4595
    %v4848 = vunpack.c.l.b16 %v4596
    %v4849 = vunpack.c.l.b16 %v4597
    %v4850 = vunpack.c.l.b16 %v4598
    %v4851 = vunpack.c.l.b16 %v4599
    %v4852 = vunpack.c.l.b16 %v4600
    %v4853 = vunpack.c.l.b16 %v4601
    %v4854 = vunpack.c.l.b16 %v4602
    %v4855 = vunpack.c.l.b16 %v4603
    %v4856 = vunpack.c.l.b16 %v4604
    %v4857 = vunpack.c.l.b16 %v4605
    %v4858 = vunpack.c.l.b16 %v4606
    %vm4859 = vcmask 1041409
    %v4860 = vsel %vm4859, %v4847, %v4835
    %v4861 = vsel %vm4859, %v4848, %v4836
    %v4862 = vsel %vm4859, %v4849, %v4837
    %v4863 = vsel %vm4859, %v4850, %v4838
    %v4864 = vsel %vm4859, %v4851, %v4839
    %v4865 = vsel %vm4859, %v4852, %v4840
    %v4866 = vsel %vm4859, %v4853, %v4841
    %v4867 = vsel %vm4859, %v4854, %v4842
    %v4868 = vsel %vm4859, %v4855, %v4843
    %v4869 = vsel %vm4859, %v4856, %v4844
    %v4870 = vsel %vm4859, %v4857, %v4845
    %v4871 = vsel %vm4859, %v4858, %v4846
    %v4872 = vpack.c.b16 %v4860, %v4860
    %v4873 = vpack.c.b16 %v4861, %v4861
    %v4874 = vpack.c.b16 %v4862, %v4862
    %v4875 = vpack.c.b16 %v4863, %v4863
    %v4876 = vpack.c.b16 %v4864, %v4864
    %v4877 = vpack.c.b16 %v4865, %v4865
    %v4878 = vpack.c.b16 %v4866, %v4866
    %v4879 = vpack.c.b16 %v4867, %v4867
    %v4880 = vpack.c.b16 %v4868, %v4868
    %v4881 = vpack.c.b16 %v4869, %v4869
    %v4882 = vpack.c.b16 %v4870, %v4870
    %v4883 = vpack.c.b16 %v4871, %v4871
    %v5088 = vunpack.c.l.b16 %v4607
    %v5089 = vunpack.c.h.b16 %v4607
    %v5090 = vunpack.c.l.b16 %v4608
    %v5091 = vunpack.c.h.b16 %v4608
    %v5092 = vunpack.c.l.b16 %v4609
    %v5093 = vunpack.c.h.b16 %v4609
    %v5094 = vunpack.c.l.b16 %v4610
    %v5095 = vunpack.c.h.b16 %v4610
    %v5096 = vunpack.c.l.b16 %v4611
    %v5097 = vunpack.c.h.b16 %v4611
    %v5098 = vunpack.c.l.b16 %v4612
    %v5099 = vunpack.c.h.b16 %v4612
    %v5100 = vunpack.c.l.b16 %v4613
    %v5101 = vunpack.c.h.b16 %v4613
    %v5102 = vunpack.c.l.b16 %v4614
    %v5103 = vunpack.c.h.b16 %v4614
    %v5104 = vunpack.c.l.b16 %v4615
    %v5105 = vunpack.c.h.b16 %v4615
    %v5106 = vunpack.c.l.b16 %v4616
    %v5107 = vunpack.c.h.b16 %v4616
    %v5108 = vunpack.c.l.b16 %v4617
    %v5109 = vunpack.c.h.b16 %v4617
    %v5110 = vunpack.c.l.b16 %v4618
    %v5111 = vunpack.c.h.b16 %v4618
    %v5112 = vunpack.c.l.b16 %v4619
    %v5113 = vunpack.c.h.b16 %v4619
    %v5114 = vunpack.c.l.b16 %v4620
    %v5115 = vunpack.c.h.b16 %v4620
    %v5116 = vunpack.c.l.b16 %v4621
    %v5117 = vunpack.c.h.b16 %v4621
    %v5118 = vunpack.c.l.b16 %v4622
    %v5119 = vunpack.c.h.b16 %v4622
    %v5120 = vunpack.c.l.b16 %v4623
    %v5121 = vunpack.c.h.b16 %v4623
    %v5122 = vunpack.c.l.b16 %v4624
    %v5123 = vunpack.c.h.b16 %v4624
    %v5124 = vunpack.c.l.b16 %v4625
    %v5125 = vunpack.c.h.b16 %v4625
    %v5126 = vunpack.c.l.b16 %v4626
    %v5127 = vunpack.c.h.b16 %v4626
    %v5128 = vunpack.c.l.b16 %v4627
    %v5129 = vunpack.c.h.b16 %v4627
    %v5130 = vunpack.c.l.b16 %v4628
    %v5131 = vunpack.c.h.b16 %v4628
    %v5132 = vunpack.c.l.b16 %v4629
    %v5133 = vunpack.c.h.b16 %v4629
    %v5134 = vunpack.c.l.b16 %v4630
    %v5135 = vunpack.c.h.b16 %v4630
    %v5136 = vunpack.c.l.b16 %v4631
    %v5137 = vunpack.c.h.b16 %v4631
    %v5138 = vunpack.c.l.b16 %v4632
    %v5139 = vunpack.c.h.b16 %v4632
    %v5140 = vunpack.c.l.b16 %v4633
    %v5141 = vunpack.c.h.b16 %v4633
    %v5142 = vunpack.c.l.b16 %v4634
    %v5143 = vunpack.c.h.b16 %v4634
    %v5144 = vunpack.c.l.b16 %v4635
    %v5145 = vunpack.c.h.b16 %v4635
    %v5146 = vunpack.c.l.b16 %v4636
    %v5147 = vunpack.c.h.b16 %v4636
    %v5148 = vunpack.c.l.b16 %v4637
    %v5149 = vunpack.c.h.b16 %v4637
    %v5150 = vunpack.c.l.b16 %v4638
    %v5151 = vunpack.c.h.b16 %v4638
    %v5152 = vunpack.c.l.b16 %v4639
    %v5153 = vunpack.c.h.b16 %v4639
    %v5154 = vunpack.c.l.b16 %v4640
    %v5155 = vunpack.c.h.b16 %v4640
    %v5156 = vunpack.c.l.b16 %v4641
    %v5157 = vunpack.c.h.b16 %v4641
    %v5158 = vunpack.c.l.b16 %v4642
    %v5159 = vunpack.c.h.b16 %v4642
    %v5160 = vunpack.c.l.b16 %v4643
    %v5161 = vunpack.c.h.b16 %v4643
    %v5162 = vunpack.c.l.b16 %v4644
    %v5163 = vunpack.c.h.b16 %v4644
    %v5164 = vunpack.c.l.b16 %v4645
    %v5165 = vunpack.c.h.b16 %v4645
    %v5166 = vunpack.c.l.b16 %v4646
    %v5167 = vunpack.c.h.b16 %v4646
    %v5168 = vunpack.c.l.b16 %v4647
    %v5169 = vunpack.c.h.b16 %v4647
    %v5170 = vunpack.c.l.b16 %v4648
    %v5171 = vunpack.c.h.b16 %v4648
    %v5172 = vunpack.c.l.b16 %v4649
    %v5173 = vunpack.c.h.b16 %v4649
    %v5174 = vunpack.c.l.b16 %v4650
    %v5175 = vunpack.c.h.b16 %v4650
    %v5176 = vunpack.c.l.b16 %v4651
    %v5177 = vunpack.c.h.b16 %v4651
    %v5178 = vunpack.c.l.b16 %v4652
    %v5179 = vunpack.c.h.b16 %v4652
    %v5180 = vunpack.c.l.b16 %v4653
    %v5181 = vunpack.c.h.b16 %v4653
    %v5182 = vunpack.c.l.b16 %v4654
    %v5183 = vunpack.c.h.b16 %v4654
    %v5184 = vunpack.c.l.b16 %v4655
    %v5185 = vunpack.c.h.b16 %v4655
    %v5186 = vunpack.c.l.b16 %v4656
    %v5187 = vunpack.c.h.b16 %v4656
    %v5188 = vunpack.c.l.b16 %v4657
    %v5189 = vunpack.c.h.b16 %v4657
    %v5190 = vunpack.c.l.b16 %v4658
    %v5191 = vunpack.c.h.b16 %v4658
    %v5192 = vunpack.c.l.b16 %v4659
    %v5193 = vunpack.c.h.b16 %v4659
    %v5194 = vunpack.c.l.b16 %v4660
    %v5195 = vunpack.c.h.b16 %v4660
    %v5196 = vunpack.c.l.b16 %v4661
    %v5197 = vunpack.c.h.b16 %v4661
    %v5198 = vunpack.c.l.b16 %v4662
    %v5199 = vunpack.c.h.b16 %v4662
    %v5200 = vunpack.c.l.b16 %v4663
    %v5201 = vunpack.c.h.b16 %v4663
    %v5202 = vunpack.c.l.b16 %v4664
    %v5203 = vunpack.c.h.b16 %v4664
    %v5204 = vunpack.c.l.b16 %v4665
    %v5205 = vunpack.c.h.b16 %v4665
    %v5206 = vunpack.c.l.b16 %v4666
    %v5207 = vunpack.c.h.b16 %v4666
    %v5208 = vunpack.c.l.b16 %v4667
    %v5209 = vunpack.c.h.b16 %v4667
    %v5210 = vunpack.c.l.b16 %v4668
    %v5211 = vunpack.c.h.b16 %v4668
    %v5212 = vunpack.c.l.b16 %v4669
    %v5213 = vunpack.c.h.b16 %v4669
    %v5214 = vunpack.c.l.b16 %v4670
    %v5215 = vunpack.c.h.b16 %v4670
    %v5216 = vunpack.c.l.b16 %v4671
    %v5217 = vunpack.c.h.b16 %v4671
    %v5218 = vunpack.c.l.b16 %v4672
    %v5219 = vunpack.c.h.b16 %v4672
    %v5220 = vunpack.c.l.b16 %v4673
    %v5221 = vunpack.c.h.b16 %v4673
    %v5222 = vunpack.c.l.b16 %v4674
    %v5223 = vunpack.c.h.b16 %v4674
    %v5224 = vunpack.c.l.b16 %v4675
    %v5225 = vunpack.c.h.b16 %v4675
    %v5226 = vunpack.c.l.b16 %v4676
    %v5227 = vunpack.c.h.b16 %v4676
    %v5228 = vunpack.c.l.b16 %v4677
    %v5229 = vunpack.c.h.b16 %v4677
    %v5230 = vunpack.c.l.b16 %v4678
    %v5231 = vunpack.c.h.b16 %v4678
    %v5232 = vunpack.c.l.b16 %v4679
    %v5233 = vunpack.c.h.b16 %v4679
    %v5234 = vunpack.c.l.b16 %v4680
    %v5235 = vunpack.c.h.b16 %v4680
    %v5236 = vunpack.c.l.b16 %v4681
    %v5237 = vunpack.c.h.b16 %v4681
    %v5238 = vunpack.c.l.b16 %v4682
    %v5239 = vunpack.c.h.b16 %v4682
    %v5240 = vunpack.c.l.b16 %v4683
    %v5241 = vunpack.c.h.b16 %v4683
    %v5242 = vunpack.c.l.b16 %v4684
    %v5243 = vunpack.c.h.b16 %v4684
    %v5244 = vunpack.c.l.b16 %v4685
    %v5245 = vunpack.c.h.b16 %v4685
    %v5246 = vunpack.c.l.b16 %v4686
    %v5247 = vunpack.c.h.b16 %v4686
    %v5248 = vunpack.c.l.b16 %v4687
    %v5249 = vunpack.c.h.b16 %v4687
    %v5250 = vunpack.c.l.b16 %v4688
    %v5251 = vunpack.c.h.b16 %v4688
    %v5252 = vunpack.c.l.b16 %v4689
    %v5253 = vunpack.c.h.b16 %v4689
    %v5254 = vunpack.c.l.b16 %v4690
    %v5255 = vunpack.c.h.b16 %v4690
    %v5256 = vunpack.c.l.b16 %v4691
    %v5257 = vunpack.c.h.b16 %v4691
    %v5258 = vunpack.c.l.b16 %v4692
    %v5259 = vunpack.c.h.b16 %v4692
    %v5260 = vunpack.c.l.b16 %v4693
    %v5261 = vunpack.c.h.b16 %v4693
    %v5262 = vunpack.c.l.b16 %v4694
    %v5263 = vunpack.c.h.b16 %v4694
    %v5264 = vunpack.c.l.b16 %v4695
    %v5265 = vunpack.c.h.b16 %v4695
    %v5266 = vunpack.c.l.b16 %v4696
    %v5267 = vunpack.c.h.b16 %v4696
    %v5268 = vunpack.c.l.b16 %v4697
    %v5269 = vunpack.c.h.b16 %v4697
    %v5270 = vunpack.c.l.b16 %v4698
    %v5271 = vunpack.c.h.b16 %v4698
    %v5272 = vunpack.c.l.b16 %v4699
    %v5273 = vunpack.c.h.b16 %v4699
    %v5274 = vunpack.c.l.b16 %v4700
    %v5275 = vunpack.c.h.b16 %v4700
    %v5276 = vunpack.c.l.b16 %v4701
    %v5277 = vunpack.c.h.b16 %v4701
    %v5278 = vunpack.c.l.b16 %v4702
    %v5279 = vunpack.c.h.b16 %v4702
    %v5280 = vunpack.c.l.b16 %v4703
    %v5281 = vunpack.c.h.b16 %v4703
    %v5282 = vunpack.c.l.b16 %v4704
    %v5283 = vunpack.c.h.b16 %v4704
    %v5284 = vunpack.c.l.b16 %v4705
    %v5285 = vunpack.c.h.b16 %v4705
    %v5286 = vunpack.c.l.b16 %v4706
    %v5287 = vunpack.c.h.b16 %v4706
    %v5288 = vunpack.c.l.b16 %v4707
    %v5289 = vunpack.c.h.b16 %v4707
    %v5290 = vunpack.c.l.b16 %v4708
    %v5291 = vunpack.c.h.b16 %v4708
    %v5292 = vunpack.c.l.b16 %v4709
    %v5293 = vunpack.c.h.b16 %v4709
    %v5294 = vunpack.c.l.b16 %v4710
    %v5295 = vunpack.c.h.b16 %v4710
    %v5296 = vunpack.c.l.b16 %v4711
    %v5297 = vunpack.c.h.b16 %v4711
    %v5298 = vunpack.c.l.b16 %v4712
    %v5299 = vunpack.c.h.b16 %v4712
    %v5300 = vunpack.c.l.b16 %v4713
    %v5301 = vunpack.c.h.b16 %v4713
    %v5302 = vunpack.c.l.b16 %v4714
    %v5303 = vunpack.c.h.b16 %v4714
    %v5304 = vunpack.c.l.b16 %v4715
    %v5305 = vunpack.c.h.b16 %v4715
    %v5306 = vunpack.c.l.b16 %v4716
    %v5307 = vunpack.c.h.b16 %v4716
    %v5308 = vunpack.c.l.b16 %v4717
    %v5309 = vunpack.c.h.b16 %v4717
    %v5310 = vunpack.c.l.b16 %v4718
    %v5311 = vunpack.c.h.b16 %v4718
    %v5312 = vunpack.c.l.b16 %v4719
    %v5313 = vunpack.c.h.b16 %v4719
    %v5314 = vunpack.c.l.b16 %v4720
    %v5315 = vunpack.c.h.b16 %v4720
    %v5316 = vunpack.c.l.b16 %v4721
    %v5317 = vunpack.c.h.b16 %v4721
    %v5318 = vunpack.c.l.b16 %v4722
    %v5319 = vunpack.c.h.b16 %v4722
    %v5320 = vunpack.c.l.b16 %v4723
    %v5321 = vunpack.c.h.b16 %v4723
    %v5322 = vunpack.c.l.b16 %v4724
    %v5323 = vunpack.c.h.b16 %v4724
    %v5324 = vunpack.c.l.b16 %v4725
    %v5325 = vunpack.c.h.b16 %v4725
    %v5326 = vunpack.c.l.b16 %v4726
    %v5327 = vunpack.c.h.b16 %v4726
    %v5328 = vunpack.c.l.b16 %v4727
    %v5329 = vunpack.c.h.b16 %v4727
    %v5330 = vunpack.c.l.b16 %v4728
    %v5331 = vunpack.c.h.b16 %v4728
    %v5332 = vunpack.c.l.b16 %v4729
    %v5333 = vunpack.c.h.b16 %v4729
    %v5334 = vunpack.c.l.b16 %v4730
    %v5335 = vunpack.c.h.b16 %v4730
    %v5336 = vunpack.c.l.b16 %v4731
    %v5337 = vunpack.c.h.b16 %v4731
    %v5338 = vunpack.c.l.b16 %v4732
    %v5339 = vunpack.c.h.b16 %v4732
    %v5340 = vunpack.c.l.b16 %v4733
    %v5341 = vunpack.c.h.b16 %v4733
    %v5342 = vunpack.c.l.b16 %v4734
    %v5343 = vunpack.c.h.b16 %v4734
    %v5344 = vunpack.c.l.b16 %v4735
    %v5345 = vunpack.c.h.b16 %v4735
    %v5346 = vunpack.c.l.b16 %v4736
    %v5347 = vunpack.c.h.b16 %v4736
    %v5348 = vunpack.c.l.b16 %v4737
    %v5349 = vunpack.c.h.b16 %v4737
    %v5350 = vunpack.c.l.b16 %v4738
    %v5351 = vunpack.c.h.b16 %v4738
    %v5352 = vunpack.c.l.b16 %v4739
    %v5353 = vunpack.c.h.b16 %v4739
    %v5354 = vunpack.c.l.b16 %v4740
    %v5355 = vunpack.c.h.b16 %v4740
    %v5356 = vunpack.c.l.b16 %v4741
    %v5357 = vunpack.c.h.b16 %v4741
    %v5358 = vunpack.c.l.b16 %v4742
    %v5359 = vunpack.c.h.b16 %v4742
    %v5360 = vunpack.c.l.b16 %v4743
    %v5361 = vunpack.c.h.b16 %v4743
    %v5362 = vunpack.c.l.b16 %v4744
    %v5363 = vunpack.c.h.b16 %v4744
    %v5364 = vunpack.c.l.b16 %v4745
    %v5365 = vunpack.c.h.b16 %v4745
    %v5366 = vunpack.c.l.b16 %v4746
    %v5367 = vunpack.c.h.b16 %v4746
    %v5368 = vunpack.c.l.b16 %v4747
    %v5369 = vunpack.c.h.b16 %v4747
    %v5370 = vunpack.c.l.b16 %v4748
    %v5371 = vunpack.c.h.b16 %v4748
    %v5372 = vunpack.c.l.b16 %v4749
    %v5373 = vunpack.c.h.b16 %v4749
    %v5374 = vunpack.c.l.b16 %v4750
    %v5375 = vunpack.c.h.b16 %v4750
    %v5376 = vunpack.c.l.b16 %v4751
    %v5377 = vunpack.c.h.b16 %v4751
    %v5378 = vunpack.c.l.b16 %v4752
    %v5379 = vunpack.c.h.b16 %v4752
    %v5380 = vunpack.c.l.b16 %v4753
    %v5381 = vunpack.c.h.b16 %v4753
    %v5382 = vunpack.c.l.b16 %v4754
    %v5383 = vunpack.c.h.b16 %v4754
    %v5384 = vunpack.c.l.b16 %v4755
    %v5385 = vunpack.c.h.b16 %v4755
    %v5386 = vunpack.c.l.b16 %v4756
    %v5387 = vunpack.c.h.b16 %v4756
    %v5388 = vunpack.c.l.b16 %v4757
    %v5389 = vunpack.c.h.b16 %v4757
    %v5390 = vunpack.c.l.b16 %v4758
    %v5391 = vunpack.c.h.b16 %v4758
    %v5392 = vunpack.c.l.b16 %v4759
    %v5393 = vunpack.c.h.b16 %v4759
    %v5394 = vunpack.c.l.b16 %v4760
    %v5395 = vunpack.c.h.b16 %v4760
    %v5396 = vunpack.c.l.b16 %v4761
    %v5397 = vunpack.c.h.b16 %v4761
    %v5398 = vunpack.c.l.b16 %v4762
    %v5399 = vunpack.c.h.b16 %v4762
    %v5400 = vunpack.c.l.b16 %v4763
    %v5401 = vunpack.c.h.b16 %v4763
    %v5402 = vunpack.c.l.b16 %v4764
    %v5403 = vunpack.c.h.b16 %v4764
    %v5404 = vunpack.c.l.b16 %v4765
    %v5405 = vunpack.c.h.b16 %v4765
    %v5406 = vunpack.c.l.b16 %v4766
    %v5407 = vunpack.c.h.b16 %v4766
    %v5408 = vunpack.c.l.b16 %v4767
    %v5409 = vunpack.c.h.b16 %v4767
    %v5410 = vunpack.c.l.b16 %v4768
    %v5411 = vunpack.c.h.b16 %v4768
    %v5412 = vunpack.c.l.b16 %v4769
    %v5413 = vunpack.c.h.b16 %v4769
    %v5414 = vunpack.c.l.b16 %v4770
    %v5415 = vunpack.c.h.b16 %v4770
    %v5416 = vunpack.c.l.b16 %v4771
    %v5417 = vunpack.c.h.b16 %v4771
    %v5418 = vunpack.c.l.b16 %v4772
    %v5419 = vunpack.c.h.b16 %v4772
    %v5420 = vunpack.c.l.b16 %v4773
    %v5421 = vunpack.c.h.b16 %v4773
    %v5422 = vunpack.c.l.b16 %v4774
    %v5423 = vunpack.c.h.b16 %v4774
    %v5424 = vunpack.c.l.b16 %v4775
    %v5425 = vunpack.c.h.b16 %v4775
    %v5426 = vunpack.c.l.b16 %v4776
    %v5427 = vunpack.c.h.b16 %v4776
    %v5428 = vunpack.c.l.b16 %v4777
    %v5429 = vunpack.c.h.b16 %v4777
    %v5430 = vunpack.c.l.b16 %v4778
    %v5431 = vunpack.c.h.b16 %v4778
    %v5432 = vunpack.c.l.b16 %v4779
    %v5433 = vunpack.c.h.b16 %v4779
    %v5434 = vunpack.c.l.b16 %v4780
    %v5435 = vunpack.c.h.b16 %v4780
    %v5436 = vunpack.c.l.b16 %v4781
    %v5437 = vunpack.c.h.b16 %v4781
    %v5438 = vunpack.c.l.b16 %v4782
    %v5439 = vunpack.c.h.b16 %v4782
    %v5440 = vunpack.c.l.b16 %v4783
    %v5441 = vunpack.c.h.b16 %v4783
    %v5442 = vunpack.c.l.b16 %v4784
    %v5443 = vunpack.c.h.b16 %v4784
    %v5444 = vunpack.c.l.b16 %v4785
    %v5445 = vunpack.c.h.b16 %v4785
    %v5446 = vunpack.c.l.b16 %v4786
    %v5447 = vunpack.c.h.b16 %v4786
    %v5448 = vunpack.c.l.b16 %v4787
    %v5449 = vunpack.c.h.b16 %v4787
    %v5450 = vunpack.c.l.b16 %v4788
    %v5451 = vunpack.c.h.b16 %v4788
    %v5452 = vunpack.c.l.b16 %v4789
    %v5453 = vunpack.c.h.b16 %v4789
    %v5454 = vunpack.c.l.b16 %v4790
    %v5455 = vunpack.c.h.b16 %v4790
    %v5456 = vunpack.c.l.b16 %v4791
    %v5457 = vunpack.c.h.b16 %v4791
    %v5458 = vunpack.c.l.b16 %v4792
    %v5459 = vunpack.c.h.b16 %v4792
    %v5460 = vunpack.c.l.b16 %v4793
    %v5461 = vunpack.c.h.b16 %v4793
    %v5462 = vunpack.c.l.b16 %v4794
    %v5463 = vunpack.c.h.b16 %v4794
    %v5464 = vunpack.c.l.b16 %v4795
    %v5465 = vunpack.c.h.b16 %v4795
    %v5466 = vunpack.c.l.b16 %v4796
    %v5467 = vunpack.c.h.b16 %v4796
    %v5468 = vunpack.c.l.b16 %v4797
    %v5469 = vunpack.c.h.b16 %v4797
    %v5470 = vunpack.c.l.b16 %v4798
    %v5471 = vunpack.c.h.b16 %v4798
    %v5472 = vpack.c.b16 %v5090, %v5088
    %v5473 = vpack.c.b16 %v5091, %v5089
    %v5474 = vpack.c.b16 %v5094, %v5092
    %v5475 = vpack.c.b16 %v5095, %v5093
    %v5476 = vpack.c.b16 %v5098, %v5096
    %v5477 = vpack.c.b16 %v5099, %v5097
    %v5478 = vpack.c.b16 %v5102, %v5100
    %v5479 = vpack.c.b16 %v5103, %v5101
    %v5480 = vpack.c.b16 %v5106, %v5104
    %v5481 = vpack.c.b16 %v5107, %v5105
    %v5482 = vpack.c.b16 %v5110, %v5108
    %v5483 = vpack.c.b16 %v5111, %v5109
    %v5484 = vpack.c.b16 %v5114, %v5112
    %v5485 = vpack.c.b16 %v5115, %v5113
    %v5486 = vpack.c.b16 %v5118, %v5116
    %v5487 = vpack.c.b16 %v5119, %v5117
    %v5488 = vpack.c.b16 %v5122, %v5120
    %v5489 = vpack.c.b16 %v5123, %v5121
    %v5490 = vpack.c.b16 %v5126, %v5124
    %v5491 = vpack.c.b16 %v5127, %v5125
    %v5492 = vpack.c.b16 %v5130, %v5128
    %v5493 = vpack.c.b16 %v5131, %v5129
    %v5494 = vpack.c.b16 %v5134, %v5132
    %v5495 = vpack.c.b16 %v5135, %v5133
    %v5496 = vpack.c.b16 %v5138, %v5136
    %v5497 = vpack.c.b16 %v5139, %v5137
    %v5498 = vpack.c.b16 %v5142, %v5140
    %v5499 = vpack.c.b16 %v5143, %v5141
    %v5500 = vpack.c.b16 %v5146, %v5144
    %v5501 = vpack.c.b16 %v5147, %v5145
    %v5502 = vpack.c.b16 %v5150, %v5148
    %v5503 = vpack.c.b16 %v5151, %v5149
    %v5504 = vpack.c.b16 %v5154, %v5152
    %v5505 = vpack.c.b16 %v5155, %v5153
    %v5506 = vpack.c.b16 %v5158, %v5156
    %v5507 = vpack.c.b16 %v5159, %v5157
    %v5508 = vpack.c.b16 %v5162, %v5160
    %v5509 = vpack.c.b16 %v5163, %v5161
    %v5510 = vpack.c.b16 %v5166, %v5164
    %v5511 = vpack.c.b16 %v5167, %v5165
    %v5512 = vpack.c.b16 %v5170, %v5168
    %v5513 = vpack.c.b16 %v5171, %v5169
    %v5514 = vpack.c.b16 %v5174, %v5172
    %v5515 = vpack.c.b16 %v5175, %v5173
    %v5516 = vpack.c.b16 %v5178, %v5176
    %v5517 = vpack.c.b16 %v5179, %v5177
    %v5518 = vpack.c.b16 %v5182, %v5180
    %v5519 = vpack.c.b16 %v5183, %v5181
    %v5520 = vpack.c.b16 %v5186, %v5184
    %v5521 = vpack.c.b16 %v5187, %v5185
    %v5522 = vpack.c.b16 %v5190, %v5188
    %v5523 = vpack.c.b16 %v5191, %v5189
    %v5524 = vpack.c.b16 %v5194, %v5192
    %v5525 = vpack.c.b16 %v5195, %v5193
    %v5526 = vpack.c.b16 %v5198, %v5196
    %v5527 = vpack.c.b16 %v5199, %v5197
    %v5528 = vpack.c.b16 %v5202, %v5200
    %v5529 = vpack.c.b16 %v5203, %v5201
    %v5530 = vpack.c.b16 %v5206, %v5204
    %v5531 = vpack.c.b16 %v5207, %v5205
    %v5532 = vpack.c.b16 %v5210, %v5208
    %v5533 = vpack.c.b16 %v5211, %v5209
    %v5534 = vpack.c.b16 %v5214, %v5212
    %v5535 = vpack.c.b16 %v5215, %v5213
    %v5536 = vpack.c.b16 %v5218, %v5216
    %v5537 = vpack.c.b16 %v5219, %v5217
    %v5538 = vpack.c.b16 %v5222, %v5220
    %v5539 = vpack.c.b16 %v5223, %v5221
    %v5540 = vpack.c.b16 %v5226, %v5224
    %v5541 = vpack.c.b16 %v5227, %v5225
    %v5542 = vpack.c.b16 %v5230, %v5228
    %v5543 = vpack.c.b16 %v5231, %v5229
    %v5544 = vpack.c.b16 %v5234, %v5232
    %v5545 = vpack.c.b16 %v5235, %v5233
    %v5546 = vpack.c.b16 %v5238, %v5236
    %v5547 = vpack.c.b16 %v5239, %v5237
    %v5548 = vpack.c.b16 %v5242, %v5240
    %v5549 = vpack.c.b16 %v5243, %v5241
    %v5550 = vpack.c.b16 %v5246, %v5244
    %v5551 = vpack.c.b16 %v5247, %v5245
    %v5552 = vpack.c.b16 %v5250, %v5248
    %v5553 = vpack.c.b16 %v5251, %v5249
    %v5554 = vpack.c.b16 %v5254, %v5252
    %v5555 = vpack.c.b16 %v5255, %v5253
    %v5556 = vpack.c.b16 %v5258, %v5256
    %v5557 = vpack.c.b16 %v5259, %v5257
    %v5558 = vpack.c.b16 %v5262, %v5260
    %v5559 = vpack.c.b16 %v5263, %v5261
    %v5560 = vpack.c.b16 %v5266, %v5264
    %v5561 = vpack.c.b16 %v5267, %v5265
    %v5562 = vpack.c.b16 %v5270, %v5268
    %v5563 = vpack.c.b16 %v5271, %v5269
    %v5564 = vpack.c.b16 %v5274, %v5272
    %v5565 = vpack.c.b16 %v5275, %v5273
    %v5566 = vpack.c.b16 %v5278, %v5276
    %v5567 = vpack.c.b16 %v5279, %v5277
    %v5568 = vpack.c.b16 %v5282, %v5280
    %v5569 = vpack.c.b16 %v5283, %v5281
    %v5570 = vpack.c.b16 %v5286, %v5284
    %v5571 = vpack.c.b16 %v5287, %v5285
    %v5572 = vpack.c.b16 %v5290, %v5288
    %v5573 = vpack.c.b16 %v5291, %v5289
    %v5574 = vpack.c.b16 %v5294, %v5292
    %v5575 = vpack.c.b16 %v5295, %v5293
    %v5576 = vpack.c.b16 %v5298, %v5296
    %v5577 = vpack.c.b16 %v5299, %v5297
    %v5578 = vpack.c.b16 %v5302, %v5300
    %v5579 = vpack.c.b16 %v5303, %v5301
    %v5580 = vpack.c.b16 %v5306, %v5304
    %v5581 = vpack.c.b16 %v5307, %v5305
    %v5582 = vpack.c.b16 %v5310, %v5308
    %v5583 = vpack.c.b16 %v5311, %v5309
    %v5584 = vpack.c.b16 %v5314, %v5312
    %v5585 = vpack.c.b16 %v5315, %v5313
    %v5586 = vpack.c.b16 %v5318, %v5316
    %v5587 = vpack.c.b16 %v5319, %v5317
    %v5588 = vpack.c.b16 %v5322, %v5320
    %v5589 = vpack.c.b16 %v5323, %v5321
    %v5590 = vpack.c.b16 %v5326, %v5324
    %v5591 = vpack.c.b16 %v5327, %v5325
    %v5592 = vpack.c.b16 %v5330, %v5328
    %v5593 = vpack.c.b16 %v5331, %v5329
    %v5594 = vpack.c.b16 %v5334, %v5332
    %v5595 = vpack.c.b16 %v5335, %v5333
    %v5596 = vpack.c.b16 %v5338, %v5336
    %v5597 = vpack.c.b16 %v5339, %v5337
    %v5598 = vpack.c.b16 %v5342, %v5340
    %v5599 = vpack.c.b16 %v5343, %v5341
    %v5600 = vpack.c.b16 %v5346, %v5344
    %v5601 = vpack.c.b16 %v5347, %v5345
    %v5602 = vpack.c.b16 %v5350, %v5348
    %v5603 = vpack.c.b16 %v5351, %v5349
    %v5604 = vpack.c.b16 %v5354, %v5352
    %v5605 = vpack.c.b16 %v5355, %v5353
    %v5606 = vpack.c.b16 %v5358, %v5356
    %v5607 = vpack.c.b16 %v5359, %v5357
    %v5608 = vpack.c.b16 %v5362, %v5360
    %v5609 = vpack.c.b16 %v5363, %v5361
    %v5610 = vpack.c.b16 %v5366, %v5364
    %v5611 = vpack.c.b16 %v5367, %v5365
    %v5612 = vpack.c.b16 %v5370, %v5368
    %v5613 = vpack.c.b16 %v5371, %v5369
    %v5614 = vpack.c.b16 %v5374, %v5372
    %v5615 = vpack.c.b16 %v5375, %v5373
    %v5616 = vpack.c.b16 %v5378, %v5376
    %v5617 = vpack.c.b16 %v5379, %v5377
    %v5618 = vpack.c.b16 %v5382, %v5380
    %v5619 = vpack.c.b16 %v5383, %v5381
    %v5620 = vpack.c.b16 %v5386, %v5384
    %v5621 = vpack.c.b16 %v5387, %v5385
    %v5622 = vpack.c.b16 %v5390, %v5388
    %v5623 = vpack.c.b16 %v5391, %v5389
    %v5624 = vpack.c.b16 %v5394, %v5392
    %v5625 = vpack.c.b16 %v5395, %v5393
    %v5626 = vpack.c.b16 %v5398, %v5396
    %v5627 = vpack.c.b16 %v5399, %v5397
    %v5628 = vpack.c.b16 %v5402, %v5400
    %v5629 = vpack.c.b16 %v5403, %v5401
    %v5630 = vpack.c.b16 %v5406, %v5404
    %v5631 = vpack.c.b16 %v5407, %v5405
    %v5632 = vpack.c.b16 %v5410, %v5408
    %v5633 = vpack.c.b16 %v5411, %v5409
    %v5634 = vpack.c.b16 %v5414, %v5412
    %v5635 = vpack.c.b16 %v5415, %v5413
    %v5636 = vpack.c.b16 %v5418, %v5416
    %v5637 = vpack.c.b16 %v5419, %v5417
    %v5638 = vpack.c.b16 %v5422, %v5420
    %v5639 = vpack.c.b16 %v5423, %v5421
    %v5640 = vpack.c.b16 %v5426, %v5424
    %v5641 = vpack.c.b16 %v5427, %v5425
    %v5642 = vpack.c.b16 %v5430, %v5428
    %v5643 = vpack.c.b16 %v5431, %v5429
    %v5644 = vpack.c.b16 %v5434, %v5432
    %v5645 = vpack.c.b16 %v5435, %v5433
    %v5646 = vpack.c.b16 %v5438, %v5436
    %v5647 = vpack.c.b16 %v5439, %v5437
    %v5648 = vpack.c.b16 %v5442, %v5440
    %v5649 = vpack.c.b16 %v5443, %v5441
    %v5650 = vpack.c.b16 %v5446, %v5444
    %v5651 = vpack.c.b16 %v5447, %v5445
    %v5652 = vpack.c.b16 %v5450, %v5448
    %v5653 = vpack.c.b16 %v5451, %v5449
    %v5654 = vpack.c.b16 %v5454, %v5452
    %v5655 = vpack.c.b16 %v5455, %v5453
    %v5656 = vpack.c.b16 %v5458, %v5456
    %v5657 = vpack.c.b16 %v5459, %v5457
    %v5658 = vpack.c.b16 %v5462, %v5460
    %v5659 = vpack.c.b16 %v5463, %v5461
    %v5660 = vpack.c.b16 %v5466, %v5464
    %v5661 = vpack.c.b16 %v5467, %v5465
    %v5662 = vpack.c.b16 %v5470, %v5468
    %v5663 = vpack.c.b16 %v5471, %v5469
    %5856 = vmatprep.subr.bf16.mxu0 %v5487
    %5857 = vmatpush1.bf16.msra.mxu0 %v5486
    %5858 = vmatprep.subr.bf16.mxu0 %v5485
    %5859 = vmatpush1.bf16.msra.mxu0 %v5484
    %5860 = vmatprep.subr.bf16.mxu0 %v5483
    %5861 = vmatpush1.bf16.msra.mxu0 %v5482
    %5862 = vmatprep.subr.bf16.mxu0 %v5481
    %5863 = vmatpush1.bf16.msra.mxu0 %v5480
    %5864 = vmatprep.subr.bf16.mxu0 %v5479
    %5865 = vmatpush1.bf16.msra.mxu0 %v5478
    %5866 = vmatprep.subr.bf16.mxu0 %v5477
    %5867 = vmatpush1.bf16.msra.mxu0 %v5476
    %5868 = vmatprep.subr.bf16.mxu0 %v5475
    %5869 = vmatpush1.bf16.msra.mxu0 %v5474
    %5870 = vmatprep.subr.bf16.mxu0 %v5473
    %5871 = vmatpush1.bf16.msra.mxu0 %v5472
    %5872 = vmatprep.subr.bf16.mxu0 %v5503
    %5873 = vmatpush2.bf16.msra.mxu0 %v5502
    %5874 = vmatprep.subr.bf16.mxu0 %v5501
    %5875 = vmatpush2.bf16.msra.mxu0 %v5500
    %5876 = vmatprep.subr.bf16.mxu0 %v5499
    %5877 = vmatpush2.bf16.msra.mxu0 %v5498
    %5878 = vmatprep.subr.bf16.mxu0 %v5497
    %5879 = vmatpush2.bf16.msra.mxu0 %v5496
    %5880 = vmatprep.subr.bf16.mxu0 %v5495
    %5881 = vmatpush2.bf16.msra.mxu0 %v5494
    %5882 = vmatprep.subr.bf16.mxu0 %v5493
    %5883 = vmatpush2.bf16.msra.mxu0 %v5492
    %5884 = vmatprep.subr.bf16.mxu0 %v5491
    %5885 = vmatpush2.bf16.msra.mxu0 %v5490
    %5886 = vmatprep.subr.bf16.mxu0 %v5489
    %5887 = vmatpush2.bf16.msra.mxu0 %v5488
    %5888 = vmatprep.mubr.bf16.mxu0 %v4873
    %5889 = vmatmul.mubr.bf16.gmra.mxu0 %v4872
    %v5890 = vpop.f32.mrf.mxu0
    %v5891 = vadd.f32 %v4804, %v5890
    %v5892 = vpop.f32.mrf.mxu0
    %v5893 = vadd.f32 %v4808, %v5892
    %v5894 = vpop.f32.mrf.mxu0
    %v5895 = vpop.f32.mrf.mxu0
    %5896 = vdwg.mxu0
    %5897 = vmatprep.subr.bf16.mxu0 %v5519
    %5898 = vmatpush1.bf16.msra.mxu0 %v5518
    %5899 = vmatprep.subr.bf16.mxu0 %v5517
    %5900 = vmatpush1.bf16.msra.mxu0 %v5516
    %5901 = vmatprep.subr.bf16.mxu0 %v5515
    %5902 = vmatpush1.bf16.msra.mxu0 %v5514
    %5903 = vmatprep.subr.bf16.mxu0 %v5513
    %5904 = vmatpush1.bf16.msra.mxu0 %v5512
    %5905 = vmatprep.subr.bf16.mxu0 %v5511
    %5906 = vmatpush1.bf16.msra.mxu0 %v5510
    %5907 = vmatprep.subr.bf16.mxu0 %v5509
    %5908 = vmatpush1.bf16.msra.mxu0 %v5508
    %5909 = vmatprep.subr.bf16.mxu0 %v5507
    %5910 = vmatpush1.bf16.msra.mxu0 %v5506
    %5911 = vmatprep.subr.bf16.mxu0 %v5505
    %5912 = vmatpush1.bf16.msra.mxu0 %v5504
    %5913 = vmatprep.subr.bf16.mxu0 %v5535
    %5914 = vmatpush2.bf16.msra.mxu0 %v5534
    %5915 = vmatprep.subr.bf16.mxu0 %v5533
    %5916 = vmatpush2.bf16.msra.mxu0 %v5532
    %5917 = vmatprep.subr.bf16.mxu0 %v5531
    %5918 = vmatpush2.bf16.msra.mxu0 %v5530
    %5919 = vmatprep.subr.bf16.mxu0 %v5529
    %5920 = vmatpush2.bf16.msra.mxu0 %v5528
    %5921 = vmatprep.subr.bf16.mxu0 %v5527
    %5922 = vmatpush2.bf16.msra.mxu0 %v5526
    %5923 = vmatprep.subr.bf16.mxu0 %v5525
    %5924 = vmatpush2.bf16.msra.mxu0 %v5524
    %5925 = vmatprep.subr.bf16.mxu0 %v5523
    %5926 = vmatpush2.bf16.msra.mxu0 %v5522
    %5927 = vmatprep.subr.bf16.mxu0 %v5521
    %5928 = vmatpush2.bf16.msra.mxu0 %v5520
    %5929 = vmatprep.mubr.bf16.mxu0 %v4875
    %5930 = vmatmul.mubr.bf16.gmra.mxu0 %v4874
    %v5931 = vpop.f32.mrf.mxu0
    %v5932 = vadd.f32 %v5891, %v5931
    %v5933 = vpop.f32.mrf.mxu0
    %v5934 = vadd.f32 %v5893, %v5933
    %v5935 = vpop.f32.mrf.mxu0
    %v5936 = vpop.f32.mrf.mxu0
    %5937 = vdwg.mxu0
    %5938 = vmatprep.subr.bf16.mxu0 %v5551
    %5939 = vmatpush1.bf16.msra.mxu0 %v5550
    %5940 = vmatprep.subr.bf16.mxu0 %v5549
    %5941 = vmatpush1.bf16.msra.mxu0 %v5548
    %5942 = vmatprep.subr.bf16.mxu0 %v5547
    %5943 = vmatpush1.bf16.msra.mxu0 %v5546
    %5944 = vmatprep.subr.bf16.mxu0 %v5545
    %5945 = vmatpush1.bf16.msra.mxu0 %v5544
    %5946 = vmatprep.subr.bf16.mxu0 %v5543
    %5947 = vmatpush1.bf16.msra.mxu0 %v5542
    %5948 = vmatprep.subr.bf16.mxu0 %v5541
    %5949 = vmatpush1.bf16.msra.mxu0 %v5540
    %5950 = vmatprep.subr.bf16.mxu0 %v5539
    %5951 = vmatpush1.bf16.msra.mxu0 %v5538
    %5952 = vmatprep.subr.bf16.mxu0 %v5537
    %5953 = vmatpush1.bf16.msra.mxu0 %v5536
    %5954 = vmatprep.subr.bf16.mxu0 %v5567
    %5955 = vmatpush2.bf16.msra.mxu0 %v5566
    %5956 = vmatprep.subr.bf16.mxu0 %v5565
    %5957 = vmatpush2.bf16.msra.mxu0 %v5564
    %5958 = vmatprep.subr.bf16.mxu0 %v5563
    %5959 = vmatpush2.bf16.msra.mxu0 %v5562
    %5960 = vmatprep.subr.bf16.mxu0 %v5561
    %5961 = vmatpush2.bf16.msra.mxu0 %v5560
    %5962 = vmatprep.subr.bf16.mxu0 %v5559
    %5963 = vmatpush2.bf16.msra.mxu0 %v5558
    %5964 = vmatprep.subr.bf16.mxu0 %v5557
    %5965 = vmatpush2.bf16.msra.mxu0 %v5556
    %5966 = vmatprep.subr.bf16.mxu0 %v5555
    %5967 = vmatpush2.bf16.msra.mxu0 %v5554
    %5968 = vmatprep.subr.bf16.mxu0 %v5553
    %5969 = vmatpush2.bf16.msra.mxu0 %v5552
    %5970 = vmatprep.mubr.bf16.mxu0 %v4877
    %5971 = vmatmul.mubr.bf16.gmra.mxu0 %v4876
    %v5972 = vpop.f32.mrf.mxu0
    %v5973 = vadd.f32 %v5932, %v5972
    %v5974 = vpop.f32.mrf.mxu0
    %v5975 = vadd.f32 %v5934, %v5974
    %v5976 = vpop.f32.mrf.mxu0
    %v5977 = vpop.f32.mrf.mxu0
    %5978 = vdwg.mxu0
    %5979 = vmatprep.subr.bf16.mxu0 %v5583
    %5980 = vmatpush1.bf16.msra.mxu0 %v5582
    %5981 = vmatprep.subr.bf16.mxu0 %v5581
    %5982 = vmatpush1.bf16.msra.mxu0 %v5580
    %5983 = vmatprep.subr.bf16.mxu0 %v5579
    %5984 = vmatpush1.bf16.msra.mxu0 %v5578
    %5985 = vmatprep.subr.bf16.mxu0 %v5577
    %5986 = vmatpush1.bf16.msra.mxu0 %v5576
    %5987 = vmatprep.subr.bf16.mxu0 %v5575
    %5988 = vmatpush1.bf16.msra.mxu0 %v5574
    %5989 = vmatprep.subr.bf16.mxu0 %v5573
    %5990 = vmatpush1.bf16.msra.mxu0 %v5572
    %5991 = vmatprep.subr.bf16.mxu0 %v5571
    %5992 = vmatpush1.bf16.msra.mxu0 %v5570
    %5993 = vmatprep.subr.bf16.mxu0 %v5569
    %5994 = vmatpush1.bf16.msra.mxu0 %v5568
    %5995 = vmatprep.subr.bf16.mxu0 %v5599
    %5996 = vmatpush2.bf16.msra.mxu0 %v5598
    %5997 = vmatprep.subr.bf16.mxu0 %v5597
    %5998 = vmatpush2.bf16.msra.mxu0 %v5596
    %5999 = vmatprep.subr.bf16.mxu0 %v5595
    %6000 = vmatpush2.bf16.msra.mxu0 %v5594
    %6001 = vmatprep.subr.bf16.mxu0 %v5593
    %6002 = vmatpush2.bf16.msra.mxu0 %v5592
    %6003 = vmatprep.subr.bf16.mxu0 %v5591
    %6004 = vmatpush2.bf16.msra.mxu0 %v5590
    %6005 = vmatprep.subr.bf16.mxu0 %v5589
    %6006 = vmatpush2.bf16.msra.mxu0 %v5588
    %6007 = vmatprep.subr.bf16.mxu0 %v5587
    %6008 = vmatpush2.bf16.msra.mxu0 %v5586
    %6009 = vmatprep.subr.bf16.mxu0 %v5585
    %6010 = vmatpush2.bf16.msra.mxu0 %v5584
    %6011 = vmatprep.mubr.bf16.mxu0 %v4879
    %6012 = vmatmul.mubr.bf16.gmra.mxu0 %v4878
    %v6013 = vpop.f32.mrf.mxu0
    %v6014 = vadd.f32 %v5973, %v6013
    %v6015 = vpop.f32.mrf.mxu0
    %v6016 = vadd.f32 %v5975, %v6015
    %v6017 = vpop.f32.mrf.mxu0
    %v6018 = vpop.f32.mrf.mxu0
    %6019 = vdwg.mxu0
    %6020 = vmatprep.subr.bf16.mxu0 %v5615
    %6021 = vmatpush1.bf16.msra.mxu0 %v5614
    %6022 = vmatprep.subr.bf16.mxu0 %v5613
    %6023 = vmatpush1.bf16.msra.mxu0 %v5612
    %6024 = vmatprep.subr.bf16.mxu0 %v5611
    %6025 = vmatpush1.bf16.msra.mxu0 %v5610
    %6026 = vmatprep.subr.bf16.mxu0 %v5609
    %6027 = vmatpush1.bf16.msra.mxu0 %v5608
    %6028 = vmatprep.subr.bf16.mxu0 %v5607
    %6029 = vmatpush1.bf16.msra.mxu0 %v5606
    %6030 = vmatprep.subr.bf16.mxu0 %v5605
    %6031 = vmatpush1.bf16.msra.mxu0 %v5604
    %6032 = vmatprep.subr.bf16.mxu0 %v5603
    %6033 = vmatpush1.bf16.msra.mxu0 %v5602
    %6034 = vmatprep.subr.bf16.mxu0 %v5601
    %6035 = vmatpush1.bf16.msra.mxu0 %v5600
    %6036 = vmatprep.subr.bf16.mxu0 %v5631
    %6037 = vmatpush2.bf16.msra.mxu0 %v5630
    %6038 = vmatprep.subr.bf16.mxu0 %v5629
    %6039 = vmatpush2.bf16.msra.mxu0 %v5628
    %6040 = vmatprep.subr.bf16.mxu0 %v5627
    %6041 = vmatpush2.bf16.msra.mxu0 %v5626
    %6042 = vmatprep.subr.bf16.mxu0 %v5625
    %6043 = vmatpush2.bf16.msra.mxu0 %v5624
    %6044 = vmatprep.subr.bf16.mxu0 %v5623
    %6045 = vmatpush2.bf16.msra.mxu0 %v5622
    %6046 = vmatprep.subr.bf16.mxu0 %v5621
    %6047 = vmatpush2.bf16.msra.mxu0 %v5620
    %6048 = vmatprep.subr.bf16.mxu0 %v5619
    %6049 = vmatpush2.bf16.msra.mxu0 %v5618
    %6050 = vmatprep.subr.bf16.mxu0 %v5617
    %6051 = vmatpush2.bf16.msra.mxu0 %v5616
    %6052 = vmatprep.mubr.bf16.mxu0 %v4881
    %6053 = vmatmul.mubr.bf16.gmra.mxu0 %v4880
    %v6054 = vpop.f32.mrf.mxu0
    %v6055 = vadd.f32 %v6014, %v6054
    %v6056 = vpop.f32.mrf.mxu0
    %v6057 = vadd.f32 %v6016, %v6056
    %v6058 = vpop.f32.mrf.mxu0
    %v6059 = vpop.f32.mrf.mxu0
    %6060 = vdwg.mxu0
    %6061 = vmatprep.subr.bf16.mxu0 %v5647
    %6062 = vmatpush1.bf16.msra.mxu0 %v5646
    %6063 = vmatprep.subr.bf16.mxu0 %v5645
    %6064 = vmatpush1.bf16.msra.mxu0 %v5644
    %6065 = vmatprep.subr.bf16.mxu0 %v5643
    %6066 = vmatpush1.bf16.msra.mxu0 %v5642
    %6067 = vmatprep.subr.bf16.mxu0 %v5641
    %6068 = vmatpush1.bf16.msra.mxu0 %v5640
    %6069 = vmatprep.subr.bf16.mxu0 %v5639
    %6070 = vmatpush1.bf16.msra.mxu0 %v5638
    %6071 = vmatprep.subr.bf16.mxu0 %v5637
    %6072 = vmatpush1.bf16.msra.mxu0 %v5636
    %6073 = vmatprep.subr.bf16.mxu0 %v5635
    %6074 = vmatpush1.bf16.msra.mxu0 %v5634
    %6075 = vmatprep.subr.bf16.mxu0 %v5633
    %6076 = vmatpush1.bf16.msra.mxu0 %v5632
    %6077 = vmatprep.subr.bf16.mxu0 %v5663
    %6078 = vmatpush2.bf16.msra.mxu0 %v5662
    %6079 = vmatprep.subr.bf16.mxu0 %v5661
    %6080 = vmatpush2.bf16.msra.mxu0 %v5660
    %6081 = vmatprep.subr.bf16.mxu0 %v5659
    %6082 = vmatpush2.bf16.msra.mxu0 %v5658
    %6083 = vmatprep.subr.bf16.mxu0 %v5657
    %6084 = vmatpush2.bf16.msra.mxu0 %v5656
    %6085 = vmatprep.subr.bf16.mxu0 %v5655
    %6086 = vmatpush2.bf16.msra.mxu0 %v5654
    %6087 = vmatprep.subr.bf16.mxu0 %v5653
    %6088 = vmatpush2.bf16.msra.mxu0 %v5652
    %6089 = vmatprep.subr.bf16.mxu0 %v5651
    %6090 = vmatpush2.bf16.msra.mxu0 %v5650
    %6091 = vmatprep.subr.bf16.mxu0 %v5649
    %6092 = vmatpush2.bf16.msra.mxu0 %v5648
    %6093 = vmatprep.mubr.bf16.mxu0 %v4883
    %6094 = vmatmul.mubr.bf16.gmra.mxu0 %v4882
    %v6095 = vpop.f32.mrf.mxu0
    %v6096 = vadd.f32 %v6055, %v6095
    %v6097 = vpop.f32.mrf.mxu0
    %v6098 = vadd.f32 %v6057, %v6097
    %v6099 = vpop.f32.mrf.mxu0
    %v6100 = vpop.f32.mrf.mxu0
    %6101 = vdwg.mxu0
    %v6102 = vmax.f32 %v6096, 0.0
    %v6103 = vmax.f32 %v6098, 0.0
    %v6106 = vcombine.low %v6102, %v6103
    %v6108 = vunpack.c.l.s4 1983009808
    %v6109 = vunpack.c.0.s8 %v6108
    %v6110 = vlaneseq
    %v6111 = vshrl.u32 %v6110, 7
    %v6112 = vsub.s32 %v6109, %v6111
    %v6113 = vrot.slane %v6106, %v6112
    %6115 = vst [vmem:[#allocation11] sm:$0xf] %v6113
    // Predicated region
    $region42: #{tpu_custom_call.1} parent=1 // pred_check
      _
    $region43: #{tpu_custom_call.1} parent=1 // pred_check_branch
      %6117 = sbr.rel (0) target = $region45
    $region44: #{tpu_custom_call.1} parent=1 // pred_region
      %s6119 = ssub.s32 64, 64
      %6120 = vsyncadd [#allocation4], %s6119
      %s6122 = sshll.u32 [#allocation11], 4
      %s6123 = int_to_ptr.vmem [resolvable:$true] %s6122
      %6125 = dma.vmem_to_hbm [thread:$0]  %s6123, 64, %s5, [#allocation4]
    $region45: #{tpu_custom_call.1} parent=1 // pred_fallthru
      _
    // Predicated region
    $region46: #{tpu_custom_call.1} parent=1 // pred_check
      _
    $region47: #{tpu_custom_call.1} parent=1 // pred_check_branch
      %6127 = sbr.rel (0) target = $region49
    $region48: #{tpu_custom_call.1} parent=1 // pred_region
      %6128 = dma.done [#allocation4], 64
    $region49: #{tpu_custom_call.1} parent=1 // pred_fallthru
      _
    %6129 = vsyncpa [#allocation3], 1
    %6130 = vsyncpa [#allocation6], 1
    %6131 = vsyncpa [#allocation9], 1
    %6132 = vsyncpa [#allocation4], 1

</llo_original>
